<compile_context>
chip_gen: v6e
topology: v6e:2x2x1
jax: 0.10.0
libtpu: 0.0.40
codegen_flags: <defaults>
</compile_context>

<pallas_src>
import functools

import jax
import jax.numpy as jnp
from jax.experimental import pallas as pl
from jax.experimental.pallas import tpu as pltpu

LN_EPS = 1e-5                 # PyTorch nn.LayerNorm default eps
_INV_SQRT2 = 0.7071067811865476


def _layernorm(x, w, b):
    mu = jnp.mean(x, axis=-1, keepdims=True)
    var = jnp.mean((x - mu) ** 2, axis=-1, keepdims=True)
    return (x - mu) * jax.lax.rsqrt(var + LN_EPS) * w + b


def _gelu_exact(x):
    # PyTorch nn.GELU() default (approximate='none'): 0.5*x*(1+erf(x/sqrt(2)))
    return 0.5 * x * (1.0 + jax.lax.erf(x * _INV_SQRT2))


def hvt_stage_kernel(x_ref,
                     ln1w_ref, ln1b_ref, wqkv_ref, bqkv_ref, wproj_ref, bproj_ref,
                     ln2w_ref, ln2b_ref, wfc1_ref, bfc1_ref, wfc2_ref, bfc2_ref,
                     out_ref, *, depth, num_heads, batch, seq, scale):
    x = x_ref[...].astype(jnp.float32)        # (B*N, C) token slab
    BN, C = x.shape
    hd = C // num_heads
    G = batch * num_heads                     # merged (batch, head) axis

    def split_heads(t):                       # (B*N, C) -> (B*H, N, hd)
        parts = [t[:, h * hd:(h + 1) * hd].reshape(batch, 1, seq, hd)
                 for h in range(num_heads)]
        return jnp.concatenate(parts, axis=1).reshape(G, seq, hd)

    for d in range(depth):                    # static unroll; weights stay in VMEM
        # ---- x = x + proj(attn(LN1(x))) ----
        xn = _layernorm(x, ln1w_ref[d], ln1b_ref[d])
        qkv = (jnp.dot(xn, wqkv_ref[d], preferred_element_type=jnp.float32)
               + bqkv_ref[d])
        q = qkv[:, :C] * scale                # fold 1/sqrt(hd) into q
        k = qkv[:, C:2 * C]
        v = qkv[:, 2 * C:]

        qh, kh, vh = split_heads(q), split_heads(k), split_heads(v)
        # batched over (batch*heads); contraction on last dims (no k.T)
        s = jnp.einsum('gqd,gkd->gqk', qh, kh, preferred_element_type=jnp.float32)
        s = s - jnp.max(s, axis=-1, keepdims=True)
        p = jnp.exp(s)
        p = p * pl.reciprocal(jnp.sum(p, axis=-1, keepdims=True), approx=True)
        o = jnp.einsum('gqk,gkd->gqd', p, vh, preferred_element_type=jnp.float32)

        o4 = o.reshape(batch, num_heads, seq, hd)
        attn_out = jnp.concatenate(
            [o4[:, h].reshape(BN, hd) for h in range(num_heads)], axis=-1)
        attn_out = (jnp.dot(attn_out, wproj_ref[d],
                            preferred_element_type=jnp.float32) + bproj_ref[d])
        x = x + attn_out

        # ---- x = x + fc2(GELU(fc1(LN2(x)))) ----
        xn2 = _layernorm(x, ln2w_ref[d], ln2b_ref[d])
        h1 = (jnp.dot(xn2, wfc1_ref[d], preferred_element_type=jnp.float32)
              + bfc1_ref[d])
        h1 = _gelu_exact(h1)
        h2 = (jnp.dot(h1, wfc2_ref[d], preferred_element_type=jnp.float32)
              + bfc2_ref[d])
        x = x + h2

    out_ref[...] = x.astype(out_ref.dtype)


def hvt_stage_forward(x, params, num_heads):
    """HVTStage.forward (downsample_class=None): sequential TransformerBlocks."""
    B, N, C = x.shape
    depth = params["wqkv"].shape[0]
    scale = float((C // num_heads) ** -0.5)

    kernel = functools.partial(hvt_stage_kernel, depth=depth,
                               num_heads=num_heads, batch=B, seq=N, scale=scale)
    vmem = pl.BlockSpec(memory_space=pltpu.MemorySpace.VMEM)
    out2d = pl.pallas_call(
        kernel,
        out_shape=jax.ShapeDtypeStruct((B * N, C), x.dtype),
        in_specs=[vmem] * 13,
        out_specs=vmem,
    )(x.reshape(B * N, C),
      params["ln1_w"], params["ln1_b"], params["wqkv"], params["bqkv"],
      params["wproj"], params["bproj"], params["ln2_w"], params["ln2_b"],
      params["wfc1"], params["bfc1"], params["wfc2"], params["bfc2"])
    return out2d.reshape(B, N, C)


# ----------------- pure-JAX reference (mirrors the PyTorch math) ---------------
def hvt_stage_ref(x, p, num_heads):
    B, N, C = x.shape
    depth = p["wqkv"].shape[0]
    hd = C // num_heads
    scale = hd ** -0.5

    def ln(y, w, b):
        mu = jnp.mean(y, -1, keepdims=True)
        var = jnp.mean((y - mu) ** 2, -1, keepdims=True)
        return (y - mu) / jnp.sqrt(var + LN_EPS) * w + b

    for d in range(depth):
        xn = ln(x, p["ln1_w"][d], p["ln1_b"][d])
        qkv = xn @ p["wqkv"][d] + p["bqkv"][d]
        qkv = qkv.reshape(B, N, 3, num_heads, hd).transpose(2, 0, 3, 1, 4)
        q, k, v = qkv[0], qkv[1], qkv[2]
        attn = jnp.einsum("bhqd,bhkd->bhqk", q, k) * scale
        attn = jax.nn.softmax(attn, axis=-1)
        o = jnp.einsum("bhqk,bhkd->bhqd", attn, v)
        o = o.transpose(0, 2, 1, 3).reshape(B, N, C)
        x = x + (o @ p["wproj"][d] + p["bproj"][d])
        xn2 = ln(x, p["ln2_w"][d], p["ln2_b"][d])
        h = jax.nn.gelu(xn2 @ p["wfc1"][d] + p["bfc1"][d], approximate=False)
        x = x + (h @ p["wfc2"][d] + p["bfc2"][d])
    return x


# ----------------------------- parameter init ---------------------------------
def init_stage_params(key, depth, dim, num_heads, mlp_ratio):
    hidden = int(dim * mlp_ratio)

    def n(k, shp):
        return (0.02 * jax.random.normal(k, shp)).astype(jnp.float32)

    blocks = []
    for kb in jax.random.split(key, depth):
        ks = jax.random.split(kb, 8)
        blocks.append({
            "ln1_w": jnp.ones((1, dim), jnp.float32),
            "ln1_b": jnp.zeros((1, dim), jnp.float32),
            "wqkv": n(ks[0], (dim, 3 * dim)),
            "bqkv": n(ks[1], (1, 3 * dim)),          # qkv_bias=True
            "wproj": n(ks[2], (dim, dim)),
            "bproj": n(ks[3], (1, dim)),
            "ln2_w": jnp.ones((1, dim), jnp.float32),
            "ln2_b": jnp.zeros((1, dim), jnp.float32),
            "wfc1": n(ks[4], (dim, hidden)),
            "bfc1": n(ks[5], (1, hidden)),
            "wfc2": n(ks[6], (hidden, dim)),
            "bfc2": n(ks[7], (1, dim)),
        })
    # stack per-block params along a leading `depth` axis for the fused kernel
    return {k: jnp.stack([b[k] for b in blocks]) for k in blocks[0]}


if __name__ == "__main__":
    # HVTStage config: dim=32, input_resolution_patches=(4, 2) -> N=8 tokens,
    # depth=2, num_heads=4, mlp_ratio=4.0, qkv_bias=True, drop=0, attn_drop=0,
    # drop_path_prob=0, downsample_class=None  (eval mode, no checkpointing).
    B, N, C = 2, 8, 32
    num_heads, mlp_ratio, depth = 4, 4.0, 2

    kx, kp = jax.random.split(jax.random.PRNGKey(0))
    x = jax.random.normal(kx, (B, N, C), dtype=jnp.float32)
    params = init_stage_params(kp, depth, C, num_heads, mlp_ratio)

    out = hvt_stage_forward(x, params, num_heads)
    out = jax.block_until_ready(out)

    ref = hvt_stage_ref(x, params, num_heads)
    assert out.shape == (B, N, C)
    assert jnp.allclose(out, ref, rtol=2e-3, atol=2e-3), "mismatch vs reference"

    print("KERNEL_OK")
</pallas_src>

<mosaic_0001>
module attributes {stable_mosaic.version = 11 : i64} {
  func.func @hvt_stage_kernel(%arg0: memref<16x32xf32, #tpu.memory_space<vmem>>, %arg1: memref<2x1x32xf32, #tpu.memory_space<vmem>>, %arg2: memref<2x1x32xf32, #tpu.memory_space<vmem>>, %arg3: memref<2x32x96xf32, #tpu.memory_space<vmem>>, %arg4: memref<2x1x96xf32, #tpu.memory_space<vmem>>, %arg5: memref<2x32x32xf32, #tpu.memory_space<vmem>>, %arg6: memref<2x1x32xf32, #tpu.memory_space<vmem>>, %arg7: memref<2x1x32xf32, #tpu.memory_space<vmem>>, %arg8: memref<2x1x32xf32, #tpu.memory_space<vmem>>, %arg9: memref<2x32x128xf32, #tpu.memory_space<vmem>>, %arg10: memref<2x1x128xf32, #tpu.memory_space<vmem>>, %arg11: memref<2x128x32xf32, #tpu.memory_space<vmem>>, %arg12: memref<2x1x32xf32, #tpu.memory_space<vmem>>, %arg13: memref<16x32xf32, #tpu.memory_space<vmem>>) attributes {dimension_semantics = [], scalar_prefetch = 0 : i64, scratch_operands = 0 : i64, tpu.core_type = #tpu.core_type<tc>} {
    %c0 = arith.constant 0 : index
    %c0_0 = arith.constant 0 : index
    %0 = vector.load %arg0[%c0, %c0_0] : memref<16x32xf32, #tpu.memory_space<vmem>>, vector<16x32xf32>
    %c0_1 = arith.constant 0 : index
    %c0_2 = arith.constant 0 : index
    %c0_3 = arith.constant 0 : index
    %1 = vector.load %arg1[%c0_1, %c0_2, %c0_3] : memref<2x1x32xf32, #tpu.memory_space<vmem>>, vector<1x1x32xf32>
    %2 = vector.shape_cast %1 : vector<1x1x32xf32> to vector<1x32xf32>
    %c0_4 = arith.constant 0 : index
    %c0_5 = arith.constant 0 : index
    %c0_6 = arith.constant 0 : index
    %3 = vector.load %arg2[%c0_4, %c0_5, %c0_6] : memref<2x1x32xf32, #tpu.memory_space<vmem>>, vector<1x1x32xf32>
    %4 = vector.shape_cast %3 : vector<1x1x32xf32> to vector<1x32xf32>
    %cst = arith.constant dense<0.000000e+00> : vector<16xf32>
    %5 = vector.multi_reduction <add>, %0, %cst [1] : vector<16x32xf32> to vector<16xf32>
    %6 = vector.shape_cast %5 : vector<16xf32> to vector<16x1xf32>
    %cst_7 = arith.constant 3.200000e+01 : f32
    %7 = vector.broadcast %cst_7 : f32 to vector<16x1xf32>
    %8 = arith.divf %6, %7 : vector<16x1xf32>
    %9 = vector.broadcast %8 : vector<16x1xf32> to vector<16x32xf32>
    %10 = arith.subf %0, %9 : vector<16x32xf32>
    %11 = arith.mulf %10, %10 : vector<16x32xf32>
    %cst_8 = arith.constant dense<0.000000e+00> : vector<16xf32>
    %12 = vector.multi_reduction <add>, %11, %cst_8 [1] : vector<16x32xf32> to vector<16xf32>
    %13 = vector.shape_cast %12 : vector<16xf32> to vector<16x1xf32>
    %cst_9 = arith.constant 3.200000e+01 : f32
    %14 = vector.broadcast %cst_9 : f32 to vector<16x1xf32>
    %15 = arith.divf %13, %14 : vector<16x1xf32>
    %16 = vector.broadcast %8 : vector<16x1xf32> to vector<16x32xf32>
    %17 = arith.subf %0, %16 : vector<16x32xf32>
    %cst_10 = arith.constant 9.99999974E-6 : f32
    %18 = vector.broadcast %cst_10 : f32 to vector<16x1xf32>
    %19 = arith.addf %15, %18 : vector<16x1xf32>
    %20 = math.rsqrt %19 : vector<16x1xf32>
    %21 = vector.broadcast %20 : vector<16x1xf32> to vector<16x32xf32>
    %22 = arith.mulf %17, %21 : vector<16x32xf32>
    %23 = vector.broadcast %2 : vector<1x32xf32> to vector<16x32xf32>
    %24 = arith.mulf %22, %23 : vector<16x32xf32>
    %25 = vector.broadcast %4 : vector<1x32xf32> to vector<16x32xf32>
    %26 = arith.addf %24, %25 : vector<16x32xf32>
    %c0_11 = arith.constant 0 : index
    %c0_12 = arith.constant 0 : index
    %c0_13 = arith.constant 0 : index
    %27 = vector.load %arg3[%c0_11, %c0_12, %c0_13] : memref<2x32x96xf32, #tpu.memory_space<vmem>>, vector<1x32x96xf32>
    %28 = vector.shape_cast %27 : vector<1x32x96xf32> to vector<32x96xf32>
    %cst_14 = arith.constant dense<0.000000e+00> : vector<16x96xf32>
    %29 = tpu.matmul %26, %28, %cst_14 {dimension_numbers = #tpu.dot_dimension_numbers<[1], [0], [0], [1], [0, 0, 1, 1], [], []>} : vector<16x32xf32>, vector<32x96xf32>, vector<16x96xf32> -> vector<16x96xf32>
    %c0_15 = arith.constant 0 : index
    %c0_16 = arith.constant 0 : index
    %c0_17 = arith.constant 0 : index
    %30 = vector.load %arg4[%c0_15, %c0_16, %c0_17] : memref<2x1x96xf32, #tpu.memory_space<vmem>>, vector<1x1x96xf32>
    %31 = vector.shape_cast %30 : vector<1x1x96xf32> to vector<1x96xf32>
    %32 = vector.broadcast %31 : vector<1x96xf32> to vector<16x96xf32>
    %33 = arith.addf %29, %32 : vector<16x96xf32>
    %34 = vector.extract_strided_slice %33 {offsets = [0, 0], sizes = [16, 32], strides = [1, 1]} : vector<16x96xf32> to vector<16x32xf32>
    %cst_18 = arith.constant 0.353553385 : f32
    %35 = vector.broadcast %cst_18 : f32 to vector<16x32xf32>
    %36 = arith.mulf %34, %35 : vector<16x32xf32>
    %37 = vector.extract_strided_slice %33 {offsets = [0, 32], sizes = [16, 32], strides = [1, 1]} : vector<16x96xf32> to vector<16x32xf32>
    %38 = vector.extract_strided_slice %33 {offsets = [0, 64], sizes = [16, 32], strides = [1, 1]} : vector<16x96xf32> to vector<16x32xf32>
    %39 = vector.extract_strided_slice %36 {offsets = [0, 0], sizes = [16, 8], strides = [1, 1]} : vector<16x32xf32> to vector<16x8xf32>
    %40 = vector.shape_cast %39 : vector<16x8xf32> to vector<2x1x8x8xf32>
    %41 = vector.extract_strided_slice %36 {offsets = [0, 8], sizes = [16, 8], strides = [1, 1]} : vector<16x32xf32> to vector<16x8xf32>
    %42 = vector.shape_cast %41 : vector<16x8xf32> to vector<2x1x8x8xf32>
    %43 = vector.extract_strided_slice %36 {offsets = [0, 16], sizes = [16, 8], strides = [1, 1]} : vector<16x32xf32> to vector<16x8xf32>
    %44 = vector.shape_cast %43 : vector<16x8xf32> to vector<2x1x8x8xf32>
    %45 = vector.extract_strided_slice %36 {offsets = [0, 24], sizes = [16, 8], strides = [1, 1]} : vector<16x32xf32> to vector<16x8xf32>
    %46 = vector.shape_cast %45 : vector<16x8xf32> to vector<2x1x8x8xf32>
    %47 = tpu.concatenate %40, %42, %44, %46 in 1 : vector<2x1x8x8xf32>, vector<2x1x8x8xf32>, vector<2x1x8x8xf32>, vector<2x1x8x8xf32> -> vector<2x4x8x8xf32>
    %48 = vector.shape_cast %47 : vector<2x4x8x8xf32> to vector<8x8x8xf32>
    %49 = vector.extract_strided_slice %37 {offsets = [0, 0], sizes = [16, 8], strides = [1, 1]} : vector<16x32xf32> to vector<16x8xf32>
    %50 = vector.shape_cast %49 : vector<16x8xf32> to vector<2x1x8x8xf32>
    %51 = vector.extract_strided_slice %37 {offsets = [0, 8], sizes = [16, 8], strides = [1, 1]} : vector<16x32xf32> to vector<16x8xf32>
    %52 = vector.shape_cast %51 : vector<16x8xf32> to vector<2x1x8x8xf32>
    %53 = vector.extract_strided_slice %37 {offsets = [0, 16], sizes = [16, 8], strides = [1, 1]} : vector<16x32xf32> to vector<16x8xf32>
    %54 = vector.shape_cast %53 : vector<16x8xf32> to vector<2x1x8x8xf32>
    %55 = vector.extract_strided_slice %37 {offsets = [0, 24], sizes = [16, 8], strides = [1, 1]} : vector<16x32xf32> to vector<16x8xf32>
    %56 = vector.shape_cast %55 : vector<16x8xf32> to vector<2x1x8x8xf32>
    %57 = tpu.concatenate %50, %52, %54, %56 in 1 : vector<2x1x8x8xf32>, vector<2x1x8x8xf32>, vector<2x1x8x8xf32>, vector<2x1x8x8xf32> -> vector<2x4x8x8xf32>
    %58 = vector.shape_cast %57 : vector<2x4x8x8xf32> to vector<8x8x8xf32>
    %59 = vector.extract_strided_slice %38 {offsets = [0, 0], sizes = [16, 8], strides = [1, 1]} : vector<16x32xf32> to vector<16x8xf32>
    %60 = vector.shape_cast %59 : vector<16x8xf32> to vector<2x1x8x8xf32>
    %61 = vector.extract_strided_slice %38 {offsets = [0, 8], sizes = [16, 8], strides = [1, 1]} : vector<16x32xf32> to vector<16x8xf32>
    %62 = vector.shape_cast %61 : vector<16x8xf32> to vector<2x1x8x8xf32>
    %63 = vector.extract_strided_slice %38 {offsets = [0, 16], sizes = [16, 8], strides = [1, 1]} : vector<16x32xf32> to vector<16x8xf32>
    %64 = vector.shape_cast %63 : vector<16x8xf32> to vector<2x1x8x8xf32>
    %65 = vector.extract_strided_slice %38 {offsets = [0, 24], sizes = [16, 8], strides = [1, 1]} : vector<16x32xf32> to vector<16x8xf32>
    %66 = vector.shape_cast %65 : vector<16x8xf32> to vector<2x1x8x8xf32>
    %67 = tpu.concatenate %60, %62, %64, %66 in 1 : vector<2x1x8x8xf32>, vector<2x1x8x8xf32>, vector<2x1x8x8xf32>, vector<2x1x8x8xf32> -> vector<2x4x8x8xf32>
    %68 = vector.shape_cast %67 : vector<2x4x8x8xf32> to vector<8x8x8xf32>
    "tpu.trace_start"() <{level = 10 : i32, message = "gqd,gkd->gqk"}> : () -> ()
    %cst_19 = arith.constant dense<0.000000e+00> : vector<8x8x8xf32>
    %69 = tpu.matmul %48, %58, %cst_19 {dimension_numbers = #tpu.dot_dimension_numbers<[2], [2], [1], [1], [0, 0, 0, 1, 1, 1], [0], [0]>} : vector<8x8x8xf32>, vector<8x8x8xf32>, vector<8x8x8xf32> -> vector<8x8x8xf32>
    "tpu.trace_stop"() : () -> ()
    %cst_20 = arith.constant dense<0xFF800000> : vector<8x8xf32>
    %70 = vector.multi_reduction <maximumf>, %69, %cst_20 [2] : vector<8x8x8xf32> to vector<8x8xf32>
    %71 = vector.shape_cast %70 : vector<8x8xf32> to vector<8x8x1xf32>
    %72 = vector.broadcast %71 : vector<8x8x1xf32> to vector<8x8x8xf32>
    %73 = arith.subf %69, %72 : vector<8x8x8xf32>
    %74 = math.exp %73 : vector<8x8x8xf32>
    %cst_21 = arith.constant dense<0.000000e+00> : vector<8x8xf32>
    %75 = vector.multi_reduction <add>, %74, %cst_21 [2] : vector<8x8x8xf32> to vector<8x8xf32>
    %76 = vector.shape_cast %75 : vector<8x8xf32> to vector<8x8x1xf32>
    %77 = tpu.reciprocal %76 {approx = true} : vector<8x8x1xf32> -> vector<8x8x1xf32>
    %78 = vector.broadcast %77 : vector<8x8x1xf32> to vector<8x8x8xf32>
    %79 = arith.mulf %74, %78 : vector<8x8x8xf32>
    "tpu.trace_start"() <{level = 10 : i32, message = "gqk,gkd->gqd"}> : () -> ()
    %cst_22 = arith.constant dense<0.000000e+00> : vector<8x8x8xf32>
    %80 = tpu.matmul %79, %68, %cst_22 {dimension_numbers = #tpu.dot_dimension_numbers<[2], [1], [1], [2], [0, 0, 0, 1, 1, 2], [0], [0]>} : vector<8x8x8xf32>, vector<8x8x8xf32>, vector<8x8x8xf32> -> vector<8x8x8xf32>
    "tpu.trace_stop"() : () -> ()
    %81 = vector.shape_cast %80 : vector<8x8x8xf32> to vector<2x4x8x8xf32>
    %82 = vector.extract_strided_slice %81 {offsets = [0, 0, 0, 0], sizes = [2, 1, 8, 8], strides = [1, 1, 1, 1]} : vector<2x4x8x8xf32> to vector<2x1x8x8xf32>
    %83 = vector.shape_cast %82 : vector<2x1x8x8xf32> to vector<2x8x8xf32>
    %84 = vector.shape_cast %83 : vector<2x8x8xf32> to vector<16x8xf32>
    %85 = vector.extract_strided_slice %81 {offsets = [0, 1, 0, 0], sizes = [2, 1, 8, 8], strides = [1, 1, 1, 1]} : vector<2x4x8x8xf32> to vector<2x1x8x8xf32>
    %86 = vector.shape_cast %85 : vector<2x1x8x8xf32> to vector<2x8x8xf32>
    %87 = vector.shape_cast %86 : vector<2x8x8xf32> to vector<16x8xf32>
    %88 = vector.extract_strided_slice %81 {offsets = [0, 2, 0, 0], sizes = [2, 1, 8, 8], strides = [1, 1, 1, 1]} : vector<2x4x8x8xf32> to vector<2x1x8x8xf32>
    %89 = vector.shape_cast %88 : vector<2x1x8x8xf32> to vector<2x8x8xf32>
    %90 = vector.shape_cast %89 : vector<2x8x8xf32> to vector<16x8xf32>
    %91 = vector.extract_strided_slice %81 {offsets = [0, 3, 0, 0], sizes = [2, 1, 8, 8], strides = [1, 1, 1, 1]} : vector<2x4x8x8xf32> to vector<2x1x8x8xf32>
    %92 = vector.shape_cast %91 : vector<2x1x8x8xf32> to vector<2x8x8xf32>
    %93 = vector.shape_cast %92 : vector<2x8x8xf32> to vector<16x8xf32>
    %94 = tpu.concatenate %84, %87, %90, %93 in 1 : vector<16x8xf32>, vector<16x8xf32>, vector<16x8xf32>, vector<16x8xf32> -> vector<16x32xf32>
    %c0_23 = arith.constant 0 : index
    %c0_24 = arith.constant 0 : index
    %c0_25 = arith.constant 0 : index
    %95 = vector.load %arg5[%c0_23, %c0_24, %c0_25] : memref<2x32x32xf32, #tpu.memory_space<vmem>>, vector<1x32x32xf32>
    %96 = vector.shape_cast %95 : vector<1x32x32xf32> to vector<32x32xf32>
    %cst_26 = arith.constant dense<0.000000e+00> : vector<16x32xf32>
    %97 = tpu.matmul %94, %96, %cst_26 {dimension_numbers = #tpu.dot_dimension_numbers<[1], [0], [0], [1], [0, 0, 1, 1], [], []>} : vector<16x32xf32>, vector<32x32xf32>, vector<16x32xf32> -> vector<16x32xf32>
    %c0_27 = arith.constant 0 : index
    %c0_28 = arith.constant 0 : index
    %c0_29 = arith.constant 0 : index
    %98 = vector.load %arg6[%c0_27, %c0_28, %c0_29] : memref<2x1x32xf32, #tpu.memory_space<vmem>>, vector<1x1x32xf32>
    %99 = vector.shape_cast %98 : vector<1x1x32xf32> to vector<1x32xf32>
    %100 = vector.broadcast %99 : vector<1x32xf32> to vector<16x32xf32>
    %101 = arith.addf %97, %100 : vector<16x32xf32>
    %102 = arith.addf %0, %101 : vector<16x32xf32>
    %c0_30 = arith.constant 0 : index
    %c0_31 = arith.constant 0 : index
    %c0_32 = arith.constant 0 : index
    %103 = vector.load %arg7[%c0_30, %c0_31, %c0_32] : memref<2x1x32xf32, #tpu.memory_space<vmem>>, vector<1x1x32xf32>
    %104 = vector.shape_cast %103 : vector<1x1x32xf32> to vector<1x32xf32>
    %c0_33 = arith.constant 0 : index
    %c0_34 = arith.constant 0 : index
    %c0_35 = arith.constant 0 : index
    %105 = vector.load %arg8[%c0_33, %c0_34, %c0_35] : memref<2x1x32xf32, #tpu.memory_space<vmem>>, vector<1x1x32xf32>
    %106 = vector.shape_cast %105 : vector<1x1x32xf32> to vector<1x32xf32>
    %cst_36 = arith.constant dense<0.000000e+00> : vector<16xf32>
    %107 = vector.multi_reduction <add>, %102, %cst_36 [1] : vector<16x32xf32> to vector<16xf32>
    %108 = vector.shape_cast %107 : vector<16xf32> to vector<16x1xf32>
    %cst_37 = arith.constant 3.200000e+01 : f32
    %109 = vector.broadcast %cst_37 : f32 to vector<16x1xf32>
    %110 = arith.divf %108, %109 : vector<16x1xf32>
    %111 = vector.broadcast %110 : vector<16x1xf32> to vector<16x32xf32>
    %112 = arith.subf %102, %111 : vector<16x32xf32>
    %113 = arith.mulf %112, %112 : vector<16x32xf32>
    %cst_38 = arith.constant dense<0.000000e+00> : vector<16xf32>
    %114 = vector.multi_reduction <add>, %113, %cst_38 [1] : vector<16x32xf32> to vector<16xf32>
    %115 = vector.shape_cast %114 : vector<16xf32> to vector<16x1xf32>
    %cst_39 = arith.constant 3.200000e+01 : f32
    %116 = vector.broadcast %cst_39 : f32 to vector<16x1xf32>
    %117 = arith.divf %115, %116 : vector<16x1xf32>
    %118 = vector.broadcast %110 : vector<16x1xf32> to vector<16x32xf32>
    %119 = arith.subf %102, %118 : vector<16x32xf32>
    %cst_40 = arith.constant 9.99999974E-6 : f32
    %120 = vector.broadcast %cst_40 : f32 to vector<16x1xf32>
    %121 = arith.addf %117, %120 : vector<16x1xf32>
    %122 = math.rsqrt %121 : vector<16x1xf32>
    %123 = vector.broadcast %122 : vector<16x1xf32> to vector<16x32xf32>
    %124 = arith.mulf %119, %123 : vector<16x32xf32>
    %125 = vector.broadcast %104 : vector<1x32xf32> to vector<16x32xf32>
    %126 = arith.mulf %124, %125 : vector<16x32xf32>
    %127 = vector.broadcast %106 : vector<1x32xf32> to vector<16x32xf32>
    %128 = arith.addf %126, %127 : vector<16x32xf32>
    %c0_41 = arith.constant 0 : index
    %c0_42 = arith.constant 0 : index
    %c0_43 = arith.constant 0 : index
    %129 = vector.load %arg9[%c0_41, %c0_42, %c0_43] : memref<2x32x128xf32, #tpu.memory_space<vmem>>, vector<1x32x128xf32>
    %130 = vector.shape_cast %129 : vector<1x32x128xf32> to vector<32x128xf32>
    %cst_44 = arith.constant dense<0.000000e+00> : vector<16x128xf32>
    %131 = tpu.matmul %128, %130, %cst_44 {dimension_numbers = #tpu.dot_dimension_numbers<[1], [0], [0], [1], [0, 0, 1, 1], [], []>} : vector<16x32xf32>, vector<32x128xf32>, vector<16x128xf32> -> vector<16x128xf32>
    %c0_45 = arith.constant 0 : index
    %c0_46 = arith.constant 0 : index
    %c0_47 = arith.constant 0 : index
    %132 = vector.load %arg10[%c0_45, %c0_46, %c0_47] : memref<2x1x128xf32, #tpu.memory_space<vmem>>, vector<1x1x128xf32>
    %133 = vector.shape_cast %132 : vector<1x1x128xf32> to vector<1x128xf32>
    %134 = vector.broadcast %133 : vector<1x128xf32> to vector<16x128xf32>
    %135 = arith.addf %131, %134 : vector<16x128xf32>
    %cst_48 = arith.constant 5.000000e-01 : f32
    %136 = vector.broadcast %cst_48 : f32 to vector<16x128xf32>
    %137 = arith.mulf %136, %135 : vector<16x128xf32>
    %cst_49 = arith.constant 0.707106769 : f32
    %138 = vector.broadcast %cst_49 : f32 to vector<16x128xf32>
    %139 = arith.mulf %135, %138 : vector<16x128xf32>
    %140 = math.erf %139 : vector<16x128xf32>
    %cst_50 = arith.constant 1.000000e+00 : f32
    %141 = vector.broadcast %cst_50 : f32 to vector<16x128xf32>
    %142 = arith.addf %141, %140 : vector<16x128xf32>
    %143 = arith.mulf %137, %142 : vector<16x128xf32>
    %c0_51 = arith.constant 0 : index
    %c0_52 = arith.constant 0 : index
    %c0_53 = arith.constant 0 : index
    %144 = vector.load %arg11[%c0_51, %c0_52, %c0_53] : memref<2x128x32xf32, #tpu.memory_space<vmem>>, vector<1x128x32xf32>
    %145 = vector.shape_cast %144 : vector<1x128x32xf32> to vector<128x32xf32>
    %cst_54 = arith.constant dense<0.000000e+00> : vector<16x32xf32>
    %146 = tpu.matmul %143, %145, %cst_54 {dimension_numbers = #tpu.dot_dimension_numbers<[1], [0], [0], [1], [0, 0, 1, 1], [], []>} : vector<16x128xf32>, vector<128x32xf32>, vector<16x32xf32> -> vector<16x32xf32>
    %c0_55 = arith.constant 0 : index
    %c0_56 = arith.constant 0 : index
    %c0_57 = arith.constant 0 : index
    %147 = vector.load %arg12[%c0_55, %c0_56, %c0_57] : memref<2x1x32xf32, #tpu.memory_space<vmem>>, vector<1x1x32xf32>
    %148 = vector.shape_cast %147 : vector<1x1x32xf32> to vector<1x32xf32>
    %149 = vector.broadcast %148 : vector<1x32xf32> to vector<16x32xf32>
    %150 = arith.addf %146, %149 : vector<16x32xf32>
    %151 = arith.addf %102, %150 : vector<16x32xf32>
    %c1 = arith.constant 1 : index
    %c0_58 = arith.constant 0 : index
    %c0_59 = arith.constant 0 : index
    %152 = vector.load %arg1[%c1, %c0_58, %c0_59] : memref<2x1x32xf32, #tpu.memory_space<vmem>>, vector<1x1x32xf32>
    %153 = vector.shape_cast %152 : vector<1x1x32xf32> to vector<1x32xf32>
    %c1_60 = arith.constant 1 : index
    %c0_61 = arith.constant 0 : index
    %c0_62 = arith.constant 0 : index
    %154 = vector.load %arg2[%c1_60, %c0_61, %c0_62] : memref<2x1x32xf32, #tpu.memory_space<vmem>>, vector<1x1x32xf32>
    %155 = vector.shape_cast %154 : vector<1x1x32xf32> to vector<1x32xf32>
    %cst_63 = arith.constant dense<0.000000e+00> : vector<16xf32>
    %156 = vector.multi_reduction <add>, %151, %cst_63 [1] : vector<16x32xf32> to vector<16xf32>
    %157 = vector.shape_cast %156 : vector<16xf32> to vector<16x1xf32>
    %cst_64 = arith.constant 3.200000e+01 : f32
    %158 = vector.broadcast %cst_64 : f32 to vector<16x1xf32>
    %159 = arith.divf %157, %158 : vector<16x1xf32>
    %160 = vector.broadcast %159 : vector<16x1xf32> to vector<16x32xf32>
    %161 = arith.subf %151, %160 : vector<16x32xf32>
    %162 = arith.mulf %161, %161 : vector<16x32xf32>
    %cst_65 = arith.constant dense<0.000000e+00> : vector<16xf32>
    %163 = vector.multi_reduction <add>, %162, %cst_65 [1] : vector<16x32xf32> to vector<16xf32>
    %164 = vector.shape_cast %163 : vector<16xf32> to vector<16x1xf32>
    %cst_66 = arith.constant 3.200000e+01 : f32
    %165 = vector.broadcast %cst_66 : f32 to vector<16x1xf32>
    %166 = arith.divf %164, %165 : vector<16x1xf32>
    %167 = vector.broadcast %159 : vector<16x1xf32> to vector<16x32xf32>
    %168 = arith.subf %151, %167 : vector<16x32xf32>
    %cst_67 = arith.constant 9.99999974E-6 : f32
    %169 = vector.broadcast %cst_67 : f32 to vector<16x1xf32>
    %170 = arith.addf %166, %169 : vector<16x1xf32>
    %171 = math.rsqrt %170 : vector<16x1xf32>
    %172 = vector.broadcast %171 : vector<16x1xf32> to vector<16x32xf32>
    %173 = arith.mulf %168, %172 : vector<16x32xf32>
    %174 = vector.broadcast %153 : vector<1x32xf32> to vector<16x32xf32>
    %175 = arith.mulf %173, %174 : vector<16x32xf32>
    %176 = vector.broadcast %155 : vector<1x32xf32> to vector<16x32xf32>
    %177 = arith.addf %175, %176 : vector<16x32xf32>
    %c1_68 = arith.constant 1 : index
    %c0_69 = arith.constant 0 : index
    %c0_70 = arith.constant 0 : index
    %178 = vector.load %arg3[%c1_68, %c0_69, %c0_70] : memref<2x32x96xf32, #tpu.memory_space<vmem>>, vector<1x32x96xf32>
    %179 = vector.shape_cast %178 : vector<1x32x96xf32> to vector<32x96xf32>
    %cst_71 = arith.constant dense<0.000000e+00> : vector<16x96xf32>
    %180 = tpu.matmul %177, %179, %cst_71 {dimension_numbers = #tpu.dot_dimension_numbers<[1], [0], [0], [1], [0, 0, 1, 1], [], []>} : vector<16x32xf32>, vector<32x96xf32>, vector<16x96xf32> -> vector<16x96xf32>
    %c1_72 = arith.constant 1 : index
    %c0_73 = arith.constant 0 : index
    %c0_74 = arith.constant 0 : index
    %181 = vector.load %arg4[%c1_72, %c0_73, %c0_74] : memref<2x1x96xf32, #tpu.memory_space<vmem>>, vector<1x1x96xf32>
    %182 = vector.shape_cast %181 : vector<1x1x96xf32> to vector<1x96xf32>
    %183 = vector.broadcast %182 : vector<1x96xf32> to vector<16x96xf32>
    %184 = arith.addf %180, %183 : vector<16x96xf32>
    %185 = vector.extract_strided_slice %184 {offsets = [0, 0], sizes = [16, 32], strides = [1, 1]} : vector<16x96xf32> to vector<16x32xf32>
    %cst_75 = arith.constant 0.353553385 : f32
    %186 = vector.broadcast %cst_75 : f32 to vector<16x32xf32>
    %187 = arith.mulf %185, %186 : vector<16x32xf32>
    %188 = vector.extract_strided_slice %184 {offsets = [0, 32], sizes = [16, 32], strides = [1, 1]} : vector<16x96xf32> to vector<16x32xf32>
    %189 = vector.extract_strided_slice %184 {offsets = [0, 64], sizes = [16, 32], strides = [1, 1]} : vector<16x96xf32> to vector<16x32xf32>
    %190 = vector.extract_strided_slice %187 {offsets = [0, 0], sizes = [16, 8], strides = [1, 1]} : vector<16x32xf32> to vector<16x8xf32>
    %191 = vector.shape_cast %190 : vector<16x8xf32> to vector<2x1x8x8xf32>
    %192 = vector.extract_strided_slice %187 {offsets = [0, 8], sizes = [16, 8], strides = [1, 1]} : vector<16x32xf32> to vector<16x8xf32>
    %193 = vector.shape_cast %192 : vector<16x8xf32> to vector<2x1x8x8xf32>
    %194 = vector.extract_strided_slice %187 {offsets = [0, 16], sizes = [16, 8], strides = [1, 1]} : vector<16x32xf32> to vector<16x8xf32>
    %195 = vector.shape_cast %194 : vector<16x8xf32> to vector<2x1x8x8xf32>
    %196 = vector.extract_strided_slice %187 {offsets = [0, 24], sizes = [16, 8], strides = [1, 1]} : vector<16x32xf32> to vector<16x8xf32>
    %197 = vector.shape_cast %196 : vector<16x8xf32> to vector<2x1x8x8xf32>
    %198 = tpu.concatenate %191, %193, %195, %197 in 1 : vector<2x1x8x8xf32>, vector<2x1x8x8xf32>, vector<2x1x8x8xf32>, vector<2x1x8x8xf32> -> vector<2x4x8x8xf32>
    %199 = vector.shape_cast %198 : vector<2x4x8x8xf32> to vector<8x8x8xf32>
    %200 = vector.extract_strided_slice %188 {offsets = [0, 0], sizes = [16, 8], strides = [1, 1]} : vector<16x32xf32> to vector<16x8xf32>
    %201 = vector.shape_cast %200 : vector<16x8xf32> to vector<2x1x8x8xf32>
    %202 = vector.extract_strided_slice %188 {offsets = [0, 8], sizes = [16, 8], strides = [1, 1]} : vector<16x32xf32> to vector<16x8xf32>
    %203 = vector.shape_cast %202 : vector<16x8xf32> to vector<2x1x8x8xf32>
    %204 = vector.extract_strided_slice %188 {offsets = [0, 16], sizes = [16, 8], strides = [1, 1]} : vector<16x32xf32> to vector<16x8xf32>
    %205 = vector.shape_cast %204 : vector<16x8xf32> to vector<2x1x8x8xf32>
    %206 = vector.extract_strided_slice %188 {offsets = [0, 24], sizes = [16, 8], strides = [1, 1]} : vector<16x32xf32> to vector<16x8xf32>
    %207 = vector.shape_cast %206 : vector<16x8xf32> to vector<2x1x8x8xf32>
    %208 = tpu.concatenate %201, %203, %205, %207 in 1 : vector<2x1x8x8xf32>, vector<2x1x8x8xf32>, vector<2x1x8x8xf32>, vector<2x1x8x8xf32> -> vector<2x4x8x8xf32>
    %209 = vector.shape_cast %208 : vector<2x4x8x8xf32> to vector<8x8x8xf32>
    %210 = vector.extract_strided_slice %189 {offsets = [0, 0], sizes = [16, 8], strides = [1, 1]} : vector<16x32xf32> to vector<16x8xf32>
    %211 = vector.shape_cast %210 : vector<16x8xf32> to vector<2x1x8x8xf32>
    %212 = vector.extract_strided_slice %189 {offsets = [0, 8], sizes = [16, 8], strides = [1, 1]} : vector<16x32xf32> to vector<16x8xf32>
    %213 = vector.shape_cast %212 : vector<16x8xf32> to vector<2x1x8x8xf32>
    %214 = vector.extract_strided_slice %189 {offsets = [0, 16], sizes = [16, 8], strides = [1, 1]} : vector<16x32xf32> to vector<16x8xf32>
    %215 = vector.shape_cast %214 : vector<16x8xf32> to vector<2x1x8x8xf32>
    %216 = vector.extract_strided_slice %189 {offsets = [0, 24], sizes = [16, 8], strides = [1, 1]} : vector<16x32xf32> to vector<16x8xf32>
    %217 = vector.shape_cast %216 : vector<16x8xf32> to vector<2x1x8x8xf32>
    %218 = tpu.concatenate %211, %213, %215, %217 in 1 : vector<2x1x8x8xf32>, vector<2x1x8x8xf32>, vector<2x1x8x8xf32>, vector<2x1x8x8xf32> -> vector<2x4x8x8xf32>
    %219 = vector.shape_cast %218 : vector<2x4x8x8xf32> to vector<8x8x8xf32>
    "tpu.trace_start"() <{level = 10 : i32, message = "gqd,gkd->gqk"}> : () -> ()
    %cst_76 = arith.constant dense<0.000000e+00> : vector<8x8x8xf32>
    %220 = tpu.matmul %199, %209, %cst_76 {dimension_numbers = #tpu.dot_dimension_numbers<[2], [2], [1], [1], [0, 0, 0, 1, 1, 1], [0], [0]>} : vector<8x8x8xf32>, vector<8x8x8xf32>, vector<8x8x8xf32> -> vector<8x8x8xf32>
    "tpu.trace_stop"() : () -> ()
    %cst_77 = arith.constant dense<0xFF800000> : vector<8x8xf32>
    %221 = vector.multi_reduction <maximumf>, %220, %cst_77 [2] : vector<8x8x8xf32> to vector<8x8xf32>
    %222 = vector.shape_cast %221 : vector<8x8xf32> to vector<8x8x1xf32>
    %223 = vector.broadcast %222 : vector<8x8x1xf32> to vector<8x8x8xf32>
    %224 = arith.subf %220, %223 : vector<8x8x8xf32>
    %225 = math.exp %224 : vector<8x8x8xf32>
    %cst_78 = arith.constant dense<0.000000e+00> : vector<8x8xf32>
    %226 = vector.multi_reduction <add>, %225, %cst_78 [2] : vector<8x8x8xf32> to vector<8x8xf32>
    %227 = vector.shape_cast %226 : vector<8x8xf32> to vector<8x8x1xf32>
    %228 = tpu.reciprocal %227 {approx = true} : vector<8x8x1xf32> -> vector<8x8x1xf32>
    %229 = vector.broadcast %228 : vector<8x8x1xf32> to vector<8x8x8xf32>
    %230 = arith.mulf %225, %229 : vector<8x8x8xf32>
    "tpu.trace_start"() <{level = 10 : i32, message = "gqk,gkd->gqd"}> : () -> ()
    %cst_79 = arith.constant dense<0.000000e+00> : vector<8x8x8xf32>
    %231 = tpu.matmul %230, %219, %cst_79 {dimension_numbers = #tpu.dot_dimension_numbers<[2], [1], [1], [2], [0, 0, 0, 1, 1, 2], [0], [0]>} : vector<8x8x8xf32>, vector<8x8x8xf32>, vector<8x8x8xf32> -> vector<8x8x8xf32>
    "tpu.trace_stop"() : () -> ()
    %232 = vector.shape_cast %231 : vector<8x8x8xf32> to vector<2x4x8x8xf32>
    %233 = vector.extract_strided_slice %232 {offsets = [0, 0, 0, 0], sizes = [2, 1, 8, 8], strides = [1, 1, 1, 1]} : vector<2x4x8x8xf32> to vector<2x1x8x8xf32>
    %234 = vector.shape_cast %233 : vector<2x1x8x8xf32> to vector<2x8x8xf32>
    %235 = vector.shape_cast %234 : vector<2x8x8xf32> to vector<16x8xf32>
    %236 = vector.extract_strided_slice %232 {offsets = [0, 1, 0, 0], sizes = [2, 1, 8, 8], strides = [1, 1, 1, 1]} : vector<2x4x8x8xf32> to vector<2x1x8x8xf32>
    %237 = vector.shape_cast %236 : vector<2x1x8x8xf32> to vector<2x8x8xf32>
    %238 = vector.shape_cast %237 : vector<2x8x8xf32> to vector<16x8xf32>
    %239 = vector.extract_strided_slice %232 {offsets = [0, 2, 0, 0], sizes = [2, 1, 8, 8], strides = [1, 1, 1, 1]} : vector<2x4x8x8xf32> to vector<2x1x8x8xf32>
    %240 = vector.shape_cast %239 : vector<2x1x8x8xf32> to vector<2x8x8xf32>
    %241 = vector.shape_cast %240 : vector<2x8x8xf32> to vector<16x8xf32>
    %242 = vector.extract_strided_slice %232 {offsets = [0, 3, 0, 0], sizes = [2, 1, 8, 8], strides = [1, 1, 1, 1]} : vector<2x4x8x8xf32> to vector<2x1x8x8xf32>
    %243 = vector.shape_cast %242 : vector<2x1x8x8xf32> to vector<2x8x8xf32>
    %244 = vector.shape_cast %243 : vector<2x8x8xf32> to vector<16x8xf32>
    %245 = tpu.concatenate %235, %238, %241, %244 in 1 : vector<16x8xf32>, vector<16x8xf32>, vector<16x8xf32>, vector<16x8xf32> -> vector<16x32xf32>
    %c1_80 = arith.constant 1 : index
    %c0_81 = arith.constant 0 : index
    %c0_82 = arith.constant 0 : index
    %246 = vector.load %arg5[%c1_80, %c0_81, %c0_82] : memref<2x32x32xf32, #tpu.memory_space<vmem>>, vector<1x32x32xf32>
    %247 = vector.shape_cast %246 : vector<1x32x32xf32> to vector<32x32xf32>
    %cst_83 = arith.constant dense<0.000000e+00> : vector<16x32xf32>
    %248 = tpu.matmul %245, %247, %cst_83 {dimension_numbers = #tpu.dot_dimension_numbers<[1], [0], [0], [1], [0, 0, 1, 1], [], []>} : vector<16x32xf32>, vector<32x32xf32>, vector<16x32xf32> -> vector<16x32xf32>
    %c1_84 = arith.constant 1 : index
    %c0_85 = arith.constant 0 : index
    %c0_86 = arith.constant 0 : index
    %249 = vector.load %arg6[%c1_84, %c0_85, %c0_86] : memref<2x1x32xf32, #tpu.memory_space<vmem>>, vector<1x1x32xf32>
    %250 = vector.shape_cast %249 : vector<1x1x32xf32> to vector<1x32xf32>
    %251 = vector.broadcast %250 : vector<1x32xf32> to vector<16x32xf32>
    %252 = arith.addf %248, %251 : vector<16x32xf32>
    %253 = arith.addf %151, %252 : vector<16x32xf32>
    %c1_87 = arith.constant 1 : index
    %c0_88 = arith.constant 0 : index
    %c0_89 = arith.constant 0 : index
    %254 = vector.load %arg7[%c1_87, %c0_88, %c0_89] : memref<2x1x32xf32, #tpu.memory_space<vmem>>, vector<1x1x32xf32>
    %255 = vector.shape_cast %254 : vector<1x1x32xf32> to vector<1x32xf32>
    %c1_90 = arith.constant 1 : index
    %c0_91 = arith.constant 0 : index
    %c0_92 = arith.constant 0 : index
    %256 = vector.load %arg8[%c1_90, %c0_91, %c0_92] : memref<2x1x32xf32, #tpu.memory_space<vmem>>, vector<1x1x32xf32>
    %257 = vector.shape_cast %256 : vector<1x1x32xf32> to vector<1x32xf32>
    %cst_93 = arith.constant dense<0.000000e+00> : vector<16xf32>
    %258 = vector.multi_reduction <add>, %253, %cst_93 [1] : vector<16x32xf32> to vector<16xf32>
    %259 = vector.shape_cast %258 : vector<16xf32> to vector<16x1xf32>
    %cst_94 = arith.constant 3.200000e+01 : f32
    %260 = vector.broadcast %cst_94 : f32 to vector<16x1xf32>
    %261 = arith.divf %259, %260 : vector<16x1xf32>
    %262 = vector.broadcast %261 : vector<16x1xf32> to vector<16x32xf32>
    %263 = arith.subf %253, %262 : vector<16x32xf32>
    %264 = arith.mulf %263, %263 : vector<16x32xf32>
    %cst_95 = arith.constant dense<0.000000e+00> : vector<16xf32>
    %265 = vector.multi_reduction <add>, %264, %cst_95 [1] : vector<16x32xf32> to vector<16xf32>
    %266 = vector.shape_cast %265 : vector<16xf32> to vector<16x1xf32>
    %cst_96 = arith.constant 3.200000e+01 : f32
    %267 = vector.broadcast %cst_96 : f32 to vector<16x1xf32>
    %268 = arith.divf %266, %267 : vector<16x1xf32>
    %269 = vector.broadcast %261 : vector<16x1xf32> to vector<16x32xf32>
    %270 = arith.subf %253, %269 : vector<16x32xf32>
    %cst_97 = arith.constant 9.99999974E-6 : f32
    %271 = vector.broadcast %cst_97 : f32 to vector<16x1xf32>
    %272 = arith.addf %268, %271 : vector<16x1xf32>
    %273 = math.rsqrt %272 : vector<16x1xf32>
    %274 = vector.broadcast %273 : vector<16x1xf32> to vector<16x32xf32>
    %275 = arith.mulf %270, %274 : vector<16x32xf32>
    %276 = vector.broadcast %255 : vector<1x32xf32> to vector<16x32xf32>
    %277 = arith.mulf %275, %276 : vector<16x32xf32>
    %278 = vector.broadcast %257 : vector<1x32xf32> to vector<16x32xf32>
    %279 = arith.addf %277, %278 : vector<16x32xf32>
    %c1_98 = arith.constant 1 : index
    %c0_99 = arith.constant 0 : index
    %c0_100 = arith.constant 0 : index
    %280 = vector.load %arg9[%c1_98, %c0_99, %c0_100] : memref<2x32x128xf32, #tpu.memory_space<vmem>>, vector<1x32x128xf32>
    %281 = vector.shape_cast %280 : vector<1x32x128xf32> to vector<32x128xf32>
    %cst_101 = arith.constant dense<0.000000e+00> : vector<16x128xf32>
    %282 = tpu.matmul %279, %281, %cst_101 {dimension_numbers = #tpu.dot_dimension_numbers<[1], [0], [0], [1], [0, 0, 1, 1], [], []>} : vector<16x32xf32>, vector<32x128xf32>, vector<16x128xf32> -> vector<16x128xf32>
    %c1_102 = arith.constant 1 : index
    %c0_103 = arith.constant 0 : index
    %c0_104 = arith.constant 0 : index
    %283 = vector.load %arg10[%c1_102, %c0_103, %c0_104] : memref<2x1x128xf32, #tpu.memory_space<vmem>>, vector<1x1x128xf32>
    %284 = vector.shape_cast %283 : vector<1x1x128xf32> to vector<1x128xf32>
    %285 = vector.broadcast %284 : vector<1x128xf32> to vector<16x128xf32>
    %286 = arith.addf %282, %285 : vector<16x128xf32>
    %cst_105 = arith.constant 5.000000e-01 : f32
    %287 = vector.broadcast %cst_105 : f32 to vector<16x128xf32>
    %288 = arith.mulf %287, %286 : vector<16x128xf32>
    %cst_106 = arith.constant 0.707106769 : f32
    %289 = vector.broadcast %cst_106 : f32 to vector<16x128xf32>
    %290 = arith.mulf %286, %289 : vector<16x128xf32>
    %291 = math.erf %290 : vector<16x128xf32>
    %cst_107 = arith.constant 1.000000e+00 : f32
    %292 = vector.broadcast %cst_107 : f32 to vector<16x128xf32>
    %293 = arith.addf %292, %291 : vector<16x128xf32>
    %294 = arith.mulf %288, %293 : vector<16x128xf32>
    %c1_108 = arith.constant 1 : index
    %c0_109 = arith.constant 0 : index
    %c0_110 = arith.constant 0 : index
    %295 = vector.load %arg11[%c1_108, %c0_109, %c0_110] : memref<2x128x32xf32, #tpu.memory_space<vmem>>, vector<1x128x32xf32>
    %296 = vector.shape_cast %295 : vector<1x128x32xf32> to vector<128x32xf32>
    %cst_111 = arith.constant dense<0.000000e+00> : vector<16x32xf32>
    %297 = tpu.matmul %294, %296, %cst_111 {dimension_numbers = #tpu.dot_dimension_numbers<[1], [0], [0], [1], [0, 0, 1, 1], [], []>} : vector<16x128xf32>, vector<128x32xf32>, vector<16x32xf32> -> vector<16x32xf32>
    %c1_112 = arith.constant 1 : index
    %c0_113 = arith.constant 0 : index
    %c0_114 = arith.constant 0 : index
    %298 = vector.load %arg12[%c1_112, %c0_113, %c0_114] : memref<2x1x32xf32, #tpu.memory_space<vmem>>, vector<1x1x32xf32>
    %299 = vector.shape_cast %298 : vector<1x1x32xf32> to vector<1x32xf32>
    %300 = vector.broadcast %299 : vector<1x32xf32> to vector<16x32xf32>
    %301 = arith.addf %297, %300 : vector<16x32xf32>
    %302 = arith.addf %253, %301 : vector<16x32xf32>
    %c0_115 = arith.constant 0 : index
    %c0_116 = arith.constant 0 : index
    %303 = vector.load %arg13[%c0_115, %c0_116] : memref<16x32xf32, #tpu.memory_space<vmem>>, vector<16x32xf32>
    tpu.vector_store %arg13[%c0_115, %c0_116], %302 {strides = array<i32>} : memref<16x32xf32, #tpu.memory_space<vmem>>, vector<16x32xf32>,
    return
  }
}

</mosaic_0001>

<llo_original>
// kernel: tpu_custom_call.1
$region0: #{tpu_custom_call.1}
  #allocation0 [shape = 'u32[]', space=smem, size = 0x4, offset = 0x4, fixed_abs, tag = 'smem constant byte address 0x4 - core index']
  #allocation1 [shape = 'u32[144,128]{1,0:T(1,128)}', space=vmem, size = 0x12000, scoped, tag = 'internal scratch']
  %s0 = inlined_call_operand.vmem [shape: f32[16,32], index: 0, kind: input, shape index: {}]
  %s1 = inlined_call_operand.vmem [shape: f32[2,1,32], index: 1, kind: input, shape index: {}]
  %s2 = inlined_call_operand.vmem [shape: f32[2,1,32], index: 2, kind: input, shape index: {}]
  %s3 = inlined_call_operand.vmem [shape: f32[2,32,96], index: 3, kind: input, shape index: {}]
  %s4 = inlined_call_operand.vmem [shape: f32[2,1,96], index: 4, kind: input, shape index: {}]
  %s5 = inlined_call_operand.vmem [shape: f32[2,32,32], index: 5, kind: input, shape index: {}]
  %s6 = inlined_call_operand.vmem [shape: f32[2,1,32], index: 6, kind: input, shape index: {}]
  %s7 = inlined_call_operand.vmem [shape: f32[2,1,32], index: 7, kind: input, shape index: {}]
  %s8 = inlined_call_operand.vmem [shape: f32[2,1,32], index: 8, kind: input, shape index: {}]
  %s9 = inlined_call_operand.vmem [shape: f32[2,32,128], index: 9, kind: input, shape index: {}]
  %s10 = inlined_call_operand.vmem [shape: f32[2,1,128], index: 10, kind: input, shape index: {}]
  %s11 = inlined_call_operand.vmem [shape: f32[2,128,32], index: 11, kind: input, shape index: {}]
  %s12 = inlined_call_operand.vmem [shape: f32[2,1,32], index: 12, kind: input, shape index: {}]
  %s13 = inlined_call_operand.hbm [shape: f32[16,32], index: 13, kind: output, shape index: {}]
  %s14 = sld [smem:[#allocation0]]
  $region62: #{tpu_custom_call.1} parent=0
    _
  %s16 = ssub.s32 1, %s14
  %s17 = scalar_select 0, %s16, %s14
  $region1: #{tpu_custom_call.1} parent=0
    #allocation2 [shape = 'u8[8192]{0}', space=vmem, size = 0x2000, scoped, tag = 'output window, operand 0, single buffered']
    #allocation3 [shape = 's32[1]{0}', space=sflag, size = 0x4, scoped, tag = 'scoped memory for tpu_custom_call.1']
    %18 = vsyncpa [#allocation3], 0
    // Predicated region
    $region2: #{tpu_custom_call.1} parent=1 // pred_check
      _
    $region3: #{tpu_custom_call.1} parent=1 // pred_check_branch
      %20 = sbr.rel (0) target = $region5
    $region4: #{tpu_custom_call.1} parent=1 // pred_region
      _
    $region5: #{tpu_custom_call.1} parent=1 // pred_fallthru
      _
    // Predicated region
    $region6: #{tpu_custom_call.1} parent=1 // pred_check
      _
    $region7: #{tpu_custom_call.1} parent=1 // pred_check_branch
      %22 = sbr.rel (0) target = $region9
    $region8: #{tpu_custom_call.1} parent=1 // pred_region
      _
    $region9: #{tpu_custom_call.1} parent=1 // pred_fallthru
      _
    // Predicated region
    $region10: #{tpu_custom_call.1} parent=1 // pred_check
      _
    $region11: #{tpu_custom_call.1} parent=1 // pred_check_branch
      %24 = sbr.rel (0) target = $region13
    $region12: #{tpu_custom_call.1} parent=1 // pred_region
      _
    $region13: #{tpu_custom_call.1} parent=1 // pred_fallthru
      _
    // Predicated region
    $region14: #{tpu_custom_call.1} parent=1 // pred_check
      _
    $region15: #{tpu_custom_call.1} parent=1 // pred_check_branch
      %26 = sbr.rel (0) target = $region17
    $region16: #{tpu_custom_call.1} parent=1 // pred_region
      _
    $region17: #{tpu_custom_call.1} parent=1 // pred_fallthru
      _
    // Predicated region
    $region18: #{tpu_custom_call.1} parent=1 // pred_check
      _
    $region19: #{tpu_custom_call.1} parent=1 // pred_check_branch
      %28 = sbr.rel (0) target = $region21
    $region20: #{tpu_custom_call.1} parent=1 // pred_region
      _
    $region21: #{tpu_custom_call.1} parent=1 // pred_fallthru
      _
    // Predicated region
    $region22: #{tpu_custom_call.1} parent=1 // pred_check
      _
    $region23: #{tpu_custom_call.1} parent=1 // pred_check_branch
      %30 = sbr.rel (0) target = $region25
    $region24: #{tpu_custom_call.1} parent=1 // pred_region
      _
    $region25: #{tpu_custom_call.1} parent=1 // pred_fallthru
      _
    // Predicated region
    $region26: #{tpu_custom_call.1} parent=1 // pred_check
      _
    $region27: #{tpu_custom_call.1} parent=1 // pred_check_branch
      %32 = sbr.rel (0) target = $region29
    $region28: #{tpu_custom_call.1} parent=1 // pred_region
      _
    $region29: #{tpu_custom_call.1} parent=1 // pred_fallthru
      _
    // Predicated region
    $region30: #{tpu_custom_call.1} parent=1 // pred_check
      _
    $region31: #{tpu_custom_call.1} parent=1 // pred_check_branch
      %34 = sbr.rel (0) target = $region33
    $region32: #{tpu_custom_call.1} parent=1 // pred_region
      _
    $region33: #{tpu_custom_call.1} parent=1 // pred_fallthru
      _
    // Predicated region
    $region34: #{tpu_custom_call.1} parent=1 // pred_check
      _
    $region35: #{tpu_custom_call.1} parent=1 // pred_check_branch
      %36 = sbr.rel (0) target = $region37
    $region36: #{tpu_custom_call.1} parent=1 // pred_region
      _
    $region37: #{tpu_custom_call.1} parent=1 // pred_fallthru
      _
    // Predicated region
    $region38: #{tpu_custom_call.1} parent=1 // pred_check
      _
    $region39: #{tpu_custom_call.1} parent=1 // pred_check_branch
      %38 = sbr.rel (0) target = $region41
    $region40: #{tpu_custom_call.1} parent=1 // pred_region
      _
    $region41: #{tpu_custom_call.1} parent=1 // pred_fallthru
      _
    // Predicated region
    $region42: #{tpu_custom_call.1} parent=1 // pred_check
      _
    $region43: #{tpu_custom_call.1} parent=1 // pred_check_branch
      %40 = sbr.rel (0) target = $region45
    $region44: #{tpu_custom_call.1} parent=1 // pred_region
      _
    $region45: #{tpu_custom_call.1} parent=1 // pred_fallthru
      _
    // Predicated region
    $region46: #{tpu_custom_call.1} parent=1 // pred_check
      _
    $region47: #{tpu_custom_call.1} parent=1 // pred_check_branch
      %42 = sbr.rel (0) target = $region49
    $region48: #{tpu_custom_call.1} parent=1 // pred_region
      _
    $region49: #{tpu_custom_call.1} parent=1 // pred_fallthru
      _
    // Predicated region
    $region50: #{tpu_custom_call.1} parent=1 // pred_check
      _
    $region51: #{tpu_custom_call.1} parent=1 // pred_check_branch
      %44 = sbr.rel (0) target = $region53
    $region52: #{tpu_custom_call.1} parent=1 // pred_region
      _
    $region53: #{tpu_custom_call.1} parent=1 // pred_fallthru
      _
    %v45 = vld [vmem:[%s0] sm:$0xff]
    %v46 = vld [vmem:[%s0 + $0x8] sm:$0xff]
    %v47 = vld [vmem:[%s1] sm:$0x1]
    %v48 = vld [vmem:[%s2] sm:$0x1]
    %vm49 = vcmask 261120
    %v50 = vsel %vm49, %v45, 0.0
    %51 = vadd.xlane.f32.xlu0 %v50
    %v52 = vpop.xlane.xlu0 %51
    %v53 = vsel %vm49, %v46, 0.0
    %54 = vadd.xlane.f32.xlu0 %v53
    %v55 = vpop.xlane.xlu0 %54
    %v56 = vrcp.pop 32.0
    %v57 = vmul.f32 %v52, %v56
    %v58 = vmul.f32 %v55, %v56
    %v59 = vsub.f32 %v45, %v57
    %v60 = vsub.f32 %v46, %v58
    %v61 = vmul.f32 %v59, %v59
    %v62 = vmul.f32 %v60, %v60
    %v63 = vsel %vm49, %v61, 0.0
    %64 = vadd.xlane.f32.xlu0 %v63
    %v65 = vpop.xlane.xlu0 %64
    %v66 = vsel %vm49, %v62, 0.0
    %67 = vadd.xlane.f32.xlu0 %v66
    %v68 = vpop.xlane.xlu0 %67
    %v69 = vmul.f32 %v65, %v56
    %v70 = vmul.f32 %v68, %v56
    %v71 = vadd.f32 %v69, 1e-05
    %v72 = vadd.f32 %v70, 1e-05
    %v73 = vrsqrt.pop %v71
    %v74 = vrsqrt.pop %v72
    %v75 = vmul.f32 %v59, %v73
    %v76 = vmul.f32 %v60, %v74
    %v78 = vlaneseq
    %v79 = vshrl.u32 %v78, 7
    %v80 = vsub.s32 0, %v79
    %v81 = vrot.slane %v47, %v80
    %v83 = vmul.f32 %v75, %v81
    %v84 = vmul.f32 %v76, %v81
    %v86 = vlaneseq
    %v87 = vshrl.u32 %v86, 7
    %v88 = vsub.s32 0, %v87
    %v89 = vrot.slane %v48, %v88
    %v91 = vadd.f32 %v83, %v89
    %v92 = vadd.f32 %v84, %v89
    %v93 = vld [vmem:[%s3] sm:$0xff]
    %v94 = vld [vmem:[%s3 + $0x8] sm:$0xff]
    %v95 = vld [vmem:[%s3 + $0x10] sm:$0xff]
    %v96 = vld [vmem:[%s3 + $0x18] sm:$0xff]
    %v97 = vld [vmem:[%s4] sm:$0x1]
    %v99 = vlaneseq
    %v100 = vshrl.u32 %v99, 7
    %v101 = vsub.s32 0, %v100
    %v102 = vrot.slane %v97, %v101
    %v105 = vsel %vm49, %v91, 0
    %v108 = vsel %vm49, %v92, 0
    %110 = vmatprep.subr.mxu0 0.0
    %111 = vmatpush1.msra.mxu0 0.0
    %112 = vmatprep.subr.mxu0 0.0
    %113 = vmatpush1.msra.mxu0 0.0
    %114 = vmatprep.subr.mxu0 0.0
    %115 = vmatpush1.msra.mxu0 0.0
    %116 = vmatprep.subr.mxu0 0.0
    %117 = vmatpush1.msra.mxu0 0.0
    %118 = vmatprep.subr.mxu0 0.0
    %119 = vmatpush1.msra.mxu0 0.0
    %120 = vmatprep.subr.mxu0 0.0
    %121 = vmatpush1.msra.mxu0 0.0
    %122 = vmatprep.subr.mxu0 0.0
    %123 = vmatpush1.msra.mxu0 0.0
    %124 = vmatprep.subr.mxu0 0.0
    %125 = vmatpush1.msra.mxu0 0.0
    %126 = vmatprep.subr.mxu0 0.0
    %127 = vmatpush1.msra.mxu0 0.0
    %128 = vmatprep.subr.mxu0 0.0
    %129 = vmatpush1.msra.mxu0 0.0
    %130 = vmatprep.subr.mxu0 0.0
    %131 = vmatpush1.msra.mxu0 0.0
    %132 = vmatprep.subr.mxu0 0.0
    %133 = vmatpush1.msra.mxu0 0.0
    %134 = vmatprep.subr.mxu0 0.0
    %135 = vmatpush1.msra.mxu0 %v96
    %136 = vmatprep.subr.mxu0 0.0
    %137 = vmatpush1.msra.mxu0 %v95
    %138 = vmatprep.subr.mxu0 0.0
    %139 = vmatpush1.msra.mxu0 %v94
    %140 = vmatprep.subr.mxu0 0.0
    %141 = vmatpush1.msra.mxu0 %v93
    %142 = vmatprep.subr.mxu0 0.0
    %143 = vmatpush2.msra.mxu0 0.0
    %144 = vmatprep.subr.mxu0 0.0
    %145 = vmatpush2.msra.mxu0 0.0
    %146 = vmatprep.subr.mxu0 0.0
    %147 = vmatpush2.msra.mxu0 0.0
    %148 = vmatprep.subr.mxu0 0.0
    %149 = vmatpush2.msra.mxu0 0.0
    %150 = vmatprep.subr.mxu0 0.0
    %151 = vmatpush2.msra.mxu0 0.0
    %152 = vmatprep.subr.mxu0 0.0
    %153 = vmatpush2.msra.mxu0 0.0
    %154 = vmatprep.subr.mxu0 0.0
    %155 = vmatpush2.msra.mxu0 0.0
    %156 = vmatprep.subr.mxu0 0.0
    %157 = vmatpush2.msra.mxu0 0.0
    %158 = vmatprep.subr.mxu0 0.0
    %159 = vmatpush2.msra.mxu0 0.0
    %160 = vmatprep.subr.mxu0 0.0
    %161 = vmatpush2.msra.mxu0 0.0
    %162 = vmatprep.subr.mxu0 0.0
    %163 = vmatpush2.msra.mxu0 0.0
    %164 = vmatprep.subr.mxu0 0.0
    %165 = vmatpush2.msra.mxu0 0.0
    %166 = vmatprep.subr.mxu0 0.0
    %167 = vmatpush2.msra.mxu0 0.0
    %168 = vmatprep.subr.mxu0 0.0
    %169 = vmatpush2.msra.mxu0 0.0
    %170 = vmatprep.subr.mxu0 0.0
    %171 = vmatpush2.msra.mxu0 0.0
    %172 = vmatprep.subr.mxu0 0.0
    %173 = vmatpush2.msra.mxu0 0.0
    %174 = vmatprep.mubr.f32.mxu0 0.0
    %175 = vmatmul.mubr.f32.gmra.mxu0 %v105
    %v176 = vpop.f32.mrf.mxu0
    %v177 = vadd.f32 %v102, %v176
    %v178 = vpop.f32.mrf.mxu0
    %179 = vmatprep.mubr.f32.mxu0 0.0
    %180 = vmatmul.mubr.f32.gmra.mxu0 %v108
    %v181 = vpop.f32.mrf.mxu0
    %v182 = vadd.f32 %v102, %v181
    %v183 = vpop.f32.mrf.mxu0
    %184 = vdwg.mxu0
    %v185 = vmul.f32 %v177, 0.35355338
    %v186 = vmul.f32 %v182, 0.35355338
    %189 = vrot.lane.b32.xlu0 %v185, 120
    %v190 = vpop.permute.xlu0 %189
    %191 = vrot.lane.b32.xlu0 %v186, 120
    %v192 = vpop.permute.xlu0 %191
    %193 = vrot.lane.b32.xlu0 %v185, 112
    %v194 = vpop.permute.xlu0 %193
    %195 = vrot.lane.b32.xlu0 %v186, 112
    %v196 = vpop.permute.xlu0 %195
    %197 = vrot.lane.b32.xlu0 %v185, 104
    %v198 = vpop.permute.xlu0 %197
    %199 = vrot.lane.b32.xlu0 %v186, 104
    %v200 = vpop.permute.xlu0 %199
    %203 = vrot.lane.b32.xlu0 %v177, 120
    %v204 = vpop.permute.xlu0 %203
    %205 = vrot.lane.b32.xlu0 %v182, 120
    %v206 = vpop.permute.xlu0 %205
    %207 = vrot.lane.b32.xlu0 %v177, 112
    %v208 = vpop.permute.xlu0 %207
    %209 = vrot.lane.b32.xlu0 %v182, 112
    %v210 = vpop.permute.xlu0 %209
    %211 = vrot.lane.b32.xlu0 %v177, 104
    %v212 = vpop.permute.xlu0 %211
    %213 = vrot.lane.b32.xlu0 %v182, 104
    %v214 = vpop.permute.xlu0 %213
    %215 = vrot.lane.b32.xlu0 %v177, 96
    %v216 = vpop.permute.xlu0 %215
    %vm217 = vcmask 64512
    %v218 = vsel %vm217, %v185, 0
    %v220 = vsel %vm217, %v216, 0
    %222 = vmatprep.subr.mxu0 0.0
    %223 = vmatpush1.xpose.msra.mxu0 0.0
    %224 = vmatprep.subr.mxu0 0.0
    %225 = vmatpush1.xpose.msra.mxu0 0.0
    %226 = vmatprep.subr.mxu0 0.0
    %227 = vmatpush1.xpose.msra.mxu0 0.0
    %228 = vmatprep.subr.mxu0 0.0
    %229 = vmatpush1.xpose.msra.mxu0 0.0
    %230 = vmatprep.subr.mxu0 0.0
    %231 = vmatpush1.xpose.msra.mxu0 0.0
    %232 = vmatprep.subr.mxu0 0.0
    %233 = vmatpush1.xpose.msra.mxu0 0.0
    %234 = vmatprep.subr.mxu0 0.0
    %235 = vmatpush1.xpose.msra.mxu0 0.0
    %236 = vmatprep.subr.mxu0 0.0
    %237 = vmatpush1.xpose.msra.mxu0 0.0
    %238 = vmatprep.subr.mxu0 0.0
    %239 = vmatpush1.xpose.msra.mxu0 0.0
    %240 = vmatprep.subr.mxu0 0.0
    %241 = vmatpush1.xpose.msra.mxu0 0.0
    %242 = vmatprep.subr.mxu0 0.0
    %243 = vmatpush1.xpose.msra.mxu0 0.0
    %244 = vmatprep.subr.mxu0 0.0
    %245 = vmatpush1.xpose.msra.mxu0 0.0
    %246 = vmatprep.subr.mxu0 0.0
    %247 = vmatpush1.xpose.msra.mxu0 0.0
    %248 = vmatprep.subr.mxu0 0.0
    %249 = vmatpush1.xpose.msra.mxu0 0.0
    %250 = vmatprep.subr.mxu0 0.0
    %251 = vmatpush1.xpose.msra.mxu0 0.0
    %252 = vmatprep.subr.mxu0 0.0
    %253 = vmatpush1.xpose.msra.mxu0 %v220
    %254 = vmatprep.subr.mxu0 0.0
    %255 = vmatpush2.xpose.msra.mxu0 0.0
    %256 = vmatprep.subr.mxu0 0.0
    %257 = vmatpush2.xpose.msra.mxu0 0.0
    %258 = vmatprep.subr.mxu0 0.0
    %259 = vmatpush2.xpose.msra.mxu0 0.0
    %260 = vmatprep.subr.mxu0 0.0
    %261 = vmatpush2.xpose.msra.mxu0 0.0
    %262 = vmatprep.subr.mxu0 0.0
    %263 = vmatpush2.xpose.msra.mxu0 0.0
    %264 = vmatprep.subr.mxu0 0.0
    %265 = vmatpush2.xpose.msra.mxu0 0.0
    %266 = vmatprep.subr.mxu0 0.0
    %267 = vmatpush2.xpose.msra.mxu0 0.0
    %268 = vmatprep.subr.mxu0 0.0
    %269 = vmatpush2.xpose.msra.mxu0 0.0
    %270 = vmatprep.subr.mxu0 0.0
    %271 = vmatpush2.xpose.msra.mxu0 0.0
    %272 = vmatprep.subr.mxu0 0.0
    %273 = vmatpush2.xpose.msra.mxu0 0.0
    %274 = vmatprep.subr.mxu0 0.0
    %275 = vmatpush2.xpose.msra.mxu0 0.0
    %276 = vmatprep.subr.mxu0 0.0
    %277 = vmatpush2.xpose.msra.mxu0 0.0
    %278 = vmatprep.subr.mxu0 0.0
    %279 = vmatpush2.xpose.msra.mxu0 0.0
    %280 = vmatprep.subr.mxu0 0.0
    %281 = vmatpush2.xpose.msra.mxu0 0.0
    %282 = vmatprep.subr.mxu0 0.0
    %283 = vmatpush2.xpose.msra.mxu0 0.0
    %284 = vmatprep.subr.mxu0 0.0
    %285 = vmatpush2.xpose.msra.mxu0 0.0
    %286 = vmatprep.mubr.f32.mxu0 0.0
    %287 = vmatmul.mubr.f32.gmra.mxu0 %v218
    %v288 = vpop.f32.mrf.mxu0
    %v289 = vadd.f32 0.0, %v288
    %v290 = vpop.f32.mrf.mxu0
    %291 = vdwg.mxu0
    %292 = vrot.lane.b32.xlu0 %v204, 96
    %v293 = vpop.permute.xlu0 %292
    %v294 = vsel %vm217, %v190, 0
    %v296 = vsel %vm217, %v293, 0
    %298 = vmatprep.subr.mxu0 0.0
    %299 = vmatpush1.xpose.msra.mxu0 0.0
    %300 = vmatprep.subr.mxu0 0.0
    %301 = vmatpush1.xpose.msra.mxu0 0.0
    %302 = vmatprep.subr.mxu0 0.0
    %303 = vmatpush1.xpose.msra.mxu0 0.0
    %304 = vmatprep.subr.mxu0 0.0
    %305 = vmatpush1.xpose.msra.mxu0 0.0
    %306 = vmatprep.subr.mxu0 0.0
    %307 = vmatpush1.xpose.msra.mxu0 0.0
    %308 = vmatprep.subr.mxu0 0.0
    %309 = vmatpush1.xpose.msra.mxu0 0.0
    %310 = vmatprep.subr.mxu0 0.0
    %311 = vmatpush1.xpose.msra.mxu0 0.0
    %312 = vmatprep.subr.mxu0 0.0
    %313 = vmatpush1.xpose.msra.mxu0 0.0
    %314 = vmatprep.subr.mxu0 0.0
    %315 = vmatpush1.xpose.msra.mxu0 0.0
    %316 = vmatprep.subr.mxu0 0.0
    %317 = vmatpush1.xpose.msra.mxu0 0.0
    %318 = vmatprep.subr.mxu0 0.0
    %319 = vmatpush1.xpose.msra.mxu0 0.0
    %320 = vmatprep.subr.mxu0 0.0
    %321 = vmatpush1.xpose.msra.mxu0 0.0
    %322 = vmatprep.subr.mxu0 0.0
    %323 = vmatpush1.xpose.msra.mxu0 0.0
    %324 = vmatprep.subr.mxu0 0.0
    %325 = vmatpush1.xpose.msra.mxu0 0.0
    %326 = vmatprep.subr.mxu0 0.0
    %327 = vmatpush1.xpose.msra.mxu0 0.0
    %328 = vmatprep.subr.mxu0 0.0
    %329 = vmatpush1.xpose.msra.mxu0 %v296
    %330 = vmatprep.subr.mxu0 0.0
    %331 = vmatpush2.xpose.msra.mxu0 0.0
    %332 = vmatprep.subr.mxu0 0.0
    %333 = vmatpush2.xpose.msra.mxu0 0.0
    %334 = vmatprep.subr.mxu0 0.0
    %335 = vmatpush2.xpose.msra.mxu0 0.0
    %336 = vmatprep.subr.mxu0 0.0
    %337 = vmatpush2.xpose.msra.mxu0 0.0
    %338 = vmatprep.subr.mxu0 0.0
    %339 = vmatpush2.xpose.msra.mxu0 0.0
    %340 = vmatprep.subr.mxu0 0.0
    %341 = vmatpush2.xpose.msra.mxu0 0.0
    %342 = vmatprep.subr.mxu0 0.0
    %343 = vmatpush2.xpose.msra.mxu0 0.0
    %344 = vmatprep.subr.mxu0 0.0
    %345 = vmatpush2.xpose.msra.mxu0 0.0
    %346 = vmatprep.subr.mxu0 0.0
    %347 = vmatpush2.xpose.msra.mxu0 0.0
    %348 = vmatprep.subr.mxu0 0.0
    %349 = vmatpush2.xpose.msra.mxu0 0.0
    %350 = vmatprep.subr.mxu0 0.0
    %351 = vmatpush2.xpose.msra.mxu0 0.0
    %352 = vmatprep.subr.mxu0 0.0
    %353 = vmatpush2.xpose.msra.mxu0 0.0
    %354 = vmatprep.subr.mxu0 0.0
    %355 = vmatpush2.xpose.msra.mxu0 0.0
    %356 = vmatprep.subr.mxu0 0.0
    %357 = vmatpush2.xpose.msra.mxu0 0.0
    %358 = vmatprep.subr.mxu0 0.0
    %359 = vmatpush2.xpose.msra.mxu0 0.0
    %360 = vmatprep.subr.mxu0 0.0
    %361 = vmatpush2.xpose.msra.mxu0 0.0
    %362 = vmatprep.mubr.f32.mxu0 0.0
    %363 = vmatmul.mubr.f32.gmra.mxu0 %v294
    %v364 = vpop.f32.mrf.mxu0
    %v365 = vadd.f32 0.0, %v364
    %v366 = vpop.f32.mrf.mxu0
    %367 = vdwg.mxu0
    %368 = vrot.lane.b32.xlu0 %v208, 96
    %v369 = vpop.permute.xlu0 %368
    %v370 = vsel %vm217, %v194, 0
    %v372 = vsel %vm217, %v369, 0
    %374 = vmatprep.subr.mxu0 0.0
    %375 = vmatpush1.xpose.msra.mxu0 0.0
    %376 = vmatprep.subr.mxu0 0.0
    %377 = vmatpush1.xpose.msra.mxu0 0.0
    %378 = vmatprep.subr.mxu0 0.0
    %379 = vmatpush1.xpose.msra.mxu0 0.0
    %380 = vmatprep.subr.mxu0 0.0
    %381 = vmatpush1.xpose.msra.mxu0 0.0
    %382 = vmatprep.subr.mxu0 0.0
    %383 = vmatpush1.xpose.msra.mxu0 0.0
    %384 = vmatprep.subr.mxu0 0.0
    %385 = vmatpush1.xpose.msra.mxu0 0.0
    %386 = vmatprep.subr.mxu0 0.0
    %387 = vmatpush1.xpose.msra.mxu0 0.0
    %388 = vmatprep.subr.mxu0 0.0
    %389 = vmatpush1.xpose.msra.mxu0 0.0
    %390 = vmatprep.subr.mxu0 0.0
    %391 = vmatpush1.xpose.msra.mxu0 0.0
    %392 = vmatprep.subr.mxu0 0.0
    %393 = vmatpush1.xpose.msra.mxu0 0.0
    %394 = vmatprep.subr.mxu0 0.0
    %395 = vmatpush1.xpose.msra.mxu0 0.0
    %396 = vmatprep.subr.mxu0 0.0
    %397 = vmatpush1.xpose.msra.mxu0 0.0
    %398 = vmatprep.subr.mxu0 0.0
    %399 = vmatpush1.xpose.msra.mxu0 0.0
    %400 = vmatprep.subr.mxu0 0.0
    %401 = vmatpush1.xpose.msra.mxu0 0.0
    %402 = vmatprep.subr.mxu0 0.0
    %403 = vmatpush1.xpose.msra.mxu0 0.0
    %404 = vmatprep.subr.mxu0 0.0
    %405 = vmatpush1.xpose.msra.mxu0 %v372
    %406 = vmatprep.subr.mxu0 0.0
    %407 = vmatpush2.xpose.msra.mxu0 0.0
    %408 = vmatprep.subr.mxu0 0.0
    %409 = vmatpush2.xpose.msra.mxu0 0.0
    %410 = vmatprep.subr.mxu0 0.0
    %411 = vmatpush2.xpose.msra.mxu0 0.0
    %412 = vmatprep.subr.mxu0 0.0
    %413 = vmatpush2.xpose.msra.mxu0 0.0
    %414 = vmatprep.subr.mxu0 0.0
    %415 = vmatpush2.xpose.msra.mxu0 0.0
    %416 = vmatprep.subr.mxu0 0.0
    %417 = vmatpush2.xpose.msra.mxu0 0.0
    %418 = vmatprep.subr.mxu0 0.0
    %419 = vmatpush2.xpose.msra.mxu0 0.0
    %420 = vmatprep.subr.mxu0 0.0
    %421 = vmatpush2.xpose.msra.mxu0 0.0
    %422 = vmatprep.subr.mxu0 0.0
    %423 = vmatpush2.xpose.msra.mxu0 0.0
    %424 = vmatprep.subr.mxu0 0.0
    %425 = vmatpush2.xpose.msra.mxu0 0.0
    %426 = vmatprep.subr.mxu0 0.0
    %427 = vmatpush2.xpose.msra.mxu0 0.0
    %428 = vmatprep.subr.mxu0 0.0
    %429 = vmatpush2.xpose.msra.mxu0 0.0
    %430 = vmatprep.subr.mxu0 0.0
    %431 = vmatpush2.xpose.msra.mxu0 0.0
    %432 = vmatprep.subr.mxu0 0.0
    %433 = vmatpush2.xpose.msra.mxu0 0.0
    %434 = vmatprep.subr.mxu0 0.0
    %435 = vmatpush2.xpose.msra.mxu0 0.0
    %436 = vmatprep.subr.mxu0 0.0
    %437 = vmatpush2.xpose.msra.mxu0 0.0
    %438 = vmatprep.mubr.f32.mxu0 0.0
    %439 = vmatmul.mubr.f32.gmra.mxu0 %v370
    %v440 = vpop.f32.mrf.mxu0
    %v441 = vadd.f32 0.0, %v440
    %v442 = vpop.f32.mrf.mxu0
    %443 = vdwg.mxu0
    %444 = vrot.lane.b32.xlu0 %v212, 96
    %v445 = vpop.permute.xlu0 %444
    %v446 = vsel %vm217, %v198, 0
    %v448 = vsel %vm217, %v445, 0
    %450 = vmatprep.subr.mxu0 0.0
    %451 = vmatpush1.xpose.msra.mxu0 0.0
    %452 = vmatprep.subr.mxu0 0.0
    %453 = vmatpush1.xpose.msra.mxu0 0.0
    %454 = vmatprep.subr.mxu0 0.0
    %455 = vmatpush1.xpose.msra.mxu0 0.0
    %456 = vmatprep.subr.mxu0 0.0
    %457 = vmatpush1.xpose.msra.mxu0 0.0
    %458 = vmatprep.subr.mxu0 0.0
    %459 = vmatpush1.xpose.msra.mxu0 0.0
    %460 = vmatprep.subr.mxu0 0.0
    %461 = vmatpush1.xpose.msra.mxu0 0.0
    %462 = vmatprep.subr.mxu0 0.0
    %463 = vmatpush1.xpose.msra.mxu0 0.0
    %464 = vmatprep.subr.mxu0 0.0
    %465 = vmatpush1.xpose.msra.mxu0 0.0
    %466 = vmatprep.subr.mxu0 0.0
    %467 = vmatpush1.xpose.msra.mxu0 0.0
    %468 = vmatprep.subr.mxu0 0.0
    %469 = vmatpush1.xpose.msra.mxu0 0.0
    %470 = vmatprep.subr.mxu0 0.0
    %471 = vmatpush1.xpose.msra.mxu0 0.0
    %472 = vmatprep.subr.mxu0 0.0
    %473 = vmatpush1.xpose.msra.mxu0 0.0
    %474 = vmatprep.subr.mxu0 0.0
    %475 = vmatpush1.xpose.msra.mxu0 0.0
    %476 = vmatprep.subr.mxu0 0.0
    %477 = vmatpush1.xpose.msra.mxu0 0.0
    %478 = vmatprep.subr.mxu0 0.0
    %479 = vmatpush1.xpose.msra.mxu0 0.0
    %480 = vmatprep.subr.mxu0 0.0
    %481 = vmatpush1.xpose.msra.mxu0 %v448
    %482 = vmatprep.subr.mxu0 0.0
    %483 = vmatpush2.xpose.msra.mxu0 0.0
    %484 = vmatprep.subr.mxu0 0.0
    %485 = vmatpush2.xpose.msra.mxu0 0.0
    %486 = vmatprep.subr.mxu0 0.0
    %487 = vmatpush2.xpose.msra.mxu0 0.0
    %488 = vmatprep.subr.mxu0 0.0
    %489 = vmatpush2.xpose.msra.mxu0 0.0
    %490 = vmatprep.subr.mxu0 0.0
    %491 = vmatpush2.xpose.msra.mxu0 0.0
    %492 = vmatprep.subr.mxu0 0.0
    %493 = vmatpush2.xpose.msra.mxu0 0.0
    %494 = vmatprep.subr.mxu0 0.0
    %495 = vmatpush2.xpose.msra.mxu0 0.0
    %496 = vmatprep.subr.mxu0 0.0
    %497 = vmatpush2.xpose.msra.mxu0 0.0
    %498 = vmatprep.subr.mxu0 0.0
    %499 = vmatpush2.xpose.msra.mxu0 0.0
    %500 = vmatprep.subr.mxu0 0.0
    %501 = vmatpush2.xpose.msra.mxu0 0.0
    %502 = vmatprep.subr.mxu0 0.0
    %503 = vmatpush2.xpose.msra.mxu0 0.0
    %504 = vmatprep.subr.mxu0 0.0
    %505 = vmatpush2.xpose.msra.mxu0 0.0
    %506 = vmatprep.subr.mxu0 0.0
    %507 = vmatpush2.xpose.msra.mxu0 0.0
    %508 = vmatprep.subr.mxu0 0.0
    %509 = vmatpush2.xpose.msra.mxu0 0.0
    %510 = vmatprep.subr.mxu0 0.0
    %511 = vmatpush2.xpose.msra.mxu0 0.0
    %512 = vmatprep.subr.mxu0 0.0
    %513 = vmatpush2.xpose.msra.mxu0 0.0
    %514 = vmatprep.mubr.f32.mxu0 0.0
    %515 = vmatmul.mubr.f32.gmra.mxu0 %v446
    %v516 = vpop.f32.mrf.mxu0
    %v517 = vadd.f32 0.0, %v516
    %v518 = vpop.f32.mrf.mxu0
    %519 = vdwg.mxu0
    %520 = vrot.lane.b32.xlu0 %v182, 96
    %v521 = vpop.permute.xlu0 %520
    %v522 = vsel %vm217, %v186, 0
    %v524 = vsel %vm217, %v521, 0
    %526 = vmatprep.subr.mxu0 0.0
    %527 = vmatpush1.xpose.msra.mxu0 0.0
    %528 = vmatprep.subr.mxu0 0.0
    %529 = vmatpush1.xpose.msra.mxu0 0.0
    %530 = vmatprep.subr.mxu0 0.0
    %531 = vmatpush1.xpose.msra.mxu0 0.0
    %532 = vmatprep.subr.mxu0 0.0
    %533 = vmatpush1.xpose.msra.mxu0 0.0
    %534 = vmatprep.subr.mxu0 0.0
    %535 = vmatpush1.xpose.msra.mxu0 0.0
    %536 = vmatprep.subr.mxu0 0.0
    %537 = vmatpush1.xpose.msra.mxu0 0.0
    %538 = vmatprep.subr.mxu0 0.0
    %539 = vmatpush1.xpose.msra.mxu0 0.0
    %540 = vmatprep.subr.mxu0 0.0
    %541 = vmatpush1.xpose.msra.mxu0 0.0
    %542 = vmatprep.subr.mxu0 0.0
    %543 = vmatpush1.xpose.msra.mxu0 0.0
    %544 = vmatprep.subr.mxu0 0.0
    %545 = vmatpush1.xpose.msra.mxu0 0.0
    %546 = vmatprep.subr.mxu0 0.0
    %547 = vmatpush1.xpose.msra.mxu0 0.0
    %548 = vmatprep.subr.mxu0 0.0
    %549 = vmatpush1.xpose.msra.mxu0 0.0
    %550 = vmatprep.subr.mxu0 0.0
    %551 = vmatpush1.xpose.msra.mxu0 0.0
    %552 = vmatprep.subr.mxu0 0.0
    %553 = vmatpush1.xpose.msra.mxu0 0.0
    %554 = vmatprep.subr.mxu0 0.0
    %555 = vmatpush1.xpose.msra.mxu0 0.0
    %556 = vmatprep.subr.mxu0 0.0
    %557 = vmatpush1.xpose.msra.mxu0 %v524
    %558 = vmatprep.subr.mxu0 0.0
    %559 = vmatpush2.xpose.msra.mxu0 0.0
    %560 = vmatprep.subr.mxu0 0.0
    %561 = vmatpush2.xpose.msra.mxu0 0.0
    %562 = vmatprep.subr.mxu0 0.0
    %563 = vmatpush2.xpose.msra.mxu0 0.0
    %564 = vmatprep.subr.mxu0 0.0
    %565 = vmatpush2.xpose.msra.mxu0 0.0
    %566 = vmatprep.subr.mxu0 0.0
    %567 = vmatpush2.xpose.msra.mxu0 0.0
    %568 = vmatprep.subr.mxu0 0.0
    %569 = vmatpush2.xpose.msra.mxu0 0.0
    %570 = vmatprep.subr.mxu0 0.0
    %571 = vmatpush2.xpose.msra.mxu0 0.0
    %572 = vmatprep.subr.mxu0 0.0
    %573 = vmatpush2.xpose.msra.mxu0 0.0
    %574 = vmatprep.subr.mxu0 0.0
    %575 = vmatpush2.xpose.msra.mxu0 0.0
    %576 = vmatprep.subr.mxu0 0.0
    %577 = vmatpush2.xpose.msra.mxu0 0.0
    %578 = vmatprep.subr.mxu0 0.0
    %579 = vmatpush2.xpose.msra.mxu0 0.0
    %580 = vmatprep.subr.mxu0 0.0
    %581 = vmatpush2.xpose.msra.mxu0 0.0
    %582 = vmatprep.subr.mxu0 0.0
    %583 = vmatpush2.xpose.msra.mxu0 0.0
    %584 = vmatprep.subr.mxu0 0.0
    %585 = vmatpush2.xpose.msra.mxu0 0.0
    %586 = vmatprep.subr.mxu0 0.0
    %587 = vmatpush2.xpose.msra.mxu0 0.0
    %588 = vmatprep.subr.mxu0 0.0
    %589 = vmatpush2.xpose.msra.mxu0 0.0
    %590 = vmatprep.mubr.f32.mxu0 0.0
    %591 = vmatmul.mubr.f32.gmra.mxu0 %v522
    %v592 = vpop.f32.mrf.mxu0
    %v593 = vadd.f32 0.0, %v592
    %v594 = vpop.f32.mrf.mxu0
    %595 = vdwg.mxu0
    %596 = vrot.lane.b32.xlu0 %v206, 96
    %v597 = vpop.permute.xlu0 %596
    %v598 = vsel %vm217, %v192, 0
    %v600 = vsel %vm217, %v597, 0
    %602 = vmatprep.subr.mxu0 0.0
    %603 = vmatpush1.xpose.msra.mxu0 0.0
    %604 = vmatprep.subr.mxu0 0.0
    %605 = vmatpush1.xpose.msra.mxu0 0.0
    %606 = vmatprep.subr.mxu0 0.0
    %607 = vmatpush1.xpose.msra.mxu0 0.0
    %608 = vmatprep.subr.mxu0 0.0
    %609 = vmatpush1.xpose.msra.mxu0 0.0
    %610 = vmatprep.subr.mxu0 0.0
    %611 = vmatpush1.xpose.msra.mxu0 0.0
    %612 = vmatprep.subr.mxu0 0.0
    %613 = vmatpush1.xpose.msra.mxu0 0.0
    %614 = vmatprep.subr.mxu0 0.0
    %615 = vmatpush1.xpose.msra.mxu0 0.0
    %616 = vmatprep.subr.mxu0 0.0
    %617 = vmatpush1.xpose.msra.mxu0 0.0
    %618 = vmatprep.subr.mxu0 0.0
    %619 = vmatpush1.xpose.msra.mxu0 0.0
    %620 = vmatprep.subr.mxu0 0.0
    %621 = vmatpush1.xpose.msra.mxu0 0.0
    %622 = vmatprep.subr.mxu0 0.0
    %623 = vmatpush1.xpose.msra.mxu0 0.0
    %624 = vmatprep.subr.mxu0 0.0
    %625 = vmatpush1.xpose.msra.mxu0 0.0
    %626 = vmatprep.subr.mxu0 0.0
    %627 = vmatpush1.xpose.msra.mxu0 0.0
    %628 = vmatprep.subr.mxu0 0.0
    %629 = vmatpush1.xpose.msra.mxu0 0.0
    %630 = vmatprep.subr.mxu0 0.0
    %631 = vmatpush1.xpose.msra.mxu0 0.0
    %632 = vmatprep.subr.mxu0 0.0
    %633 = vmatpush1.xpose.msra.mxu0 %v600
    %634 = vmatprep.subr.mxu0 0.0
    %635 = vmatpush2.xpose.msra.mxu0 0.0
    %636 = vmatprep.subr.mxu0 0.0
    %637 = vmatpush2.xpose.msra.mxu0 0.0
    %638 = vmatprep.subr.mxu0 0.0
    %639 = vmatpush2.xpose.msra.mxu0 0.0
    %640 = vmatprep.subr.mxu0 0.0
    %641 = vmatpush2.xpose.msra.mxu0 0.0
    %642 = vmatprep.subr.mxu0 0.0
    %643 = vmatpush2.xpose.msra.mxu0 0.0
    %644 = vmatprep.subr.mxu0 0.0
    %645 = vmatpush2.xpose.msra.mxu0 0.0
    %646 = vmatprep.subr.mxu0 0.0
    %647 = vmatpush2.xpose.msra.mxu0 0.0
    %648 = vmatprep.subr.mxu0 0.0
    %649 = vmatpush2.xpose.msra.mxu0 0.0
    %650 = vmatprep.subr.mxu0 0.0
    %651 = vmatpush2.xpose.msra.mxu0 0.0
    %652 = vmatprep.subr.mxu0 0.0
    %653 = vmatpush2.xpose.msra.mxu0 0.0
    %654 = vmatprep.subr.mxu0 0.0
    %655 = vmatpush2.xpose.msra.mxu0 0.0
    %656 = vmatprep.subr.mxu0 0.0
    %657 = vmatpush2.xpose.msra.mxu0 0.0
    %658 = vmatprep.subr.mxu0 0.0
    %659 = vmatpush2.xpose.msra.mxu0 0.0
    %660 = vmatprep.subr.mxu0 0.0
    %661 = vmatpush2.xpose.msra.mxu0 0.0
    %662 = vmatprep.subr.mxu0 0.0
    %663 = vmatpush2.xpose.msra.mxu0 0.0
    %664 = vmatprep.subr.mxu0 0.0
    %665 = vmatpush2.xpose.msra.mxu0 0.0
    %666 = vmatprep.mubr.f32.mxu0 0.0
    %667 = vmatmul.mubr.f32.gmra.mxu0 %v598
    %v668 = vpop.f32.mrf.mxu0
    %v669 = vadd.f32 0.0, %v668
    %v670 = vpop.f32.mrf.mxu0
    %671 = vdwg.mxu0
    %672 = vrot.lane.b32.xlu0 %v210, 96
    %v673 = vpop.permute.xlu0 %672
    %v674 = vsel %vm217, %v196, 0
    %v676 = vsel %vm217, %v673, 0
    %678 = vmatprep.subr.mxu0 0.0
    %679 = vmatpush1.xpose.msra.mxu0 0.0
    %680 = vmatprep.subr.mxu0 0.0
    %681 = vmatpush1.xpose.msra.mxu0 0.0
    %682 = vmatprep.subr.mxu0 0.0
    %683 = vmatpush1.xpose.msra.mxu0 0.0
    %684 = vmatprep.subr.mxu0 0.0
    %685 = vmatpush1.xpose.msra.mxu0 0.0
    %686 = vmatprep.subr.mxu0 0.0
    %687 = vmatpush1.xpose.msra.mxu0 0.0
    %688 = vmatprep.subr.mxu0 0.0
    %689 = vmatpush1.xpose.msra.mxu0 0.0
    %690 = vmatprep.subr.mxu0 0.0
    %691 = vmatpush1.xpose.msra.mxu0 0.0
    %692 = vmatprep.subr.mxu0 0.0
    %693 = vmatpush1.xpose.msra.mxu0 0.0
    %694 = vmatprep.subr.mxu0 0.0
    %695 = vmatpush1.xpose.msra.mxu0 0.0
    %696 = vmatprep.subr.mxu0 0.0
    %697 = vmatpush1.xpose.msra.mxu0 0.0
    %698 = vmatprep.subr.mxu0 0.0
    %699 = vmatpush1.xpose.msra.mxu0 0.0
    %700 = vmatprep.subr.mxu0 0.0
    %701 = vmatpush1.xpose.msra.mxu0 0.0
    %702 = vmatprep.subr.mxu0 0.0
    %703 = vmatpush1.xpose.msra.mxu0 0.0
    %704 = vmatprep.subr.mxu0 0.0
    %705 = vmatpush1.xpose.msra.mxu0 0.0
    %706 = vmatprep.subr.mxu0 0.0
    %707 = vmatpush1.xpose.msra.mxu0 0.0
    %708 = vmatprep.subr.mxu0 0.0
    %709 = vmatpush1.xpose.msra.mxu0 %v676
    %710 = vmatprep.subr.mxu0 0.0
    %711 = vmatpush2.xpose.msra.mxu0 0.0
    %712 = vmatprep.subr.mxu0 0.0
    %713 = vmatpush2.xpose.msra.mxu0 0.0
    %714 = vmatprep.subr.mxu0 0.0
    %715 = vmatpush2.xpose.msra.mxu0 0.0
    %716 = vmatprep.subr.mxu0 0.0
    %717 = vmatpush2.xpose.msra.mxu0 0.0
    %718 = vmatprep.subr.mxu0 0.0
    %719 = vmatpush2.xpose.msra.mxu0 0.0
    %720 = vmatprep.subr.mxu0 0.0
    %721 = vmatpush2.xpose.msra.mxu0 0.0
    %722 = vmatprep.subr.mxu0 0.0
    %723 = vmatpush2.xpose.msra.mxu0 0.0
    %724 = vmatprep.subr.mxu0 0.0
    %725 = vmatpush2.xpose.msra.mxu0 0.0
    %726 = vmatprep.subr.mxu0 0.0
    %727 = vmatpush2.xpose.msra.mxu0 0.0
    %728 = vmatprep.subr.mxu0 0.0
    %729 = vmatpush2.xpose.msra.mxu0 0.0
    %730 = vmatprep.subr.mxu0 0.0
    %731 = vmatpush2.xpose.msra.mxu0 0.0
    %732 = vmatprep.subr.mxu0 0.0
    %733 = vmatpush2.xpose.msra.mxu0 0.0
    %734 = vmatprep.subr.mxu0 0.0
    %735 = vmatpush2.xpose.msra.mxu0 0.0
    %736 = vmatprep.subr.mxu0 0.0
    %737 = vmatpush2.xpose.msra.mxu0 0.0
    %738 = vmatprep.subr.mxu0 0.0
    %739 = vmatpush2.xpose.msra.mxu0 0.0
    %740 = vmatprep.subr.mxu0 0.0
    %741 = vmatpush2.xpose.msra.mxu0 0.0
    %742 = vmatprep.mubr.f32.mxu0 0.0
    %743 = vmatmul.mubr.f32.gmra.mxu0 %v674
    %v744 = vpop.f32.mrf.mxu0
    %v745 = vadd.f32 0.0, %v744
    %v746 = vpop.f32.mrf.mxu0
    %747 = vdwg.mxu0
    %748 = vrot.lane.b32.xlu0 %v214, 96
    %v749 = vpop.permute.xlu0 %748
    %v750 = vsel %vm217, %v200, 0
    %v752 = vsel %vm217, %v749, 0
    %754 = vmatprep.subr.mxu0 0.0
    %755 = vmatpush1.xpose.msra.mxu0 0.0
    %756 = vmatprep.subr.mxu0 0.0
    %757 = vmatpush1.xpose.msra.mxu0 0.0
    %758 = vmatprep.subr.mxu0 0.0
    %759 = vmatpush1.xpose.msra.mxu0 0.0
    %760 = vmatprep.subr.mxu0 0.0
    %761 = vmatpush1.xpose.msra.mxu0 0.0
    %762 = vmatprep.subr.mxu0 0.0
    %763 = vmatpush1.xpose.msra.mxu0 0.0
    %764 = vmatprep.subr.mxu0 0.0
    %765 = vmatpush1.xpose.msra.mxu0 0.0
    %766 = vmatprep.subr.mxu0 0.0
    %767 = vmatpush1.xpose.msra.mxu0 0.0
    %768 = vmatprep.subr.mxu0 0.0
    %769 = vmatpush1.xpose.msra.mxu0 0.0
    %770 = vmatprep.subr.mxu0 0.0
    %771 = vmatpush1.xpose.msra.mxu0 0.0
    %772 = vmatprep.subr.mxu0 0.0
    %773 = vmatpush1.xpose.msra.mxu0 0.0
    %774 = vmatprep.subr.mxu0 0.0
    %775 = vmatpush1.xpose.msra.mxu0 0.0
    %776 = vmatprep.subr.mxu0 0.0
    %777 = vmatpush1.xpose.msra.mxu0 0.0
    %778 = vmatprep.subr.mxu0 0.0
    %779 = vmatpush1.xpose.msra.mxu0 0.0
    %780 = vmatprep.subr.mxu0 0.0
    %781 = vmatpush1.xpose.msra.mxu0 0.0
    %782 = vmatprep.subr.mxu0 0.0
    %783 = vmatpush1.xpose.msra.mxu0 0.0
    %784 = vmatprep.subr.mxu0 0.0
    %785 = vmatpush1.xpose.msra.mxu0 %v752
    %786 = vmatprep.subr.mxu0 0.0
    %787 = vmatpush2.xpose.msra.mxu0 0.0
    %788 = vmatprep.subr.mxu0 0.0
    %789 = vmatpush2.xpose.msra.mxu0 0.0
    %790 = vmatprep.subr.mxu0 0.0
    %791 = vmatpush2.xpose.msra.mxu0 0.0
    %792 = vmatprep.subr.mxu0 0.0
    %793 = vmatpush2.xpose.msra.mxu0 0.0
    %794 = vmatprep.subr.mxu0 0.0
    %795 = vmatpush2.xpose.msra.mxu0 0.0
    %796 = vmatprep.subr.mxu0 0.0
    %797 = vmatpush2.xpose.msra.mxu0 0.0
    %798 = vmatprep.subr.mxu0 0.0
    %799 = vmatpush2.xpose.msra.mxu0 0.0
    %800 = vmatprep.subr.mxu0 0.0
    %801 = vmatpush2.xpose.msra.mxu0 0.0
    %802 = vmatprep.subr.mxu0 0.0
    %803 = vmatpush2.xpose.msra.mxu0 0.0
    %804 = vmatprep.subr.mxu0 0.0
    %805 = vmatpush2.xpose.msra.mxu0 0.0
    %806 = vmatprep.subr.mxu0 0.0
    %807 = vmatpush2.xpose.msra.mxu0 0.0
    %808 = vmatprep.subr.mxu0 0.0
    %809 = vmatpush2.xpose.msra.mxu0 0.0
    %810 = vmatprep.subr.mxu0 0.0
    %811 = vmatpush2.xpose.msra.mxu0 0.0
    %812 = vmatprep.subr.mxu0 0.0
    %813 = vmatpush2.xpose.msra.mxu0 0.0
    %814 = vmatprep.subr.mxu0 0.0
    %815 = vmatpush2.xpose.msra.mxu0 0.0
    %816 = vmatprep.subr.mxu0 0.0
    %817 = vmatpush2.xpose.msra.mxu0 0.0
    %818 = vmatprep.mubr.f32.mxu0 0.0
    %819 = vmatmul.mubr.f32.gmra.mxu0 %v750
    %v820 = vpop.f32.mrf.mxu0
    %v821 = vadd.f32 0.0, %v820
    %v822 = vpop.f32.mrf.mxu0
    %823 = vdwg.mxu0
    %v824 = vsel %vm217, %v289, -inf
    %825 = vmax.xlane.f32.xlu0 %v824
    %v826 = vpop.xlane.xlu0 %825
    %v827 = vsel %vm217, %v365, -inf
    %828 = vmax.xlane.f32.xlu0 %v827
    %v829 = vpop.xlane.xlu0 %828
    %v830 = vsel %vm217, %v441, -inf
    %831 = vmax.xlane.f32.xlu0 %v830
    %v832 = vpop.xlane.xlu0 %831
    %v833 = vsel %vm217, %v517, -inf
    %834 = vmax.xlane.f32.xlu0 %v833
    %v835 = vpop.xlane.xlu0 %834
    %v836 = vsel %vm217, %v593, -inf
    %837 = vmax.xlane.f32.xlu0 %v836
    %v838 = vpop.xlane.xlu0 %837
    %v839 = vsel %vm217, %v669, -inf
    %840 = vmax.xlane.f32.xlu0 %v839
    %v841 = vpop.xlane.xlu0 %840
    %v842 = vsel %vm217, %v745, -inf
    %843 = vmax.xlane.f32.xlu0 %v842
    %v844 = vpop.xlane.xlu0 %843
    %v845 = vsel %vm217, %v821, -inf
    %846 = vmax.xlane.f32.xlu0 %v845
    %v847 = vpop.xlane.xlu0 %846
    %v848 = vsub.f32 %v289, %v826
    %v849 = vsub.f32 %v365, %v829
    %v850 = vsub.f32 %v441, %v832
    %v851 = vsub.f32 %v517, %v835
    %v852 = vsub.f32 %v593, %v838
    %v853 = vsub.f32 %v669, %v841
    %v854 = vsub.f32 %v745, %v844
    %v855 = vsub.f32 %v821, %v847
    %v856 = vmul.f32 %v848, 1.442695
    %v857 = vpow.pop %v856
    %v858 = vmul.f32 %v849, 1.442695
    %v859 = vpow.pop %v858
    %v860 = vmul.f32 %v850, 1.442695
    %v861 = vpow.pop %v860
    %v862 = vmul.f32 %v851, 1.442695
    %v863 = vpow.pop %v862
    %v864 = vmul.f32 %v852, 1.442695
    %v865 = vpow.pop %v864
    %v866 = vmul.f32 %v853, 1.442695
    %v867 = vpow.pop %v866
    %v868 = vmul.f32 %v854, 1.442695
    %v869 = vpow.pop %v868
    %v870 = vmul.f32 %v855, 1.442695
    %v871 = vpow.pop %v870
    %v872 = vsel %vm217, %v857, 0.0
    %873 = vadd.xlane.f32.xlu0 %v872
    %v874 = vpop.xlane.xlu0 %873
    %v875 = vsel %vm217, %v859, 0.0
    %876 = vadd.xlane.f32.xlu0 %v875
    %v877 = vpop.xlane.xlu0 %876
    %v878 = vsel %vm217, %v861, 0.0
    %879 = vadd.xlane.f32.xlu0 %v878
    %v880 = vpop.xlane.xlu0 %879
    %v881 = vsel %vm217, %v863, 0.0
    %882 = vadd.xlane.f32.xlu0 %v881
    %v883 = vpop.xlane.xlu0 %882
    %v884 = vsel %vm217, %v865, 0.0
    %885 = vadd.xlane.f32.xlu0 %v884
    %v886 = vpop.xlane.xlu0 %885
    %v887 = vsel %vm217, %v867, 0.0
    %888 = vadd.xlane.f32.xlu0 %v887
    %v889 = vpop.xlane.xlu0 %888
    %v890 = vsel %vm217, %v869, 0.0
    %891 = vadd.xlane.f32.xlu0 %v890
    %v892 = vpop.xlane.xlu0 %891
    %v893 = vsel %vm217, %v871, 0.0
    %894 = vadd.xlane.f32.xlu0 %v893
    %v895 = vpop.xlane.xlu0 %894
    %v896 = vrcp.pop %v874
    %v897 = vrcp.pop %v877
    %v898 = vrcp.pop %v880
    %v899 = vrcp.pop %v883
    %v900 = vrcp.pop %v886
    %v901 = vrcp.pop %v889
    %v902 = vrcp.pop %v892
    %v903 = vrcp.pop %v895
    %v904 = vmul.f32 %v857, %v896
    %v905 = vmul.f32 %v859, %v897
    %v906 = vmul.f32 %v861, %v898
    %v907 = vmul.f32 %v863, %v899
    %v908 = vmul.f32 %v865, %v900
    %v909 = vmul.f32 %v867, %v901
    %v910 = vmul.f32 %v869, %v902
    %v911 = vmul.f32 %v871, %v903
    %912 = vrot.lane.b32.xlu0 %v177, 64
    %v913 = vpop.permute.xlu0 %912
    %v916 = vsel %vm217, %v904, 0
    %918 = vmatprep.subr.mxu0 0.0
    %919 = vmatpush1.msra.mxu0 0.0
    %920 = vmatprep.subr.mxu0 0.0
    %921 = vmatpush1.msra.mxu0 0.0
    %922 = vmatprep.subr.mxu0 0.0
    %923 = vmatpush1.msra.mxu0 0.0
    %924 = vmatprep.subr.mxu0 0.0
    %925 = vmatpush1.msra.mxu0 0.0
    %926 = vmatprep.subr.mxu0 0.0
    %927 = vmatpush1.msra.mxu0 0.0
    %928 = vmatprep.subr.mxu0 0.0
    %929 = vmatpush1.msra.mxu0 0.0
    %930 = vmatprep.subr.mxu0 0.0
    %931 = vmatpush1.msra.mxu0 0.0
    %932 = vmatprep.subr.mxu0 0.0
    %933 = vmatpush1.msra.mxu0 0.0
    %934 = vmatprep.subr.mxu0 0.0
    %935 = vmatpush1.msra.mxu0 0.0
    %936 = vmatprep.subr.mxu0 0.0
    %937 = vmatpush1.msra.mxu0 0.0
    %938 = vmatprep.subr.mxu0 0.0
    %939 = vmatpush1.msra.mxu0 0.0
    %940 = vmatprep.subr.mxu0 0.0
    %941 = vmatpush1.msra.mxu0 0.0
    %942 = vmatprep.subr.mxu0 0.0
    %943 = vmatpush1.msra.mxu0 0.0
    %944 = vmatprep.subr.mxu0 0.0
    %945 = vmatpush1.msra.mxu0 0.0
    %946 = vmatprep.subr.mxu0 0.0
    %947 = vmatpush1.msra.mxu0 0.0
    %948 = vmatprep.subr.mxu0 0.0
    %949 = vmatpush1.msra.mxu0 %v913
    %950 = vmatprep.subr.mxu0 0.0
    %951 = vmatpush2.msra.mxu0 0.0
    %952 = vmatprep.subr.mxu0 0.0
    %953 = vmatpush2.msra.mxu0 0.0
    %954 = vmatprep.subr.mxu0 0.0
    %955 = vmatpush2.msra.mxu0 0.0
    %956 = vmatprep.subr.mxu0 0.0
    %957 = vmatpush2.msra.mxu0 0.0
    %958 = vmatprep.subr.mxu0 0.0
    %959 = vmatpush2.msra.mxu0 0.0
    %960 = vmatprep.subr.mxu0 0.0
    %961 = vmatpush2.msra.mxu0 0.0
    %962 = vmatprep.subr.mxu0 0.0
    %963 = vmatpush2.msra.mxu0 0.0
    %964 = vmatprep.subr.mxu0 0.0
    %965 = vmatpush2.msra.mxu0 0.0
    %966 = vmatprep.subr.mxu0 0.0
    %967 = vmatpush2.msra.mxu0 0.0
    %968 = vmatprep.subr.mxu0 0.0
    %969 = vmatpush2.msra.mxu0 0.0
    %970 = vmatprep.subr.mxu0 0.0
    %971 = vmatpush2.msra.mxu0 0.0
    %972 = vmatprep.subr.mxu0 0.0
    %973 = vmatpush2.msra.mxu0 0.0
    %974 = vmatprep.subr.mxu0 0.0
    %975 = vmatpush2.msra.mxu0 0.0
    %976 = vmatprep.subr.mxu0 0.0
    %977 = vmatpush2.msra.mxu0 0.0
    %978 = vmatprep.subr.mxu0 0.0
    %979 = vmatpush2.msra.mxu0 0.0
    %980 = vmatprep.subr.mxu0 0.0
    %981 = vmatpush2.msra.mxu0 0.0
    %982 = vmatprep.mubr.f32.mxu0 0.0
    %983 = vmatmul.mubr.f32.gmra.mxu0 %v916
    %v984 = vpop.f32.mrf.mxu0
    %v985 = vadd.f32 0.0, %v984
    %v986 = vpop.f32.mrf.mxu0
    %987 = vdwg.mxu0
    %988 = vrot.lane.b32.xlu0 %v204, 64
    %v989 = vpop.permute.xlu0 %988
    %v992 = vsel %vm217, %v905, 0
    %994 = vmatprep.subr.mxu0 0.0
    %995 = vmatpush1.msra.mxu0 0.0
    %996 = vmatprep.subr.mxu0 0.0
    %997 = vmatpush1.msra.mxu0 0.0
    %998 = vmatprep.subr.mxu0 0.0
    %999 = vmatpush1.msra.mxu0 0.0
    %1000 = vmatprep.subr.mxu0 0.0
    %1001 = vmatpush1.msra.mxu0 0.0
    %1002 = vmatprep.subr.mxu0 0.0
    %1003 = vmatpush1.msra.mxu0 0.0
    %1004 = vmatprep.subr.mxu0 0.0
    %1005 = vmatpush1.msra.mxu0 0.0
    %1006 = vmatprep.subr.mxu0 0.0
    %1007 = vmatpush1.msra.mxu0 0.0
    %1008 = vmatprep.subr.mxu0 0.0
    %1009 = vmatpush1.msra.mxu0 0.0
    %1010 = vmatprep.subr.mxu0 0.0
    %1011 = vmatpush1.msra.mxu0 0.0
    %1012 = vmatprep.subr.mxu0 0.0
    %1013 = vmatpush1.msra.mxu0 0.0
    %1014 = vmatprep.subr.mxu0 0.0
    %1015 = vmatpush1.msra.mxu0 0.0
    %1016 = vmatprep.subr.mxu0 0.0
    %1017 = vmatpush1.msra.mxu0 0.0
    %1018 = vmatprep.subr.mxu0 0.0
    %1019 = vmatpush1.msra.mxu0 0.0
    %1020 = vmatprep.subr.mxu0 0.0
    %1021 = vmatpush1.msra.mxu0 0.0
    %1022 = vmatprep.subr.mxu0 0.0
    %1023 = vmatpush1.msra.mxu0 0.0
    %1024 = vmatprep.subr.mxu0 0.0
    %1025 = vmatpush1.msra.mxu0 %v989
    %1026 = vmatprep.subr.mxu0 0.0
    %1027 = vmatpush2.msra.mxu0 0.0
    %1028 = vmatprep.subr.mxu0 0.0
    %1029 = vmatpush2.msra.mxu0 0.0
    %1030 = vmatprep.subr.mxu0 0.0
    %1031 = vmatpush2.msra.mxu0 0.0
    %1032 = vmatprep.subr.mxu0 0.0
    %1033 = vmatpush2.msra.mxu0 0.0
    %1034 = vmatprep.subr.mxu0 0.0
    %1035 = vmatpush2.msra.mxu0 0.0
    %1036 = vmatprep.subr.mxu0 0.0
    %1037 = vmatpush2.msra.mxu0 0.0
    %1038 = vmatprep.subr.mxu0 0.0
    %1039 = vmatpush2.msra.mxu0 0.0
    %1040 = vmatprep.subr.mxu0 0.0
    %1041 = vmatpush2.msra.mxu0 0.0
    %1042 = vmatprep.subr.mxu0 0.0
    %1043 = vmatpush2.msra.mxu0 0.0
    %1044 = vmatprep.subr.mxu0 0.0
    %1045 = vmatpush2.msra.mxu0 0.0
    %1046 = vmatprep.subr.mxu0 0.0
    %1047 = vmatpush2.msra.mxu0 0.0
    %1048 = vmatprep.subr.mxu0 0.0
    %1049 = vmatpush2.msra.mxu0 0.0
    %1050 = vmatprep.subr.mxu0 0.0
    %1051 = vmatpush2.msra.mxu0 0.0
    %1052 = vmatprep.subr.mxu0 0.0
    %1053 = vmatpush2.msra.mxu0 0.0
    %1054 = vmatprep.subr.mxu0 0.0
    %1055 = vmatpush2.msra.mxu0 0.0
    %1056 = vmatprep.subr.mxu0 0.0
    %1057 = vmatpush2.msra.mxu0 0.0
    %1058 = vmatprep.mubr.f32.mxu0 0.0
    %1059 = vmatmul.mubr.f32.gmra.mxu0 %v992
    %v1060 = vpop.f32.mrf.mxu0
    %v1061 = vadd.f32 0.0, %v1060
    %v1062 = vpop.f32.mrf.mxu0
    %1063 = vdwg.mxu0
    %1064 = vrot.lane.b32.xlu0 %v208, 64
    %v1065 = vpop.permute.xlu0 %1064
    %v1068 = vsel %vm217, %v906, 0
    %1070 = vmatprep.subr.mxu0 0.0
    %1071 = vmatpush1.msra.mxu0 0.0
    %1072 = vmatprep.subr.mxu0 0.0
    %1073 = vmatpush1.msra.mxu0 0.0
    %1074 = vmatprep.subr.mxu0 0.0
    %1075 = vmatpush1.msra.mxu0 0.0
    %1076 = vmatprep.subr.mxu0 0.0
    %1077 = vmatpush1.msra.mxu0 0.0
    %1078 = vmatprep.subr.mxu0 0.0
    %1079 = vmatpush1.msra.mxu0 0.0
    %1080 = vmatprep.subr.mxu0 0.0
    %1081 = vmatpush1.msra.mxu0 0.0
    %1082 = vmatprep.subr.mxu0 0.0
    %1083 = vmatpush1.msra.mxu0 0.0
    %1084 = vmatprep.subr.mxu0 0.0
    %1085 = vmatpush1.msra.mxu0 0.0
    %1086 = vmatprep.subr.mxu0 0.0
    %1087 = vmatpush1.msra.mxu0 0.0
    %1088 = vmatprep.subr.mxu0 0.0
    %1089 = vmatpush1.msra.mxu0 0.0
    %1090 = vmatprep.subr.mxu0 0.0
    %1091 = vmatpush1.msra.mxu0 0.0
    %1092 = vmatprep.subr.mxu0 0.0
    %1093 = vmatpush1.msra.mxu0 0.0
    %1094 = vmatprep.subr.mxu0 0.0
    %1095 = vmatpush1.msra.mxu0 0.0
    %1096 = vmatprep.subr.mxu0 0.0
    %1097 = vmatpush1.msra.mxu0 0.0
    %1098 = vmatprep.subr.mxu0 0.0
    %1099 = vmatpush1.msra.mxu0 0.0
    %1100 = vmatprep.subr.mxu0 0.0
    %1101 = vmatpush1.msra.mxu0 %v1065
    %1102 = vmatprep.subr.mxu0 0.0
    %1103 = vmatpush2.msra.mxu0 0.0
    %1104 = vmatprep.subr.mxu0 0.0
    %1105 = vmatpush2.msra.mxu0 0.0
    %1106 = vmatprep.subr.mxu0 0.0
    %1107 = vmatpush2.msra.mxu0 0.0
    %1108 = vmatprep.subr.mxu0 0.0
    %1109 = vmatpush2.msra.mxu0 0.0
    %1110 = vmatprep.subr.mxu0 0.0
    %1111 = vmatpush2.msra.mxu0 0.0
    %1112 = vmatprep.subr.mxu0 0.0
    %1113 = vmatpush2.msra.mxu0 0.0
    %1114 = vmatprep.subr.mxu0 0.0
    %1115 = vmatpush2.msra.mxu0 0.0
    %1116 = vmatprep.subr.mxu0 0.0
    %1117 = vmatpush2.msra.mxu0 0.0
    %1118 = vmatprep.subr.mxu0 0.0
    %1119 = vmatpush2.msra.mxu0 0.0
    %1120 = vmatprep.subr.mxu0 0.0
    %1121 = vmatpush2.msra.mxu0 0.0
    %1122 = vmatprep.subr.mxu0 0.0
    %1123 = vmatpush2.msra.mxu0 0.0
    %1124 = vmatprep.subr.mxu0 0.0
    %1125 = vmatpush2.msra.mxu0 0.0
    %1126 = vmatprep.subr.mxu0 0.0
    %1127 = vmatpush2.msra.mxu0 0.0
    %1128 = vmatprep.subr.mxu0 0.0
    %1129 = vmatpush2.msra.mxu0 0.0
    %1130 = vmatprep.subr.mxu0 0.0
    %1131 = vmatpush2.msra.mxu0 0.0
    %1132 = vmatprep.subr.mxu0 0.0
    %1133 = vmatpush2.msra.mxu0 0.0
    %1134 = vmatprep.mubr.f32.mxu0 0.0
    %1135 = vmatmul.mubr.f32.gmra.mxu0 %v1068
    %v1136 = vpop.f32.mrf.mxu0
    %v1137 = vadd.f32 0.0, %v1136
    %v1138 = vpop.f32.mrf.mxu0
    %1139 = vdwg.mxu0
    %1140 = vrot.lane.b32.xlu0 %v212, 64
    %v1141 = vpop.permute.xlu0 %1140
    %v1144 = vsel %vm217, %v907, 0
    %1146 = vmatprep.subr.mxu0 0.0
    %1147 = vmatpush1.msra.mxu0 0.0
    %1148 = vmatprep.subr.mxu0 0.0
    %1149 = vmatpush1.msra.mxu0 0.0
    %1150 = vmatprep.subr.mxu0 0.0
    %1151 = vmatpush1.msra.mxu0 0.0
    %1152 = vmatprep.subr.mxu0 0.0
    %1153 = vmatpush1.msra.mxu0 0.0
    %1154 = vmatprep.subr.mxu0 0.0
    %1155 = vmatpush1.msra.mxu0 0.0
    %1156 = vmatprep.subr.mxu0 0.0
    %1157 = vmatpush1.msra.mxu0 0.0
    %1158 = vmatprep.subr.mxu0 0.0
    %1159 = vmatpush1.msra.mxu0 0.0
    %1160 = vmatprep.subr.mxu0 0.0
    %1161 = vmatpush1.msra.mxu0 0.0
    %1162 = vmatprep.subr.mxu0 0.0
    %1163 = vmatpush1.msra.mxu0 0.0
    %1164 = vmatprep.subr.mxu0 0.0
    %1165 = vmatpush1.msra.mxu0 0.0
    %1166 = vmatprep.subr.mxu0 0.0
    %1167 = vmatpush1.msra.mxu0 0.0
    %1168 = vmatprep.subr.mxu0 0.0
    %1169 = vmatpush1.msra.mxu0 0.0
    %1170 = vmatprep.subr.mxu0 0.0
    %1171 = vmatpush1.msra.mxu0 0.0
    %1172 = vmatprep.subr.mxu0 0.0
    %1173 = vmatpush1.msra.mxu0 0.0
    %1174 = vmatprep.subr.mxu0 0.0
    %1175 = vmatpush1.msra.mxu0 0.0
    %1176 = vmatprep.subr.mxu0 0.0
    %1177 = vmatpush1.msra.mxu0 %v1141
    %1178 = vmatprep.subr.mxu0 0.0
    %1179 = vmatpush2.msra.mxu0 0.0
    %1180 = vmatprep.subr.mxu0 0.0
    %1181 = vmatpush2.msra.mxu0 0.0
    %1182 = vmatprep.subr.mxu0 0.0
    %1183 = vmatpush2.msra.mxu0 0.0
    %1184 = vmatprep.subr.mxu0 0.0
    %1185 = vmatpush2.msra.mxu0 0.0
    %1186 = vmatprep.subr.mxu0 0.0
    %1187 = vmatpush2.msra.mxu0 0.0
    %1188 = vmatprep.subr.mxu0 0.0
    %1189 = vmatpush2.msra.mxu0 0.0
    %1190 = vmatprep.subr.mxu0 0.0
    %1191 = vmatpush2.msra.mxu0 0.0
    %1192 = vmatprep.subr.mxu0 0.0
    %1193 = vmatpush2.msra.mxu0 0.0
    %1194 = vmatprep.subr.mxu0 0.0
    %1195 = vmatpush2.msra.mxu0 0.0
    %1196 = vmatprep.subr.mxu0 0.0
    %1197 = vmatpush2.msra.mxu0 0.0
    %1198 = vmatprep.subr.mxu0 0.0
    %1199 = vmatpush2.msra.mxu0 0.0
    %1200 = vmatprep.subr.mxu0 0.0
    %1201 = vmatpush2.msra.mxu0 0.0
    %1202 = vmatprep.subr.mxu0 0.0
    %1203 = vmatpush2.msra.mxu0 0.0
    %1204 = vmatprep.subr.mxu0 0.0
    %1205 = vmatpush2.msra.mxu0 0.0
    %1206 = vmatprep.subr.mxu0 0.0
    %1207 = vmatpush2.msra.mxu0 0.0
    %1208 = vmatprep.subr.mxu0 0.0
    %1209 = vmatpush2.msra.mxu0 0.0
    %1210 = vmatprep.mubr.f32.mxu0 0.0
    %1211 = vmatmul.mubr.f32.gmra.mxu0 %v1144
    %v1212 = vpop.f32.mrf.mxu0
    %v1213 = vadd.f32 0.0, %v1212
    %v1214 = vpop.f32.mrf.mxu0
    %1215 = vdwg.mxu0
    %1216 = vrot.lane.b32.xlu0 %v182, 64
    %v1217 = vpop.permute.xlu0 %1216
    %v1220 = vsel %vm217, %v908, 0
    %1222 = vmatprep.subr.mxu0 0.0
    %1223 = vmatpush1.msra.mxu0 0.0
    %1224 = vmatprep.subr.mxu0 0.0
    %1225 = vmatpush1.msra.mxu0 0.0
    %1226 = vmatprep.subr.mxu0 0.0
    %1227 = vmatpush1.msra.mxu0 0.0
    %1228 = vmatprep.subr.mxu0 0.0
    %1229 = vmatpush1.msra.mxu0 0.0
    %1230 = vmatprep.subr.mxu0 0.0
    %1231 = vmatpush1.msra.mxu0 0.0
    %1232 = vmatprep.subr.mxu0 0.0
    %1233 = vmatpush1.msra.mxu0 0.0
    %1234 = vmatprep.subr.mxu0 0.0
    %1235 = vmatpush1.msra.mxu0 0.0
    %1236 = vmatprep.subr.mxu0 0.0
    %1237 = vmatpush1.msra.mxu0 0.0
    %1238 = vmatprep.subr.mxu0 0.0
    %1239 = vmatpush1.msra.mxu0 0.0
    %1240 = vmatprep.subr.mxu0 0.0
    %1241 = vmatpush1.msra.mxu0 0.0
    %1242 = vmatprep.subr.mxu0 0.0
    %1243 = vmatpush1.msra.mxu0 0.0
    %1244 = vmatprep.subr.mxu0 0.0
    %1245 = vmatpush1.msra.mxu0 0.0
    %1246 = vmatprep.subr.mxu0 0.0
    %1247 = vmatpush1.msra.mxu0 0.0
    %1248 = vmatprep.subr.mxu0 0.0
    %1249 = vmatpush1.msra.mxu0 0.0
    %1250 = vmatprep.subr.mxu0 0.0
    %1251 = vmatpush1.msra.mxu0 0.0
    %1252 = vmatprep.subr.mxu0 0.0
    %1253 = vmatpush1.msra.mxu0 %v1217
    %1254 = vmatprep.subr.mxu0 0.0
    %1255 = vmatpush2.msra.mxu0 0.0
    %1256 = vmatprep.subr.mxu0 0.0
    %1257 = vmatpush2.msra.mxu0 0.0
    %1258 = vmatprep.subr.mxu0 0.0
    %1259 = vmatpush2.msra.mxu0 0.0
    %1260 = vmatprep.subr.mxu0 0.0
    %1261 = vmatpush2.msra.mxu0 0.0
    %1262 = vmatprep.subr.mxu0 0.0
    %1263 = vmatpush2.msra.mxu0 0.0
    %1264 = vmatprep.subr.mxu0 0.0
    %1265 = vmatpush2.msra.mxu0 0.0
    %1266 = vmatprep.subr.mxu0 0.0
    %1267 = vmatpush2.msra.mxu0 0.0
    %1268 = vmatprep.subr.mxu0 0.0
    %1269 = vmatpush2.msra.mxu0 0.0
    %1270 = vmatprep.subr.mxu0 0.0
    %1271 = vmatpush2.msra.mxu0 0.0
    %1272 = vmatprep.subr.mxu0 0.0
    %1273 = vmatpush2.msra.mxu0 0.0
    %1274 = vmatprep.subr.mxu0 0.0
    %1275 = vmatpush2.msra.mxu0 0.0
    %1276 = vmatprep.subr.mxu0 0.0
    %1277 = vmatpush2.msra.mxu0 0.0
    %1278 = vmatprep.subr.mxu0 0.0
    %1279 = vmatpush2.msra.mxu0 0.0
    %1280 = vmatprep.subr.mxu0 0.0
    %1281 = vmatpush2.msra.mxu0 0.0
    %1282 = vmatprep.subr.mxu0 0.0
    %1283 = vmatpush2.msra.mxu0 0.0
    %1284 = vmatprep.subr.mxu0 0.0
    %1285 = vmatpush2.msra.mxu0 0.0
    %1286 = vmatprep.mubr.f32.mxu0 0.0
    %1287 = vmatmul.mubr.f32.gmra.mxu0 %v1220
    %v1288 = vpop.f32.mrf.mxu0
    %v1289 = vadd.f32 0.0, %v1288
    %v1290 = vpop.f32.mrf.mxu0
    %1291 = vdwg.mxu0
    %1292 = vrot.lane.b32.xlu0 %v206, 64
    %v1293 = vpop.permute.xlu0 %1292
    %v1296 = vsel %vm217, %v909, 0
    %1298 = vmatprep.subr.mxu0 0.0
    %1299 = vmatpush1.msra.mxu0 0.0
    %1300 = vmatprep.subr.mxu0 0.0
    %1301 = vmatpush1.msra.mxu0 0.0
    %1302 = vmatprep.subr.mxu0 0.0
    %1303 = vmatpush1.msra.mxu0 0.0
    %1304 = vmatprep.subr.mxu0 0.0
    %1305 = vmatpush1.msra.mxu0 0.0
    %1306 = vmatprep.subr.mxu0 0.0
    %1307 = vmatpush1.msra.mxu0 0.0
    %1308 = vmatprep.subr.mxu0 0.0
    %1309 = vmatpush1.msra.mxu0 0.0
    %1310 = vmatprep.subr.mxu0 0.0
    %1311 = vmatpush1.msra.mxu0 0.0
    %1312 = vmatprep.subr.mxu0 0.0
    %1313 = vmatpush1.msra.mxu0 0.0
    %1314 = vmatprep.subr.mxu0 0.0
    %1315 = vmatpush1.msra.mxu0 0.0
    %1316 = vmatprep.subr.mxu0 0.0
    %1317 = vmatpush1.msra.mxu0 0.0
    %1318 = vmatprep.subr.mxu0 0.0
    %1319 = vmatpush1.msra.mxu0 0.0
    %1320 = vmatprep.subr.mxu0 0.0
    %1321 = vmatpush1.msra.mxu0 0.0
    %1322 = vmatprep.subr.mxu0 0.0
    %1323 = vmatpush1.msra.mxu0 0.0
    %1324 = vmatprep.subr.mxu0 0.0
    %1325 = vmatpush1.msra.mxu0 0.0
    %1326 = vmatprep.subr.mxu0 0.0
    %1327 = vmatpush1.msra.mxu0 0.0
    %1328 = vmatprep.subr.mxu0 0.0
    %1329 = vmatpush1.msra.mxu0 %v1293
    %1330 = vmatprep.subr.mxu0 0.0
    %1331 = vmatpush2.msra.mxu0 0.0
    %1332 = vmatprep.subr.mxu0 0.0
    %1333 = vmatpush2.msra.mxu0 0.0
    %1334 = vmatprep.subr.mxu0 0.0
    %1335 = vmatpush2.msra.mxu0 0.0
    %1336 = vmatprep.subr.mxu0 0.0
    %1337 = vmatpush2.msra.mxu0 0.0
    %1338 = vmatprep.subr.mxu0 0.0
    %1339 = vmatpush2.msra.mxu0 0.0
    %1340 = vmatprep.subr.mxu0 0.0
    %1341 = vmatpush2.msra.mxu0 0.0
    %1342 = vmatprep.subr.mxu0 0.0
    %1343 = vmatpush2.msra.mxu0 0.0
    %1344 = vmatprep.subr.mxu0 0.0
    %1345 = vmatpush2.msra.mxu0 0.0
    %1346 = vmatprep.subr.mxu0 0.0
    %1347 = vmatpush2.msra.mxu0 0.0
    %1348 = vmatprep.subr.mxu0 0.0
    %1349 = vmatpush2.msra.mxu0 0.0
    %1350 = vmatprep.subr.mxu0 0.0
    %1351 = vmatpush2.msra.mxu0 0.0
    %1352 = vmatprep.subr.mxu0 0.0
    %1353 = vmatpush2.msra.mxu0 0.0
    %1354 = vmatprep.subr.mxu0 0.0
    %1355 = vmatpush2.msra.mxu0 0.0
    %1356 = vmatprep.subr.mxu0 0.0
    %1357 = vmatpush2.msra.mxu0 0.0
    %1358 = vmatprep.subr.mxu0 0.0
    %1359 = vmatpush2.msra.mxu0 0.0
    %1360 = vmatprep.subr.mxu0 0.0
    %1361 = vmatpush2.msra.mxu0 0.0
    %1362 = vmatprep.mubr.f32.mxu0 0.0
    %1363 = vmatmul.mubr.f32.gmra.mxu0 %v1296
    %v1364 = vpop.f32.mrf.mxu0
    %v1365 = vadd.f32 0.0, %v1364
    %v1366 = vpop.f32.mrf.mxu0
    %1367 = vdwg.mxu0
    %1368 = vrot.lane.b32.xlu0 %v210, 64
    %v1369 = vpop.permute.xlu0 %1368
    %v1372 = vsel %vm217, %v910, 0
    %1374 = vmatprep.subr.mxu0 0.0
    %1375 = vmatpush1.msra.mxu0 0.0
    %1376 = vmatprep.subr.mxu0 0.0
    %1377 = vmatpush1.msra.mxu0 0.0
    %1378 = vmatprep.subr.mxu0 0.0
    %1379 = vmatpush1.msra.mxu0 0.0
    %1380 = vmatprep.subr.mxu0 0.0
    %1381 = vmatpush1.msra.mxu0 0.0
    %1382 = vmatprep.subr.mxu0 0.0
    %1383 = vmatpush1.msra.mxu0 0.0
    %1384 = vmatprep.subr.mxu0 0.0
    %1385 = vmatpush1.msra.mxu0 0.0
    %1386 = vmatprep.subr.mxu0 0.0
    %1387 = vmatpush1.msra.mxu0 0.0
    %1388 = vmatprep.subr.mxu0 0.0
    %1389 = vmatpush1.msra.mxu0 0.0
    %1390 = vmatprep.subr.mxu0 0.0
    %1391 = vmatpush1.msra.mxu0 0.0
    %1392 = vmatprep.subr.mxu0 0.0
    %1393 = vmatpush1.msra.mxu0 0.0
    %1394 = vmatprep.subr.mxu0 0.0
    %1395 = vmatpush1.msra.mxu0 0.0
    %1396 = vmatprep.subr.mxu0 0.0
    %1397 = vmatpush1.msra.mxu0 0.0
    %1398 = vmatprep.subr.mxu0 0.0
    %1399 = vmatpush1.msra.mxu0 0.0
    %1400 = vmatprep.subr.mxu0 0.0
    %1401 = vmatpush1.msra.mxu0 0.0
    %1402 = vmatprep.subr.mxu0 0.0
    %1403 = vmatpush1.msra.mxu0 0.0
    %1404 = vmatprep.subr.mxu0 0.0
    %1405 = vmatpush1.msra.mxu0 %v1369
    %1406 = vmatprep.subr.mxu0 0.0
    %1407 = vmatpush2.msra.mxu0 0.0
    %1408 = vmatprep.subr.mxu0 0.0
    %1409 = vmatpush2.msra.mxu0 0.0
    %1410 = vmatprep.subr.mxu0 0.0
    %1411 = vmatpush2.msra.mxu0 0.0
    %1412 = vmatprep.subr.mxu0 0.0
    %1413 = vmatpush2.msra.mxu0 0.0
    %1414 = vmatprep.subr.mxu0 0.0
    %1415 = vmatpush2.msra.mxu0 0.0
    %1416 = vmatprep.subr.mxu0 0.0
    %1417 = vmatpush2.msra.mxu0 0.0
    %1418 = vmatprep.subr.mxu0 0.0
    %1419 = vmatpush2.msra.mxu0 0.0
    %1420 = vmatprep.subr.mxu0 0.0
    %1421 = vmatpush2.msra.mxu0 0.0
    %1422 = vmatprep.subr.mxu0 0.0
    %1423 = vmatpush2.msra.mxu0 0.0
    %1424 = vmatprep.subr.mxu0 0.0
    %1425 = vmatpush2.msra.mxu0 0.0
    %1426 = vmatprep.subr.mxu0 0.0
    %1427 = vmatpush2.msra.mxu0 0.0
    %1428 = vmatprep.subr.mxu0 0.0
    %1429 = vmatpush2.msra.mxu0 0.0
    %1430 = vmatprep.subr.mxu0 0.0
    %1431 = vmatpush2.msra.mxu0 0.0
    %1432 = vmatprep.subr.mxu0 0.0
    %1433 = vmatpush2.msra.mxu0 0.0
    %1434 = vmatprep.subr.mxu0 0.0
    %1435 = vmatpush2.msra.mxu0 0.0
    %1436 = vmatprep.subr.mxu0 0.0
    %1437 = vmatpush2.msra.mxu0 0.0
    %1438 = vmatprep.mubr.f32.mxu0 0.0
    %1439 = vmatmul.mubr.f32.gmra.mxu0 %v1372
    %v1440 = vpop.f32.mrf.mxu0
    %v1441 = vadd.f32 0.0, %v1440
    %v1442 = vpop.f32.mrf.mxu0
    %1443 = vdwg.mxu0
    %1444 = vrot.lane.b32.xlu0 %v214, 64
    %v1445 = vpop.permute.xlu0 %1444
    %v1448 = vsel %vm217, %v911, 0
    %1450 = vmatprep.subr.mxu0 0.0
    %1451 = vmatpush1.msra.mxu0 0.0
    %1452 = vmatprep.subr.mxu0 0.0
    %1453 = vmatpush1.msra.mxu0 0.0
    %1454 = vmatprep.subr.mxu0 0.0
    %1455 = vmatpush1.msra.mxu0 0.0
    %1456 = vmatprep.subr.mxu0 0.0
    %1457 = vmatpush1.msra.mxu0 0.0
    %1458 = vmatprep.subr.mxu0 0.0
    %1459 = vmatpush1.msra.mxu0 0.0
    %1460 = vmatprep.subr.mxu0 0.0
    %1461 = vmatpush1.msra.mxu0 0.0
    %1462 = vmatprep.subr.mxu0 0.0
    %1463 = vmatpush1.msra.mxu0 0.0
    %1464 = vmatprep.subr.mxu0 0.0
    %1465 = vmatpush1.msra.mxu0 0.0
    %1466 = vmatprep.subr.mxu0 0.0
    %1467 = vmatpush1.msra.mxu0 0.0
    %1468 = vmatprep.subr.mxu0 0.0
    %1469 = vmatpush1.msra.mxu0 0.0
    %1470 = vmatprep.subr.mxu0 0.0
    %1471 = vmatpush1.msra.mxu0 0.0
    %1472 = vmatprep.subr.mxu0 0.0
    %1473 = vmatpush1.msra.mxu0 0.0
    %1474 = vmatprep.subr.mxu0 0.0
    %1475 = vmatpush1.msra.mxu0 0.0
    %1476 = vmatprep.subr.mxu0 0.0
    %1477 = vmatpush1.msra.mxu0 0.0
    %1478 = vmatprep.subr.mxu0 0.0
    %1479 = vmatpush1.msra.mxu0 0.0
    %1480 = vmatprep.subr.mxu0 0.0
    %1481 = vmatpush1.msra.mxu0 %v1445
    %1482 = vmatprep.subr.mxu0 0.0
    %1483 = vmatpush2.msra.mxu0 0.0
    %1484 = vmatprep.subr.mxu0 0.0
    %1485 = vmatpush2.msra.mxu0 0.0
    %1486 = vmatprep.subr.mxu0 0.0
    %1487 = vmatpush2.msra.mxu0 0.0
    %1488 = vmatprep.subr.mxu0 0.0
    %1489 = vmatpush2.msra.mxu0 0.0
    %1490 = vmatprep.subr.mxu0 0.0
    %1491 = vmatpush2.msra.mxu0 0.0
    %1492 = vmatprep.subr.mxu0 0.0
    %1493 = vmatpush2.msra.mxu0 0.0
    %1494 = vmatprep.subr.mxu0 0.0
    %1495 = vmatpush2.msra.mxu0 0.0
    %1496 = vmatprep.subr.mxu0 0.0
    %1497 = vmatpush2.msra.mxu0 0.0
    %1498 = vmatprep.subr.mxu0 0.0
    %1499 = vmatpush2.msra.mxu0 0.0
    %1500 = vmatprep.subr.mxu0 0.0
    %1501 = vmatpush2.msra.mxu0 0.0
    %1502 = vmatprep.subr.mxu0 0.0
    %1503 = vmatpush2.msra.mxu0 0.0
    %1504 = vmatprep.subr.mxu0 0.0
    %1505 = vmatpush2.msra.mxu0 0.0
    %1506 = vmatprep.subr.mxu0 0.0
    %1507 = vmatpush2.msra.mxu0 0.0
    %1508 = vmatprep.subr.mxu0 0.0
    %1509 = vmatpush2.msra.mxu0 0.0
    %1510 = vmatprep.subr.mxu0 0.0
    %1511 = vmatpush2.msra.mxu0 0.0
    %1512 = vmatprep.subr.mxu0 0.0
    %1513 = vmatpush2.msra.mxu0 0.0
    %1514 = vmatprep.mubr.f32.mxu0 0.0
    %1515 = vmatmul.mubr.f32.gmra.mxu0 %v1448
    %v1516 = vpop.f32.mrf.mxu0
    %v1517 = vadd.f32 0.0, %v1516
    %v1518 = vpop.f32.mrf.mxu0
    %1519 = vdwg.mxu0
    %1522 = vrot.lane.b32.xlu0 %v1061, 8
    %v1523 = vpop.permute.xlu0 %1522
    %1524 = vrot.lane.b32.xlu0 %v1365, 8
    %v1525 = vpop.permute.xlu0 %1524
    %1530 = vrot.lane.b32.xlu0 %v1137, 16
    %v1531 = vpop.permute.xlu0 %1530
    %1532 = vrot.lane.b32.xlu0 %v1441, 16
    %v1533 = vpop.permute.xlu0 %1532
    %1538 = vrot.lane.b32.xlu0 %v1213, 24
    %v1539 = vpop.permute.xlu0 %1538
    %1540 = vrot.lane.b32.xlu0 %v1517, 24
    %v1541 = vpop.permute.xlu0 %1540
    %v1544 = vsel %vm217, %v985, %v1523
    %v1545 = vsel %vm217, %v1289, %v1525
    %vm1546 = vcmask 130048
    %v1547 = vsel %vm1546, %v1544, %v1531
    %v1548 = vsel %vm1546, %v1545, %v1533
    %vm1549 = vcmask 195584
    %v1550 = vsel %vm1549, %v1547, %v1539
    %v1551 = vsel %vm1549, %v1548, %v1541
    %v1552 = vld [vmem:[%s5] sm:$0xff]
    %v1553 = vld [vmem:[%s5 + $0x8] sm:$0xff]
    %v1554 = vld [vmem:[%s5 + $0x10] sm:$0xff]
    %v1555 = vld [vmem:[%s5 + $0x18] sm:$0xff]
    %v1556 = vld [vmem:[%s6] sm:$0x1]
    %v1558 = vlaneseq
    %v1559 = vshrl.u32 %v1558, 7
    %v1560 = vsub.s32 0, %v1559
    %v1561 = vrot.slane %v1556, %v1560
    %v1564 = vsel %vm49, %v1550, 0
    %v1567 = vsel %vm49, %v1551, 0
    %1569 = vmatprep.subr.mxu0 0.0
    %1570 = vmatpush1.msra.mxu0 0.0
    %1571 = vmatprep.subr.mxu0 0.0
    %1572 = vmatpush1.msra.mxu0 0.0
    %1573 = vmatprep.subr.mxu0 0.0
    %1574 = vmatpush1.msra.mxu0 0.0
    %1575 = vmatprep.subr.mxu0 0.0
    %1576 = vmatpush1.msra.mxu0 0.0
    %1577 = vmatprep.subr.mxu0 0.0
    %1578 = vmatpush1.msra.mxu0 0.0
    %1579 = vmatprep.subr.mxu0 0.0
    %1580 = vmatpush1.msra.mxu0 0.0
    %1581 = vmatprep.subr.mxu0 0.0
    %1582 = vmatpush1.msra.mxu0 0.0
    %1583 = vmatprep.subr.mxu0 0.0
    %1584 = vmatpush1.msra.mxu0 0.0
    %1585 = vmatprep.subr.mxu0 0.0
    %1586 = vmatpush1.msra.mxu0 0.0
    %1587 = vmatprep.subr.mxu0 0.0
    %1588 = vmatpush1.msra.mxu0 0.0
    %1589 = vmatprep.subr.mxu0 0.0
    %1590 = vmatpush1.msra.mxu0 0.0
    %1591 = vmatprep.subr.mxu0 0.0
    %1592 = vmatpush1.msra.mxu0 0.0
    %1593 = vmatprep.subr.mxu0 0.0
    %1594 = vmatpush1.msra.mxu0 %v1555
    %1595 = vmatprep.subr.mxu0 0.0
    %1596 = vmatpush1.msra.mxu0 %v1554
    %1597 = vmatprep.subr.mxu0 0.0
    %1598 = vmatpush1.msra.mxu0 %v1553
    %1599 = vmatprep.subr.mxu0 0.0
    %1600 = vmatpush1.msra.mxu0 %v1552
    %1601 = vmatprep.subr.mxu0 0.0
    %1602 = vmatpush2.msra.mxu0 0.0
    %1603 = vmatprep.subr.mxu0 0.0
    %1604 = vmatpush2.msra.mxu0 0.0
    %1605 = vmatprep.subr.mxu0 0.0
    %1606 = vmatpush2.msra.mxu0 0.0
    %1607 = vmatprep.subr.mxu0 0.0
    %1608 = vmatpush2.msra.mxu0 0.0
    %1609 = vmatprep.subr.mxu0 0.0
    %1610 = vmatpush2.msra.mxu0 0.0
    %1611 = vmatprep.subr.mxu0 0.0
    %1612 = vmatpush2.msra.mxu0 0.0
    %1613 = vmatprep.subr.mxu0 0.0
    %1614 = vmatpush2.msra.mxu0 0.0
    %1615 = vmatprep.subr.mxu0 0.0
    %1616 = vmatpush2.msra.mxu0 0.0
    %1617 = vmatprep.subr.mxu0 0.0
    %1618 = vmatpush2.msra.mxu0 0.0
    %1619 = vmatprep.subr.mxu0 0.0
    %1620 = vmatpush2.msra.mxu0 0.0
    %1621 = vmatprep.subr.mxu0 0.0
    %1622 = vmatpush2.msra.mxu0 0.0
    %1623 = vmatprep.subr.mxu0 0.0
    %1624 = vmatpush2.msra.mxu0 0.0
    %1625 = vmatprep.subr.mxu0 0.0
    %1626 = vmatpush2.msra.mxu0 0.0
    %1627 = vmatprep.subr.mxu0 0.0
    %1628 = vmatpush2.msra.mxu0 0.0
    %1629 = vmatprep.subr.mxu0 0.0
    %1630 = vmatpush2.msra.mxu0 0.0
    %1631 = vmatprep.subr.mxu0 0.0
    %1632 = vmatpush2.msra.mxu0 0.0
    %1633 = vmatprep.mubr.f32.mxu0 0.0
    %1634 = vmatmul.mubr.f32.gmra.mxu0 %v1564
    %v1635 = vpop.f32.mrf.mxu0
    %v1636 = vadd.f32 %v1561, %v1635
    %v1637 = vpop.f32.mrf.mxu0
    %1638 = vmatprep.mubr.f32.mxu0 0.0
    %1639 = vmatmul.mubr.f32.gmra.mxu0 %v1567
    %v1640 = vpop.f32.mrf.mxu0
    %v1641 = vadd.f32 %v1561, %v1640
    %v1642 = vpop.f32.mrf.mxu0
    %1643 = vdwg.mxu0
    %v1644 = vadd.f32 %v45, %v1636
    %v1645 = vadd.f32 %v46, %v1641
    %v1646 = vld [vmem:[%s7] sm:$0x1]
    %v1647 = vld [vmem:[%s8] sm:$0x1]
    %v1648 = vsel %vm49, %v1644, 0.0
    %1649 = vadd.xlane.f32.xlu0 %v1648
    %v1650 = vpop.xlane.xlu0 %1649
    %v1651 = vsel %vm49, %v1645, 0.0
    %1652 = vadd.xlane.f32.xlu0 %v1651
    %v1653 = vpop.xlane.xlu0 %1652
    %v1654 = vmul.f32 %v1650, %v56
    %v1655 = vmul.f32 %v1653, %v56
    %v1656 = vsub.f32 %v1644, %v1654
    %v1657 = vsub.f32 %v1645, %v1655
    %v1658 = vmul.f32 %v1656, %v1656
    %v1659 = vmul.f32 %v1657, %v1657
    %v1660 = vsel %vm49, %v1658, 0.0
    %1661 = vadd.xlane.f32.xlu0 %v1660
    %v1662 = vpop.xlane.xlu0 %1661
    %v1663 = vsel %vm49, %v1659, 0.0
    %1664 = vadd.xlane.f32.xlu0 %v1663
    %v1665 = vpop.xlane.xlu0 %1664
    %v1666 = vmul.f32 %v1662, %v56
    %v1667 = vmul.f32 %v1665, %v56
    %v1668 = vadd.f32 %v1666, 1e-05
    %v1669 = vadd.f32 %v1667, 1e-05
    %v1670 = vrsqrt.pop %v1668
    %v1671 = vrsqrt.pop %v1669
    %v1672 = vmul.f32 %v1656, %v1670
    %v1673 = vmul.f32 %v1657, %v1671
    %v1675 = vlaneseq
    %v1676 = vshrl.u32 %v1675, 7
    %v1677 = vsub.s32 0, %v1676
    %v1678 = vrot.slane %v1646, %v1677
    %v1680 = vmul.f32 %v1672, %v1678
    %v1681 = vmul.f32 %v1673, %v1678
    %v1683 = vlaneseq
    %v1684 = vshrl.u32 %v1683, 7
    %v1685 = vsub.s32 0, %v1684
    %v1686 = vrot.slane %v1647, %v1685
    %v1688 = vadd.f32 %v1680, %v1686
    %v1689 = vadd.f32 %v1681, %v1686
    %v1690 = vld [vmem:[%s9] sm:$0xff]
    %v1691 = vld [vmem:[%s9 + $0x8] sm:$0xff]
    %v1692 = vld [vmem:[%s9 + $0x10] sm:$0xff]
    %v1693 = vld [vmem:[%s9 + $0x18] sm:$0xff]
    %v1694 = vld [vmem:[%s10] sm:$0x1]
    %v1696 = vlaneseq
    %v1697 = vshrl.u32 %v1696, 7
    %v1698 = vsub.s32 0, %v1697
    %v1699 = vrot.slane %v1694, %v1698
    %v1702 = vsel %vm49, %v1688, 0
    %v1705 = vsel %vm49, %v1689, 0
    %1707 = vmatprep.subr.mxu0 0.0
    %1708 = vmatpush1.msra.mxu0 0.0
    %1709 = vmatprep.subr.mxu0 0.0
    %1710 = vmatpush1.msra.mxu0 0.0
    %1711 = vmatprep.subr.mxu0 0.0
    %1712 = vmatpush1.msra.mxu0 0.0
    %1713 = vmatprep.subr.mxu0 0.0
    %1714 = vmatpush1.msra.mxu0 0.0
    %1715 = vmatprep.subr.mxu0 0.0
    %1716 = vmatpush1.msra.mxu0 0.0
    %1717 = vmatprep.subr.mxu0 0.0
    %1718 = vmatpush1.msra.mxu0 0.0
    %1719 = vmatprep.subr.mxu0 0.0
    %1720 = vmatpush1.msra.mxu0 0.0
    %1721 = vmatprep.subr.mxu0 0.0
    %1722 = vmatpush1.msra.mxu0 0.0
    %1723 = vmatprep.subr.mxu0 0.0
    %1724 = vmatpush1.msra.mxu0 0.0
    %1725 = vmatprep.subr.mxu0 0.0
    %1726 = vmatpush1.msra.mxu0 0.0
    %1727 = vmatprep.subr.mxu0 0.0
    %1728 = vmatpush1.msra.mxu0 0.0
    %1729 = vmatprep.subr.mxu0 0.0
    %1730 = vmatpush1.msra.mxu0 0.0
    %1731 = vmatprep.subr.mxu0 0.0
    %1732 = vmatpush1.msra.mxu0 %v1693
    %1733 = vmatprep.subr.mxu0 0.0
    %1734 = vmatpush1.msra.mxu0 %v1692
    %1735 = vmatprep.subr.mxu0 0.0
    %1736 = vmatpush1.msra.mxu0 %v1691
    %1737 = vmatprep.subr.mxu0 0.0
    %1738 = vmatpush1.msra.mxu0 %v1690
    %1739 = vmatprep.subr.mxu0 0.0
    %1740 = vmatpush2.msra.mxu0 0.0
    %1741 = vmatprep.subr.mxu0 0.0
    %1742 = vmatpush2.msra.mxu0 0.0
    %1743 = vmatprep.subr.mxu0 0.0
    %1744 = vmatpush2.msra.mxu0 0.0
    %1745 = vmatprep.subr.mxu0 0.0
    %1746 = vmatpush2.msra.mxu0 0.0
    %1747 = vmatprep.subr.mxu0 0.0
    %1748 = vmatpush2.msra.mxu0 0.0
    %1749 = vmatprep.subr.mxu0 0.0
    %1750 = vmatpush2.msra.mxu0 0.0
    %1751 = vmatprep.subr.mxu0 0.0
    %1752 = vmatpush2.msra.mxu0 0.0
    %1753 = vmatprep.subr.mxu0 0.0
    %1754 = vmatpush2.msra.mxu0 0.0
    %1755 = vmatprep.subr.mxu0 0.0
    %1756 = vmatpush2.msra.mxu0 0.0
    %1757 = vmatprep.subr.mxu0 0.0
    %1758 = vmatpush2.msra.mxu0 0.0
    %1759 = vmatprep.subr.mxu0 0.0
    %1760 = vmatpush2.msra.mxu0 0.0
    %1761 = vmatprep.subr.mxu0 0.0
    %1762 = vmatpush2.msra.mxu0 0.0
    %1763 = vmatprep.subr.mxu0 0.0
    %1764 = vmatpush2.msra.mxu0 0.0
    %1765 = vmatprep.subr.mxu0 0.0
    %1766 = vmatpush2.msra.mxu0 0.0
    %1767 = vmatprep.subr.mxu0 0.0
    %1768 = vmatpush2.msra.mxu0 0.0
    %1769 = vmatprep.subr.mxu0 0.0
    %1770 = vmatpush2.msra.mxu0 0.0
    %1771 = vmatprep.mubr.f32.mxu0 0.0
    %1772 = vmatmul.mubr.f32.gmra.mxu0 %v1702
    %v1773 = vpop.f32.mrf.mxu0
    %v1774 = vadd.f32 %v1699, %v1773
    %v1775 = vpop.f32.mrf.mxu0
    %1776 = vmatprep.mubr.f32.mxu0 0.0
    %1777 = vmatmul.mubr.f32.gmra.mxu0 %v1705
    %v1778 = vpop.f32.mrf.mxu0
    %v1779 = vadd.f32 %v1699, %v1778
    %v1780 = vpop.f32.mrf.mxu0
    %1781 = vdwg.mxu0
    %v1782 = vmul.f32 %v1774, 0.5
    %v1783 = vmul.f32 %v1779, 0.5
    %v1784 = vmul.f32 %v1774, 0.70710677
    %v1785 = vmul.f32 %v1779, 0.70710677
    %v1786 = verf.f32.pop %v1784
    %v1787 = verf.f32.pop %v1785
    %v1788 = vadd.f32 %v1786, 1.0
    %v1789 = vadd.f32 %v1787, 1.0
    %v1790 = vmul.f32 %v1782, %v1788
    %v1791 = vmul.f32 %v1783, %v1789
    %v1792 = vld [vmem:[%s11] sm:$0xff]
    %v1793 = vld [vmem:[%s11 + $0x8] sm:$0xff]
    %v1794 = vld [vmem:[%s11 + $0x10] sm:$0xff]
    %v1795 = vld [vmem:[%s11 + $0x18] sm:$0xff]
    %v1796 = vld [vmem:[%s11 + $0x20] sm:$0xff]
    %v1797 = vld [vmem:[%s11 + $0x28] sm:$0xff]
    %v1798 = vld [vmem:[%s11 + $0x30] sm:$0xff]
    %v1799 = vld [vmem:[%s11 + $0x38] sm:$0xff]
    %v1800 = vld [vmem:[%s11 + $0x40] sm:$0xff]
    %v1801 = vld [vmem:[%s11 + $0x48] sm:$0xff]
    %v1802 = vld [vmem:[%s11 + $0x50] sm:$0xff]
    %v1803 = vld [vmem:[%s11 + $0x58] sm:$0xff]
    %v1804 = vld [vmem:[%s11 + $0x60] sm:$0xff]
    %v1805 = vld [vmem:[%s11 + $0x68] sm:$0xff]
    %v1806 = vld [vmem:[%s11 + $0x70] sm:$0xff]
    %v1807 = vld [vmem:[%s11 + $0x78] sm:$0xff]
    %v1808 = vld [vmem:[%s12] sm:$0x1]
    %v1810 = vlaneseq
    %v1811 = vshrl.u32 %v1810, 7
    %v1812 = vsub.s32 0, %v1811
    %v1813 = vrot.slane %v1808, %v1812
    %1815 = vmatprep.subr.mxu0 0.0
    %1816 = vmatpush1.msra.mxu0 %v1807
    %1817 = vmatprep.subr.mxu0 0.0
    %1818 = vmatpush1.msra.mxu0 %v1806
    %1819 = vmatprep.subr.mxu0 0.0
    %1820 = vmatpush1.msra.mxu0 %v1805
    %1821 = vmatprep.subr.mxu0 0.0
    %1822 = vmatpush1.msra.mxu0 %v1804
    %1823 = vmatprep.subr.mxu0 0.0
    %1824 = vmatpush1.msra.mxu0 %v1803
    %1825 = vmatprep.subr.mxu0 0.0
    %1826 = vmatpush1.msra.mxu0 %v1802
    %1827 = vmatprep.subr.mxu0 0.0
    %1828 = vmatpush1.msra.mxu0 %v1801
    %1829 = vmatprep.subr.mxu0 0.0
    %1830 = vmatpush1.msra.mxu0 %v1800
    %1831 = vmatprep.subr.mxu0 0.0
    %1832 = vmatpush1.msra.mxu0 %v1799
    %1833 = vmatprep.subr.mxu0 0.0
    %1834 = vmatpush1.msra.mxu0 %v1798
    %1835 = vmatprep.subr.mxu0 0.0
    %1836 = vmatpush1.msra.mxu0 %v1797
    %1837 = vmatprep.subr.mxu0 0.0
    %1838 = vmatpush1.msra.mxu0 %v1796
    %1839 = vmatprep.subr.mxu0 0.0
    %1840 = vmatpush1.msra.mxu0 %v1795
    %1841 = vmatprep.subr.mxu0 0.0
    %1842 = vmatpush1.msra.mxu0 %v1794
    %1843 = vmatprep.subr.mxu0 0.0
    %1844 = vmatpush1.msra.mxu0 %v1793
    %1845 = vmatprep.subr.mxu0 0.0
    %1846 = vmatpush1.msra.mxu0 %v1792
    %1847 = vmatprep.subr.mxu0 0.0
    %1848 = vmatpush2.msra.mxu0 0.0
    %1849 = vmatprep.subr.mxu0 0.0
    %1850 = vmatpush2.msra.mxu0 0.0
    %1851 = vmatprep.subr.mxu0 0.0
    %1852 = vmatpush2.msra.mxu0 0.0
    %1853 = vmatprep.subr.mxu0 0.0
    %1854 = vmatpush2.msra.mxu0 0.0
    %1855 = vmatprep.subr.mxu0 0.0
    %1856 = vmatpush2.msra.mxu0 0.0
    %1857 = vmatprep.subr.mxu0 0.0
    %1858 = vmatpush2.msra.mxu0 0.0
    %1859 = vmatprep.subr.mxu0 0.0
    %1860 = vmatpush2.msra.mxu0 0.0
    %1861 = vmatprep.subr.mxu0 0.0
    %1862 = vmatpush2.msra.mxu0 0.0
    %1863 = vmatprep.subr.mxu0 0.0
    %1864 = vmatpush2.msra.mxu0 0.0
    %1865 = vmatprep.subr.mxu0 0.0
    %1866 = vmatpush2.msra.mxu0 0.0
    %1867 = vmatprep.subr.mxu0 0.0
    %1868 = vmatpush2.msra.mxu0 0.0
    %1869 = vmatprep.subr.mxu0 0.0
    %1870 = vmatpush2.msra.mxu0 0.0
    %1871 = vmatprep.subr.mxu0 0.0
    %1872 = vmatpush2.msra.mxu0 0.0
    %1873 = vmatprep.subr.mxu0 0.0
    %1874 = vmatpush2.msra.mxu0 0.0
    %1875 = vmatprep.subr.mxu0 0.0
    %1876 = vmatpush2.msra.mxu0 0.0
    %1877 = vmatprep.subr.mxu0 0.0
    %1878 = vmatpush2.msra.mxu0 0.0
    %1879 = vmatprep.mubr.f32.mxu0 0.0
    %1880 = vmatmul.mubr.f32.gmra.mxu0 %v1790
    %v1881 = vpop.f32.mrf.mxu0
    %v1882 = vadd.f32 %v1813, %v1881
    %v1883 = vpop.f32.mrf.mxu0
    %1884 = vmatprep.mubr.f32.mxu0 0.0
    %1885 = vmatmul.mubr.f32.gmra.mxu0 %v1791
    %v1886 = vpop.f32.mrf.mxu0
    %v1887 = vadd.f32 %v1813, %v1886
    %v1888 = vpop.f32.mrf.mxu0
    %1889 = vdwg.mxu0
    %v1890 = vadd.f32 %v1644, %v1882
    %v1891 = vadd.f32 %v1645, %v1887
    %s1892 = scalar_lea.vmem %s1, 1
    %v1893 = vld [vmem:[%s1892] sm:$0x1]
    %s1894 = scalar_lea.vmem %s2, 1
    %v1895 = vld [vmem:[%s1894] sm:$0x1]
    %v1896 = vsel %vm49, %v1890, 0.0
    %1897 = vadd.xlane.f32.xlu0 %v1896
    %v1898 = vpop.xlane.xlu0 %1897
    %v1899 = vsel %vm49, %v1891, 0.0
    %1900 = vadd.xlane.f32.xlu0 %v1899
    %v1901 = vpop.xlane.xlu0 %1900
    %v1902 = vmul.f32 %v1898, %v56
    %v1903 = vmul.f32 %v1901, %v56
    %v1904 = vsub.f32 %v1890, %v1902
    %v1905 = vsub.f32 %v1891, %v1903
    %v1906 = vmul.f32 %v1904, %v1904
    %v1907 = vmul.f32 %v1905, %v1905
    %v1908 = vsel %vm49, %v1906, 0.0
    %1909 = vadd.xlane.f32.xlu0 %v1908
    %v1910 = vpop.xlane.xlu0 %1909
    %v1911 = vsel %vm49, %v1907, 0.0
    %1912 = vadd.xlane.f32.xlu0 %v1911
    %v1913 = vpop.xlane.xlu0 %1912
    %v1914 = vmul.f32 %v1910, %v56
    %v1915 = vmul.f32 %v1913, %v56
    %v1916 = vadd.f32 %v1914, 1e-05
    %v1917 = vadd.f32 %v1915, 1e-05
    %v1918 = vrsqrt.pop %v1916
    %v1919 = vrsqrt.pop %v1917
    %v1920 = vmul.f32 %v1904, %v1918
    %v1921 = vmul.f32 %v1905, %v1919
    %v1923 = vlaneseq
    %v1924 = vshrl.u32 %v1923, 7
    %v1925 = vsub.s32 0, %v1924
    %v1926 = vrot.slane %v1893, %v1925
    %v1928 = vmul.f32 %v1920, %v1926
    %v1929 = vmul.f32 %v1921, %v1926
    %v1931 = vlaneseq
    %v1932 = vshrl.u32 %v1931, 7
    %v1933 = vsub.s32 0, %v1932
    %v1934 = vrot.slane %v1895, %v1933
    %v1936 = vadd.f32 %v1928, %v1934
    %v1937 = vadd.f32 %v1929, %v1934
    %s1938 = scalar_lea.vmem %s3, 32
    %v1939 = vld [vmem:[%s1938] sm:$0xff]
    %v1940 = vld [vmem:[%s1938 + $0x8] sm:$0xff]
    %v1941 = vld [vmem:[%s1938 + $0x10] sm:$0xff]
    %v1942 = vld [vmem:[%s1938 + $0x18] sm:$0xff]
    %s1943 = scalar_lea.vmem %s4, 1
    %v1944 = vld [vmem:[%s1943] sm:$0x1]
    %v1946 = vlaneseq
    %v1947 = vshrl.u32 %v1946, 7
    %v1948 = vsub.s32 0, %v1947
    %v1949 = vrot.slane %v1944, %v1948
    %v1952 = vsel %vm49, %v1936, 0
    %v1955 = vsel %vm49, %v1937, 0
    %1957 = vmatprep.subr.mxu0 0.0
    %1958 = vmatpush1.msra.mxu0 0.0
    %1959 = vmatprep.subr.mxu0 0.0
    %1960 = vmatpush1.msra.mxu0 0.0
    %1961 = vmatprep.subr.mxu0 0.0
    %1962 = vmatpush1.msra.mxu0 0.0
    %1963 = vmatprep.subr.mxu0 0.0
    %1964 = vmatpush1.msra.mxu0 0.0
    %1965 = vmatprep.subr.mxu0 0.0
    %1966 = vmatpush1.msra.mxu0 0.0
    %1967 = vmatprep.subr.mxu0 0.0
    %1968 = vmatpush1.msra.mxu0 0.0
    %1969 = vmatprep.subr.mxu0 0.0
    %1970 = vmatpush1.msra.mxu0 0.0
    %1971 = vmatprep.subr.mxu0 0.0
    %1972 = vmatpush1.msra.mxu0 0.0
    %1973 = vmatprep.subr.mxu0 0.0
    %1974 = vmatpush1.msra.mxu0 0.0
    %1975 = vmatprep.subr.mxu0 0.0
    %1976 = vmatpush1.msra.mxu0 0.0
    %1977 = vmatprep.subr.mxu0 0.0
    %1978 = vmatpush1.msra.mxu0 0.0
    %1979 = vmatprep.subr.mxu0 0.0
    %1980 = vmatpush1.msra.mxu0 0.0
    %1981 = vmatprep.subr.mxu0 0.0
    %1982 = vmatpush1.msra.mxu0 %v1942
    %1983 = vmatprep.subr.mxu0 0.0
    %1984 = vmatpush1.msra.mxu0 %v1941
    %1985 = vmatprep.subr.mxu0 0.0
    %1986 = vmatpush1.msra.mxu0 %v1940
    %1987 = vmatprep.subr.mxu0 0.0
    %1988 = vmatpush1.msra.mxu0 %v1939
    %1989 = vmatprep.subr.mxu0 0.0
    %1990 = vmatpush2.msra.mxu0 0.0
    %1991 = vmatprep.subr.mxu0 0.0
    %1992 = vmatpush2.msra.mxu0 0.0
    %1993 = vmatprep.subr.mxu0 0.0
    %1994 = vmatpush2.msra.mxu0 0.0
    %1995 = vmatprep.subr.mxu0 0.0
    %1996 = vmatpush2.msra.mxu0 0.0
    %1997 = vmatprep.subr.mxu0 0.0
    %1998 = vmatpush2.msra.mxu0 0.0
    %1999 = vmatprep.subr.mxu0 0.0
    %2000 = vmatpush2.msra.mxu0 0.0
    %2001 = vmatprep.subr.mxu0 0.0
    %2002 = vmatpush2.msra.mxu0 0.0
    %2003 = vmatprep.subr.mxu0 0.0
    %2004 = vmatpush2.msra.mxu0 0.0
    %2005 = vmatprep.subr.mxu0 0.0
    %2006 = vmatpush2.msra.mxu0 0.0
    %2007 = vmatprep.subr.mxu0 0.0
    %2008 = vmatpush2.msra.mxu0 0.0
    %2009 = vmatprep.subr.mxu0 0.0
    %2010 = vmatpush2.msra.mxu0 0.0
    %2011 = vmatprep.subr.mxu0 0.0
    %2012 = vmatpush2.msra.mxu0 0.0
    %2013 = vmatprep.subr.mxu0 0.0
    %2014 = vmatpush2.msra.mxu0 0.0
    %2015 = vmatprep.subr.mxu0 0.0
    %2016 = vmatpush2.msra.mxu0 0.0
    %2017 = vmatprep.subr.mxu0 0.0
    %2018 = vmatpush2.msra.mxu0 0.0
    %2019 = vmatprep.subr.mxu0 0.0
    %2020 = vmatpush2.msra.mxu0 0.0
    %2021 = vmatprep.mubr.f32.mxu0 0.0
    %2022 = vmatmul.mubr.f32.gmra.mxu0 %v1952
    %v2023 = vpop.f32.mrf.mxu0
    %v2024 = vadd.f32 %v1949, %v2023
    %v2025 = vpop.f32.mrf.mxu0
    %2026 = vmatprep.mubr.f32.mxu0 0.0
    %2027 = vmatmul.mubr.f32.gmra.mxu0 %v1955
    %v2028 = vpop.f32.mrf.mxu0
    %v2029 = vadd.f32 %v1949, %v2028
    %v2030 = vpop.f32.mrf.mxu0
    %2031 = vdwg.mxu0
    %v2032 = vmul.f32 %v2024, 0.35355338
    %v2033 = vmul.f32 %v2029, 0.35355338
    %2036 = vrot.lane.b32.xlu0 %v2032, 120
    %v2037 = vpop.permute.xlu0 %2036
    %2038 = vrot.lane.b32.xlu0 %v2033, 120
    %v2039 = vpop.permute.xlu0 %2038
    %2040 = vrot.lane.b32.xlu0 %v2032, 112
    %v2041 = vpop.permute.xlu0 %2040
    %2042 = vrot.lane.b32.xlu0 %v2033, 112
    %v2043 = vpop.permute.xlu0 %2042
    %2044 = vrot.lane.b32.xlu0 %v2032, 104
    %v2045 = vpop.permute.xlu0 %2044
    %2046 = vrot.lane.b32.xlu0 %v2033, 104
    %v2047 = vpop.permute.xlu0 %2046
    %2050 = vrot.lane.b32.xlu0 %v2024, 120
    %v2051 = vpop.permute.xlu0 %2050
    %2052 = vrot.lane.b32.xlu0 %v2029, 120
    %v2053 = vpop.permute.xlu0 %2052
    %2054 = vrot.lane.b32.xlu0 %v2024, 112
    %v2055 = vpop.permute.xlu0 %2054
    %2056 = vrot.lane.b32.xlu0 %v2029, 112
    %v2057 = vpop.permute.xlu0 %2056
    %2058 = vrot.lane.b32.xlu0 %v2024, 104
    %v2059 = vpop.permute.xlu0 %2058
    %2060 = vrot.lane.b32.xlu0 %v2029, 104
    %v2061 = vpop.permute.xlu0 %2060
    %2062 = vrot.lane.b32.xlu0 %v2024, 96
    %v2063 = vpop.permute.xlu0 %2062
    %v2064 = vsel %vm217, %v2032, 0
    %v2066 = vsel %vm217, %v2063, 0
    %2068 = vmatprep.subr.mxu0 0.0
    %2069 = vmatpush1.xpose.msra.mxu0 0.0
    %2070 = vmatprep.subr.mxu0 0.0
    %2071 = vmatpush1.xpose.msra.mxu0 0.0
    %2072 = vmatprep.subr.mxu0 0.0
    %2073 = vmatpush1.xpose.msra.mxu0 0.0
    %2074 = vmatprep.subr.mxu0 0.0
    %2075 = vmatpush1.xpose.msra.mxu0 0.0
    %2076 = vmatprep.subr.mxu0 0.0
    %2077 = vmatpush1.xpose.msra.mxu0 0.0
    %2078 = vmatprep.subr.mxu0 0.0
    %2079 = vmatpush1.xpose.msra.mxu0 0.0
    %2080 = vmatprep.subr.mxu0 0.0
    %2081 = vmatpush1.xpose.msra.mxu0 0.0
    %2082 = vmatprep.subr.mxu0 0.0
    %2083 = vmatpush1.xpose.msra.mxu0 0.0
    %2084 = vmatprep.subr.mxu0 0.0
    %2085 = vmatpush1.xpose.msra.mxu0 0.0
    %2086 = vmatprep.subr.mxu0 0.0
    %2087 = vmatpush1.xpose.msra.mxu0 0.0
    %2088 = vmatprep.subr.mxu0 0.0
    %2089 = vmatpush1.xpose.msra.mxu0 0.0
    %2090 = vmatprep.subr.mxu0 0.0
    %2091 = vmatpush1.xpose.msra.mxu0 0.0
    %2092 = vmatprep.subr.mxu0 0.0
    %2093 = vmatpush1.xpose.msra.mxu0 0.0
    %2094 = vmatprep.subr.mxu0 0.0
    %2095 = vmatpush1.xpose.msra.mxu0 0.0
    %2096 = vmatprep.subr.mxu0 0.0
    %2097 = vmatpush1.xpose.msra.mxu0 0.0
    %2098 = vmatprep.subr.mxu0 0.0
    %2099 = vmatpush1.xpose.msra.mxu0 %v2066
    %2100 = vmatprep.subr.mxu0 0.0
    %2101 = vmatpush2.xpose.msra.mxu0 0.0
    %2102 = vmatprep.subr.mxu0 0.0
    %2103 = vmatpush2.xpose.msra.mxu0 0.0
    %2104 = vmatprep.subr.mxu0 0.0
    %2105 = vmatpush2.xpose.msra.mxu0 0.0
    %2106 = vmatprep.subr.mxu0 0.0
    %2107 = vmatpush2.xpose.msra.mxu0 0.0
    %2108 = vmatprep.subr.mxu0 0.0
    %2109 = vmatpush2.xpose.msra.mxu0 0.0
    %2110 = vmatprep.subr.mxu0 0.0
    %2111 = vmatpush2.xpose.msra.mxu0 0.0
    %2112 = vmatprep.subr.mxu0 0.0
    %2113 = vmatpush2.xpose.msra.mxu0 0.0
    %2114 = vmatprep.subr.mxu0 0.0
    %2115 = vmatpush2.xpose.msra.mxu0 0.0
    %2116 = vmatprep.subr.mxu0 0.0
    %2117 = vmatpush2.xpose.msra.mxu0 0.0
    %2118 = vmatprep.subr.mxu0 0.0
    %2119 = vmatpush2.xpose.msra.mxu0 0.0
    %2120 = vmatprep.subr.mxu0 0.0
    %2121 = vmatpush2.xpose.msra.mxu0 0.0
    %2122 = vmatprep.subr.mxu0 0.0
    %2123 = vmatpush2.xpose.msra.mxu0 0.0
    %2124 = vmatprep.subr.mxu0 0.0
    %2125 = vmatpush2.xpose.msra.mxu0 0.0
    %2126 = vmatprep.subr.mxu0 0.0
    %2127 = vmatpush2.xpose.msra.mxu0 0.0
    %2128 = vmatprep.subr.mxu0 0.0
    %2129 = vmatpush2.xpose.msra.mxu0 0.0
    %2130 = vmatprep.subr.mxu0 0.0
    %2131 = vmatpush2.xpose.msra.mxu0 0.0
    %2132 = vmatprep.mubr.f32.mxu0 0.0
    %2133 = vmatmul.mubr.f32.gmra.mxu0 %v2064
    %v2134 = vpop.f32.mrf.mxu0
    %v2135 = vadd.f32 0.0, %v2134
    %v2136 = vpop.f32.mrf.mxu0
    %2137 = vdwg.mxu0
    %2138 = vrot.lane.b32.xlu0 %v2051, 96
    %v2139 = vpop.permute.xlu0 %2138
    %v2140 = vsel %vm217, %v2037, 0
    %v2142 = vsel %vm217, %v2139, 0
    %2144 = vmatprep.subr.mxu0 0.0
    %2145 = vmatpush1.xpose.msra.mxu0 0.0
    %2146 = vmatprep.subr.mxu0 0.0
    %2147 = vmatpush1.xpose.msra.mxu0 0.0
    %2148 = vmatprep.subr.mxu0 0.0
    %2149 = vmatpush1.xpose.msra.mxu0 0.0
    %2150 = vmatprep.subr.mxu0 0.0
    %2151 = vmatpush1.xpose.msra.mxu0 0.0
    %2152 = vmatprep.subr.mxu0 0.0
    %2153 = vmatpush1.xpose.msra.mxu0 0.0
    %2154 = vmatprep.subr.mxu0 0.0
    %2155 = vmatpush1.xpose.msra.mxu0 0.0
    %2156 = vmatprep.subr.mxu0 0.0
    %2157 = vmatpush1.xpose.msra.mxu0 0.0
    %2158 = vmatprep.subr.mxu0 0.0
    %2159 = vmatpush1.xpose.msra.mxu0 0.0
    %2160 = vmatprep.subr.mxu0 0.0
    %2161 = vmatpush1.xpose.msra.mxu0 0.0
    %2162 = vmatprep.subr.mxu0 0.0
    %2163 = vmatpush1.xpose.msra.mxu0 0.0
    %2164 = vmatprep.subr.mxu0 0.0
    %2165 = vmatpush1.xpose.msra.mxu0 0.0
    %2166 = vmatprep.subr.mxu0 0.0
    %2167 = vmatpush1.xpose.msra.mxu0 0.0
    %2168 = vmatprep.subr.mxu0 0.0
    %2169 = vmatpush1.xpose.msra.mxu0 0.0
    %2170 = vmatprep.subr.mxu0 0.0
    %2171 = vmatpush1.xpose.msra.mxu0 0.0
    %2172 = vmatprep.subr.mxu0 0.0
    %2173 = vmatpush1.xpose.msra.mxu0 0.0
    %2174 = vmatprep.subr.mxu0 0.0
    %2175 = vmatpush1.xpose.msra.mxu0 %v2142
    %2176 = vmatprep.subr.mxu0 0.0
    %2177 = vmatpush2.xpose.msra.mxu0 0.0
    %2178 = vmatprep.subr.mxu0 0.0
    %2179 = vmatpush2.xpose.msra.mxu0 0.0
    %2180 = vmatprep.subr.mxu0 0.0
    %2181 = vmatpush2.xpose.msra.mxu0 0.0
    %2182 = vmatprep.subr.mxu0 0.0
    %2183 = vmatpush2.xpose.msra.mxu0 0.0
    %2184 = vmatprep.subr.mxu0 0.0
    %2185 = vmatpush2.xpose.msra.mxu0 0.0
    %2186 = vmatprep.subr.mxu0 0.0
    %2187 = vmatpush2.xpose.msra.mxu0 0.0
    %2188 = vmatprep.subr.mxu0 0.0
    %2189 = vmatpush2.xpose.msra.mxu0 0.0
    %2190 = vmatprep.subr.mxu0 0.0
    %2191 = vmatpush2.xpose.msra.mxu0 0.0
    %2192 = vmatprep.subr.mxu0 0.0
    %2193 = vmatpush2.xpose.msra.mxu0 0.0
    %2194 = vmatprep.subr.mxu0 0.0
    %2195 = vmatpush2.xpose.msra.mxu0 0.0
    %2196 = vmatprep.subr.mxu0 0.0
    %2197 = vmatpush2.xpose.msra.mxu0 0.0
    %2198 = vmatprep.subr.mxu0 0.0
    %2199 = vmatpush2.xpose.msra.mxu0 0.0
    %2200 = vmatprep.subr.mxu0 0.0
    %2201 = vmatpush2.xpose.msra.mxu0 0.0
    %2202 = vmatprep.subr.mxu0 0.0
    %2203 = vmatpush2.xpose.msra.mxu0 0.0
    %2204 = vmatprep.subr.mxu0 0.0
    %2205 = vmatpush2.xpose.msra.mxu0 0.0
    %2206 = vmatprep.subr.mxu0 0.0
    %2207 = vmatpush2.xpose.msra.mxu0 0.0
    %2208 = vmatprep.mubr.f32.mxu0 0.0
    %2209 = vmatmul.mubr.f32.gmra.mxu0 %v2140
    %v2210 = vpop.f32.mrf.mxu0
    %v2211 = vadd.f32 0.0, %v2210
    %v2212 = vpop.f32.mrf.mxu0
    %2213 = vdwg.mxu0
    %2214 = vrot.lane.b32.xlu0 %v2055, 96
    %v2215 = vpop.permute.xlu0 %2214
    %v2216 = vsel %vm217, %v2041, 0
    %v2218 = vsel %vm217, %v2215, 0
    %2220 = vmatprep.subr.mxu0 0.0
    %2221 = vmatpush1.xpose.msra.mxu0 0.0
    %2222 = vmatprep.subr.mxu0 0.0
    %2223 = vmatpush1.xpose.msra.mxu0 0.0
    %2224 = vmatprep.subr.mxu0 0.0
    %2225 = vmatpush1.xpose.msra.mxu0 0.0
    %2226 = vmatprep.subr.mxu0 0.0
    %2227 = vmatpush1.xpose.msra.mxu0 0.0
    %2228 = vmatprep.subr.mxu0 0.0
    %2229 = vmatpush1.xpose.msra.mxu0 0.0
    %2230 = vmatprep.subr.mxu0 0.0
    %2231 = vmatpush1.xpose.msra.mxu0 0.0
    %2232 = vmatprep.subr.mxu0 0.0
    %2233 = vmatpush1.xpose.msra.mxu0 0.0
    %2234 = vmatprep.subr.mxu0 0.0
    %2235 = vmatpush1.xpose.msra.mxu0 0.0
    %2236 = vmatprep.subr.mxu0 0.0
    %2237 = vmatpush1.xpose.msra.mxu0 0.0
    %2238 = vmatprep.subr.mxu0 0.0
    %2239 = vmatpush1.xpose.msra.mxu0 0.0
    %2240 = vmatprep.subr.mxu0 0.0
    %2241 = vmatpush1.xpose.msra.mxu0 0.0
    %2242 = vmatprep.subr.mxu0 0.0
    %2243 = vmatpush1.xpose.msra.mxu0 0.0
    %2244 = vmatprep.subr.mxu0 0.0
    %2245 = vmatpush1.xpose.msra.mxu0 0.0
    %2246 = vmatprep.subr.mxu0 0.0
    %2247 = vmatpush1.xpose.msra.mxu0 0.0
    %2248 = vmatprep.subr.mxu0 0.0
    %2249 = vmatpush1.xpose.msra.mxu0 0.0
    %2250 = vmatprep.subr.mxu0 0.0
    %2251 = vmatpush1.xpose.msra.mxu0 %v2218
    %2252 = vmatprep.subr.mxu0 0.0
    %2253 = vmatpush2.xpose.msra.mxu0 0.0
    %2254 = vmatprep.subr.mxu0 0.0
    %2255 = vmatpush2.xpose.msra.mxu0 0.0
    %2256 = vmatprep.subr.mxu0 0.0
    %2257 = vmatpush2.xpose.msra.mxu0 0.0
    %2258 = vmatprep.subr.mxu0 0.0
    %2259 = vmatpush2.xpose.msra.mxu0 0.0
    %2260 = vmatprep.subr.mxu0 0.0
    %2261 = vmatpush2.xpose.msra.mxu0 0.0
    %2262 = vmatprep.subr.mxu0 0.0
    %2263 = vmatpush2.xpose.msra.mxu0 0.0
    %2264 = vmatprep.subr.mxu0 0.0
    %2265 = vmatpush2.xpose.msra.mxu0 0.0
    %2266 = vmatprep.subr.mxu0 0.0
    %2267 = vmatpush2.xpose.msra.mxu0 0.0
    %2268 = vmatprep.subr.mxu0 0.0
    %2269 = vmatpush2.xpose.msra.mxu0 0.0
    %2270 = vmatprep.subr.mxu0 0.0
    %2271 = vmatpush2.xpose.msra.mxu0 0.0
    %2272 = vmatprep.subr.mxu0 0.0
    %2273 = vmatpush2.xpose.msra.mxu0 0.0
    %2274 = vmatprep.subr.mxu0 0.0
    %2275 = vmatpush2.xpose.msra.mxu0 0.0
    %2276 = vmatprep.subr.mxu0 0.0
    %2277 = vmatpush2.xpose.msra.mxu0 0.0
    %2278 = vmatprep.subr.mxu0 0.0
    %2279 = vmatpush2.xpose.msra.mxu0 0.0
    %2280 = vmatprep.subr.mxu0 0.0
    %2281 = vmatpush2.xpose.msra.mxu0 0.0
    %2282 = vmatprep.subr.mxu0 0.0
    %2283 = vmatpush2.xpose.msra.mxu0 0.0
    %2284 = vmatprep.mubr.f32.mxu0 0.0
    %2285 = vmatmul.mubr.f32.gmra.mxu0 %v2216
    %v2286 = vpop.f32.mrf.mxu0
    %v2287 = vadd.f32 0.0, %v2286
    %v2288 = vpop.f32.mrf.mxu0
    %2289 = vdwg.mxu0
    %2290 = vrot.lane.b32.xlu0 %v2059, 96
    %v2291 = vpop.permute.xlu0 %2290
    %v2292 = vsel %vm217, %v2045, 0
    %v2294 = vsel %vm217, %v2291, 0
    %2296 = vmatprep.subr.mxu0 0.0
    %2297 = vmatpush1.xpose.msra.mxu0 0.0
    %2298 = vmatprep.subr.mxu0 0.0
    %2299 = vmatpush1.xpose.msra.mxu0 0.0
    %2300 = vmatprep.subr.mxu0 0.0
    %2301 = vmatpush1.xpose.msra.mxu0 0.0
    %2302 = vmatprep.subr.mxu0 0.0
    %2303 = vmatpush1.xpose.msra.mxu0 0.0
    %2304 = vmatprep.subr.mxu0 0.0
    %2305 = vmatpush1.xpose.msra.mxu0 0.0
    %2306 = vmatprep.subr.mxu0 0.0
    %2307 = vmatpush1.xpose.msra.mxu0 0.0
    %2308 = vmatprep.subr.mxu0 0.0
    %2309 = vmatpush1.xpose.msra.mxu0 0.0
    %2310 = vmatprep.subr.mxu0 0.0
    %2311 = vmatpush1.xpose.msra.mxu0 0.0
    %2312 = vmatprep.subr.mxu0 0.0
    %2313 = vmatpush1.xpose.msra.mxu0 0.0
    %2314 = vmatprep.subr.mxu0 0.0
    %2315 = vmatpush1.xpose.msra.mxu0 0.0
    %2316 = vmatprep.subr.mxu0 0.0
    %2317 = vmatpush1.xpose.msra.mxu0 0.0
    %2318 = vmatprep.subr.mxu0 0.0
    %2319 = vmatpush1.xpose.msra.mxu0 0.0
    %2320 = vmatprep.subr.mxu0 0.0
    %2321 = vmatpush1.xpose.msra.mxu0 0.0
    %2322 = vmatprep.subr.mxu0 0.0
    %2323 = vmatpush1.xpose.msra.mxu0 0.0
    %2324 = vmatprep.subr.mxu0 0.0
    %2325 = vmatpush1.xpose.msra.mxu0 0.0
    %2326 = vmatprep.subr.mxu0 0.0
    %2327 = vmatpush1.xpose.msra.mxu0 %v2294
    %2328 = vmatprep.subr.mxu0 0.0
    %2329 = vmatpush2.xpose.msra.mxu0 0.0
    %2330 = vmatprep.subr.mxu0 0.0
    %2331 = vmatpush2.xpose.msra.mxu0 0.0
    %2332 = vmatprep.subr.mxu0 0.0
    %2333 = vmatpush2.xpose.msra.mxu0 0.0
    %2334 = vmatprep.subr.mxu0 0.0
    %2335 = vmatpush2.xpose.msra.mxu0 0.0
    %2336 = vmatprep.subr.mxu0 0.0
    %2337 = vmatpush2.xpose.msra.mxu0 0.0
    %2338 = vmatprep.subr.mxu0 0.0
    %2339 = vmatpush2.xpose.msra.mxu0 0.0
    %2340 = vmatprep.subr.mxu0 0.0
    %2341 = vmatpush2.xpose.msra.mxu0 0.0
    %2342 = vmatprep.subr.mxu0 0.0
    %2343 = vmatpush2.xpose.msra.mxu0 0.0
    %2344 = vmatprep.subr.mxu0 0.0
    %2345 = vmatpush2.xpose.msra.mxu0 0.0
    %2346 = vmatprep.subr.mxu0 0.0
    %2347 = vmatpush2.xpose.msra.mxu0 0.0
    %2348 = vmatprep.subr.mxu0 0.0
    %2349 = vmatpush2.xpose.msra.mxu0 0.0
    %2350 = vmatprep.subr.mxu0 0.0
    %2351 = vmatpush2.xpose.msra.mxu0 0.0
    %2352 = vmatprep.subr.mxu0 0.0
    %2353 = vmatpush2.xpose.msra.mxu0 0.0
    %2354 = vmatprep.subr.mxu0 0.0
    %2355 = vmatpush2.xpose.msra.mxu0 0.0
    %2356 = vmatprep.subr.mxu0 0.0
    %2357 = vmatpush2.xpose.msra.mxu0 0.0
    %2358 = vmatprep.subr.mxu0 0.0
    %2359 = vmatpush2.xpose.msra.mxu0 0.0
    %2360 = vmatprep.mubr.f32.mxu0 0.0
    %2361 = vmatmul.mubr.f32.gmra.mxu0 %v2292
    %v2362 = vpop.f32.mrf.mxu0
    %v2363 = vadd.f32 0.0, %v2362
    %v2364 = vpop.f32.mrf.mxu0
    %2365 = vdwg.mxu0
    %2366 = vrot.lane.b32.xlu0 %v2029, 96
    %v2367 = vpop.permute.xlu0 %2366
    %v2368 = vsel %vm217, %v2033, 0
    %v2370 = vsel %vm217, %v2367, 0
    %2372 = vmatprep.subr.mxu0 0.0
    %2373 = vmatpush1.xpose.msra.mxu0 0.0
    %2374 = vmatprep.subr.mxu0 0.0
    %2375 = vmatpush1.xpose.msra.mxu0 0.0
    %2376 = vmatprep.subr.mxu0 0.0
    %2377 = vmatpush1.xpose.msra.mxu0 0.0
    %2378 = vmatprep.subr.mxu0 0.0
    %2379 = vmatpush1.xpose.msra.mxu0 0.0
    %2380 = vmatprep.subr.mxu0 0.0
    %2381 = vmatpush1.xpose.msra.mxu0 0.0
    %2382 = vmatprep.subr.mxu0 0.0
    %2383 = vmatpush1.xpose.msra.mxu0 0.0
    %2384 = vmatprep.subr.mxu0 0.0
    %2385 = vmatpush1.xpose.msra.mxu0 0.0
    %2386 = vmatprep.subr.mxu0 0.0
    %2387 = vmatpush1.xpose.msra.mxu0 0.0
    %2388 = vmatprep.subr.mxu0 0.0
    %2389 = vmatpush1.xpose.msra.mxu0 0.0
    %2390 = vmatprep.subr.mxu0 0.0
    %2391 = vmatpush1.xpose.msra.mxu0 0.0
    %2392 = vmatprep.subr.mxu0 0.0
    %2393 = vmatpush1.xpose.msra.mxu0 0.0
    %2394 = vmatprep.subr.mxu0 0.0
    %2395 = vmatpush1.xpose.msra.mxu0 0.0
    %2396 = vmatprep.subr.mxu0 0.0
    %2397 = vmatpush1.xpose.msra.mxu0 0.0
    %2398 = vmatprep.subr.mxu0 0.0
    %2399 = vmatpush1.xpose.msra.mxu0 0.0
    %2400 = vmatprep.subr.mxu0 0.0
    %2401 = vmatpush1.xpose.msra.mxu0 0.0
    %2402 = vmatprep.subr.mxu0 0.0
    %2403 = vmatpush1.xpose.msra.mxu0 %v2370
    %2404 = vmatprep.subr.mxu0 0.0
    %2405 = vmatpush2.xpose.msra.mxu0 0.0
    %2406 = vmatprep.subr.mxu0 0.0
    %2407 = vmatpush2.xpose.msra.mxu0 0.0
    %2408 = vmatprep.subr.mxu0 0.0
    %2409 = vmatpush2.xpose.msra.mxu0 0.0
    %2410 = vmatprep.subr.mxu0 0.0
    %2411 = vmatpush2.xpose.msra.mxu0 0.0
    %2412 = vmatprep.subr.mxu0 0.0
    %2413 = vmatpush2.xpose.msra.mxu0 0.0
    %2414 = vmatprep.subr.mxu0 0.0
    %2415 = vmatpush2.xpose.msra.mxu0 0.0
    %2416 = vmatprep.subr.mxu0 0.0
    %2417 = vmatpush2.xpose.msra.mxu0 0.0
    %2418 = vmatprep.subr.mxu0 0.0
    %2419 = vmatpush2.xpose.msra.mxu0 0.0
    %2420 = vmatprep.subr.mxu0 0.0
    %2421 = vmatpush2.xpose.msra.mxu0 0.0
    %2422 = vmatprep.subr.mxu0 0.0
    %2423 = vmatpush2.xpose.msra.mxu0 0.0
    %2424 = vmatprep.subr.mxu0 0.0
    %2425 = vmatpush2.xpose.msra.mxu0 0.0
    %2426 = vmatprep.subr.mxu0 0.0
    %2427 = vmatpush2.xpose.msra.mxu0 0.0
    %2428 = vmatprep.subr.mxu0 0.0
    %2429 = vmatpush2.xpose.msra.mxu0 0.0
    %2430 = vmatprep.subr.mxu0 0.0
    %2431 = vmatpush2.xpose.msra.mxu0 0.0
    %2432 = vmatprep.subr.mxu0 0.0
    %2433 = vmatpush2.xpose.msra.mxu0 0.0
    %2434 = vmatprep.subr.mxu0 0.0
    %2435 = vmatpush2.xpose.msra.mxu0 0.0
    %2436 = vmatprep.mubr.f32.mxu0 0.0
    %2437 = vmatmul.mubr.f32.gmra.mxu0 %v2368
    %v2438 = vpop.f32.mrf.mxu0
    %v2439 = vadd.f32 0.0, %v2438
    %v2440 = vpop.f32.mrf.mxu0
    %2441 = vdwg.mxu0
    %2442 = vrot.lane.b32.xlu0 %v2053, 96
    %v2443 = vpop.permute.xlu0 %2442
    %v2444 = vsel %vm217, %v2039, 0
    %v2446 = vsel %vm217, %v2443, 0
    %2448 = vmatprep.subr.mxu0 0.0
    %2449 = vmatpush1.xpose.msra.mxu0 0.0
    %2450 = vmatprep.subr.mxu0 0.0
    %2451 = vmatpush1.xpose.msra.mxu0 0.0
    %2452 = vmatprep.subr.mxu0 0.0
    %2453 = vmatpush1.xpose.msra.mxu0 0.0
    %2454 = vmatprep.subr.mxu0 0.0
    %2455 = vmatpush1.xpose.msra.mxu0 0.0
    %2456 = vmatprep.subr.mxu0 0.0
    %2457 = vmatpush1.xpose.msra.mxu0 0.0
    %2458 = vmatprep.subr.mxu0 0.0
    %2459 = vmatpush1.xpose.msra.mxu0 0.0
    %2460 = vmatprep.subr.mxu0 0.0
    %2461 = vmatpush1.xpose.msra.mxu0 0.0
    %2462 = vmatprep.subr.mxu0 0.0
    %2463 = vmatpush1.xpose.msra.mxu0 0.0
    %2464 = vmatprep.subr.mxu0 0.0
    %2465 = vmatpush1.xpose.msra.mxu0 0.0
    %2466 = vmatprep.subr.mxu0 0.0
    %2467 = vmatpush1.xpose.msra.mxu0 0.0
    %2468 = vmatprep.subr.mxu0 0.0
    %2469 = vmatpush1.xpose.msra.mxu0 0.0
    %2470 = vmatprep.subr.mxu0 0.0
    %2471 = vmatpush1.xpose.msra.mxu0 0.0
    %2472 = vmatprep.subr.mxu0 0.0
    %2473 = vmatpush1.xpose.msra.mxu0 0.0
    %2474 = vmatprep.subr.mxu0 0.0
    %2475 = vmatpush1.xpose.msra.mxu0 0.0
    %2476 = vmatprep.subr.mxu0 0.0
    %2477 = vmatpush1.xpose.msra.mxu0 0.0
    %2478 = vmatprep.subr.mxu0 0.0
    %2479 = vmatpush1.xpose.msra.mxu0 %v2446
    %2480 = vmatprep.subr.mxu0 0.0
    %2481 = vmatpush2.xpose.msra.mxu0 0.0
    %2482 = vmatprep.subr.mxu0 0.0
    %2483 = vmatpush2.xpose.msra.mxu0 0.0
    %2484 = vmatprep.subr.mxu0 0.0
    %2485 = vmatpush2.xpose.msra.mxu0 0.0
    %2486 = vmatprep.subr.mxu0 0.0
    %2487 = vmatpush2.xpose.msra.mxu0 0.0
    %2488 = vmatprep.subr.mxu0 0.0
    %2489 = vmatpush2.xpose.msra.mxu0 0.0
    %2490 = vmatprep.subr.mxu0 0.0
    %2491 = vmatpush2.xpose.msra.mxu0 0.0
    %2492 = vmatprep.subr.mxu0 0.0
    %2493 = vmatpush2.xpose.msra.mxu0 0.0
    %2494 = vmatprep.subr.mxu0 0.0
    %2495 = vmatpush2.xpose.msra.mxu0 0.0
    %2496 = vmatprep.subr.mxu0 0.0
    %2497 = vmatpush2.xpose.msra.mxu0 0.0
    %2498 = vmatprep.subr.mxu0 0.0
    %2499 = vmatpush2.xpose.msra.mxu0 0.0
    %2500 = vmatprep.subr.mxu0 0.0
    %2501 = vmatpush2.xpose.msra.mxu0 0.0
    %2502 = vmatprep.subr.mxu0 0.0
    %2503 = vmatpush2.xpose.msra.mxu0 0.0
    %2504 = vmatprep.subr.mxu0 0.0
    %2505 = vmatpush2.xpose.msra.mxu0 0.0
    %2506 = vmatprep.subr.mxu0 0.0
    %2507 = vmatpush2.xpose.msra.mxu0 0.0
    %2508 = vmatprep.subr.mxu0 0.0
    %2509 = vmatpush2.xpose.msra.mxu0 0.0
    %2510 = vmatprep.subr.mxu0 0.0
    %2511 = vmatpush2.xpose.msra.mxu0 0.0
    %2512 = vmatprep.mubr.f32.mxu0 0.0
    %2513 = vmatmul.mubr.f32.gmra.mxu0 %v2444
    %v2514 = vpop.f32.mrf.mxu0
    %v2515 = vadd.f32 0.0, %v2514
    %v2516 = vpop.f32.mrf.mxu0
    %2517 = vdwg.mxu0
    %2518 = vrot.lane.b32.xlu0 %v2057, 96
    %v2519 = vpop.permute.xlu0 %2518
    %v2520 = vsel %vm217, %v2043, 0
    %v2522 = vsel %vm217, %v2519, 0
    %2524 = vmatprep.subr.mxu0 0.0
    %2525 = vmatpush1.xpose.msra.mxu0 0.0
    %2526 = vmatprep.subr.mxu0 0.0
    %2527 = vmatpush1.xpose.msra.mxu0 0.0
    %2528 = vmatprep.subr.mxu0 0.0
    %2529 = vmatpush1.xpose.msra.mxu0 0.0
    %2530 = vmatprep.subr.mxu0 0.0
    %2531 = vmatpush1.xpose.msra.mxu0 0.0
    %2532 = vmatprep.subr.mxu0 0.0
    %2533 = vmatpush1.xpose.msra.mxu0 0.0
    %2534 = vmatprep.subr.mxu0 0.0
    %2535 = vmatpush1.xpose.msra.mxu0 0.0
    %2536 = vmatprep.subr.mxu0 0.0
    %2537 = vmatpush1.xpose.msra.mxu0 0.0
    %2538 = vmatprep.subr.mxu0 0.0
    %2539 = vmatpush1.xpose.msra.mxu0 0.0
    %2540 = vmatprep.subr.mxu0 0.0
    %2541 = vmatpush1.xpose.msra.mxu0 0.0
    %2542 = vmatprep.subr.mxu0 0.0
    %2543 = vmatpush1.xpose.msra.mxu0 0.0
    %2544 = vmatprep.subr.mxu0 0.0
    %2545 = vmatpush1.xpose.msra.mxu0 0.0
    %2546 = vmatprep.subr.mxu0 0.0
    %2547 = vmatpush1.xpose.msra.mxu0 0.0
    %2548 = vmatprep.subr.mxu0 0.0
    %2549 = vmatpush1.xpose.msra.mxu0 0.0
    %2550 = vmatprep.subr.mxu0 0.0
    %2551 = vmatpush1.xpose.msra.mxu0 0.0
    %2552 = vmatprep.subr.mxu0 0.0
    %2553 = vmatpush1.xpose.msra.mxu0 0.0
    %2554 = vmatprep.subr.mxu0 0.0
    %2555 = vmatpush1.xpose.msra.mxu0 %v2522
    %2556 = vmatprep.subr.mxu0 0.0
    %2557 = vmatpush2.xpose.msra.mxu0 0.0
    %2558 = vmatprep.subr.mxu0 0.0
    %2559 = vmatpush2.xpose.msra.mxu0 0.0
    %2560 = vmatprep.subr.mxu0 0.0
    %2561 = vmatpush2.xpose.msra.mxu0 0.0
    %2562 = vmatprep.subr.mxu0 0.0
    %2563 = vmatpush2.xpose.msra.mxu0 0.0
    %2564 = vmatprep.subr.mxu0 0.0
    %2565 = vmatpush2.xpose.msra.mxu0 0.0
    %2566 = vmatprep.subr.mxu0 0.0
    %2567 = vmatpush2.xpose.msra.mxu0 0.0
    %2568 = vmatprep.subr.mxu0 0.0
    %2569 = vmatpush2.xpose.msra.mxu0 0.0
    %2570 = vmatprep.subr.mxu0 0.0
    %2571 = vmatpush2.xpose.msra.mxu0 0.0
    %2572 = vmatprep.subr.mxu0 0.0
    %2573 = vmatpush2.xpose.msra.mxu0 0.0
    %2574 = vmatprep.subr.mxu0 0.0
    %2575 = vmatpush2.xpose.msra.mxu0 0.0
    %2576 = vmatprep.subr.mxu0 0.0
    %2577 = vmatpush2.xpose.msra.mxu0 0.0
    %2578 = vmatprep.subr.mxu0 0.0
    %2579 = vmatpush2.xpose.msra.mxu0 0.0
    %2580 = vmatprep.subr.mxu0 0.0
    %2581 = vmatpush2.xpose.msra.mxu0 0.0
    %2582 = vmatprep.subr.mxu0 0.0
    %2583 = vmatpush2.xpose.msra.mxu0 0.0
    %2584 = vmatprep.subr.mxu0 0.0
    %2585 = vmatpush2.xpose.msra.mxu0 0.0
    %2586 = vmatprep.subr.mxu0 0.0
    %2587 = vmatpush2.xpose.msra.mxu0 0.0
    %2588 = vmatprep.mubr.f32.mxu0 0.0
    %2589 = vmatmul.mubr.f32.gmra.mxu0 %v2520
    %v2590 = vpop.f32.mrf.mxu0
    %v2591 = vadd.f32 0.0, %v2590
    %v2592 = vpop.f32.mrf.mxu0
    %2593 = vdwg.mxu0
    %2594 = vrot.lane.b32.xlu0 %v2061, 96
    %v2595 = vpop.permute.xlu0 %2594
    %v2596 = vsel %vm217, %v2047, 0
    %v2598 = vsel %vm217, %v2595, 0
    %2600 = vmatprep.subr.mxu0 0.0
    %2601 = vmatpush1.xpose.msra.mxu0 0.0
    %2602 = vmatprep.subr.mxu0 0.0
    %2603 = vmatpush1.xpose.msra.mxu0 0.0
    %2604 = vmatprep.subr.mxu0 0.0
    %2605 = vmatpush1.xpose.msra.mxu0 0.0
    %2606 = vmatprep.subr.mxu0 0.0
    %2607 = vmatpush1.xpose.msra.mxu0 0.0
    %2608 = vmatprep.subr.mxu0 0.0
    %2609 = vmatpush1.xpose.msra.mxu0 0.0
    %2610 = vmatprep.subr.mxu0 0.0
    %2611 = vmatpush1.xpose.msra.mxu0 0.0
    %2612 = vmatprep.subr.mxu0 0.0
    %2613 = vmatpush1.xpose.msra.mxu0 0.0
    %2614 = vmatprep.subr.mxu0 0.0
    %2615 = vmatpush1.xpose.msra.mxu0 0.0
    %2616 = vmatprep.subr.mxu0 0.0
    %2617 = vmatpush1.xpose.msra.mxu0 0.0
    %2618 = vmatprep.subr.mxu0 0.0
    %2619 = vmatpush1.xpose.msra.mxu0 0.0
    %2620 = vmatprep.subr.mxu0 0.0
    %2621 = vmatpush1.xpose.msra.mxu0 0.0
    %2622 = vmatprep.subr.mxu0 0.0
    %2623 = vmatpush1.xpose.msra.mxu0 0.0
    %2624 = vmatprep.subr.mxu0 0.0
    %2625 = vmatpush1.xpose.msra.mxu0 0.0
    %2626 = vmatprep.subr.mxu0 0.0
    %2627 = vmatpush1.xpose.msra.mxu0 0.0
    %2628 = vmatprep.subr.mxu0 0.0
    %2629 = vmatpush1.xpose.msra.mxu0 0.0
    %2630 = vmatprep.subr.mxu0 0.0
    %2631 = vmatpush1.xpose.msra.mxu0 %v2598
    %2632 = vmatprep.subr.mxu0 0.0
    %2633 = vmatpush2.xpose.msra.mxu0 0.0
    %2634 = vmatprep.subr.mxu0 0.0
    %2635 = vmatpush2.xpose.msra.mxu0 0.0
    %2636 = vmatprep.subr.mxu0 0.0
    %2637 = vmatpush2.xpose.msra.mxu0 0.0
    %2638 = vmatprep.subr.mxu0 0.0
    %2639 = vmatpush2.xpose.msra.mxu0 0.0
    %2640 = vmatprep.subr.mxu0 0.0
    %2641 = vmatpush2.xpose.msra.mxu0 0.0
    %2642 = vmatprep.subr.mxu0 0.0
    %2643 = vmatpush2.xpose.msra.mxu0 0.0
    %2644 = vmatprep.subr.mxu0 0.0
    %2645 = vmatpush2.xpose.msra.mxu0 0.0
    %2646 = vmatprep.subr.mxu0 0.0
    %2647 = vmatpush2.xpose.msra.mxu0 0.0
    %2648 = vmatprep.subr.mxu0 0.0
    %2649 = vmatpush2.xpose.msra.mxu0 0.0
    %2650 = vmatprep.subr.mxu0 0.0
    %2651 = vmatpush2.xpose.msra.mxu0 0.0
    %2652 = vmatprep.subr.mxu0 0.0
    %2653 = vmatpush2.xpose.msra.mxu0 0.0
    %2654 = vmatprep.subr.mxu0 0.0
    %2655 = vmatpush2.xpose.msra.mxu0 0.0
    %2656 = vmatprep.subr.mxu0 0.0
    %2657 = vmatpush2.xpose.msra.mxu0 0.0
    %2658 = vmatprep.subr.mxu0 0.0
    %2659 = vmatpush2.xpose.msra.mxu0 0.0
    %2660 = vmatprep.subr.mxu0 0.0
    %2661 = vmatpush2.xpose.msra.mxu0 0.0
    %2662 = vmatprep.subr.mxu0 0.0
    %2663 = vmatpush2.xpose.msra.mxu0 0.0
    %2664 = vmatprep.mubr.f32.mxu0 0.0
    %2665 = vmatmul.mubr.f32.gmra.mxu0 %v2596
    %v2666 = vpop.f32.mrf.mxu0
    %v2667 = vadd.f32 0.0, %v2666
    %v2668 = vpop.f32.mrf.mxu0
    %2669 = vdwg.mxu0
    %v2670 = vsel %vm217, %v2135, -inf
    %2671 = vmax.xlane.f32.xlu0 %v2670
    %v2672 = vpop.xlane.xlu0 %2671
    %v2673 = vsel %vm217, %v2211, -inf
    %2674 = vmax.xlane.f32.xlu0 %v2673
    %v2675 = vpop.xlane.xlu0 %2674
    %v2676 = vsel %vm217, %v2287, -inf
    %2677 = vmax.xlane.f32.xlu0 %v2676
    %v2678 = vpop.xlane.xlu0 %2677
    %v2679 = vsel %vm217, %v2363, -inf
    %2680 = vmax.xlane.f32.xlu0 %v2679
    %v2681 = vpop.xlane.xlu0 %2680
    %v2682 = vsel %vm217, %v2439, -inf
    %2683 = vmax.xlane.f32.xlu0 %v2682
    %v2684 = vpop.xlane.xlu0 %2683
    %v2685 = vsel %vm217, %v2515, -inf
    %2686 = vmax.xlane.f32.xlu0 %v2685
    %v2687 = vpop.xlane.xlu0 %2686
    %v2688 = vsel %vm217, %v2591, -inf
    %2689 = vmax.xlane.f32.xlu0 %v2688
    %v2690 = vpop.xlane.xlu0 %2689
    %v2691 = vsel %vm217, %v2667, -inf
    %2692 = vmax.xlane.f32.xlu0 %v2691
    %v2693 = vpop.xlane.xlu0 %2692
    %v2694 = vsub.f32 %v2135, %v2672
    %v2695 = vsub.f32 %v2211, %v2675
    %v2696 = vsub.f32 %v2287, %v2678
    %v2697 = vsub.f32 %v2363, %v2681
    %v2698 = vsub.f32 %v2439, %v2684
    %v2699 = vsub.f32 %v2515, %v2687
    %v2700 = vsub.f32 %v2591, %v2690
    %v2701 = vsub.f32 %v2667, %v2693
    %v2702 = vmul.f32 %v2694, 1.442695
    %v2703 = vpow.pop %v2702
    %v2704 = vmul.f32 %v2695, 1.442695
    %v2705 = vpow.pop %v2704
    %v2706 = vmul.f32 %v2696, 1.442695
    %v2707 = vpow.pop %v2706
    %v2708 = vmul.f32 %v2697, 1.442695
    %v2709 = vpow.pop %v2708
    %v2710 = vmul.f32 %v2698, 1.442695
    %v2711 = vpow.pop %v2710
    %v2712 = vmul.f32 %v2699, 1.442695
    %v2713 = vpow.pop %v2712
    %v2714 = vmul.f32 %v2700, 1.442695
    %v2715 = vpow.pop %v2714
    %v2716 = vmul.f32 %v2701, 1.442695
    %v2717 = vpow.pop %v2716
    %v2718 = vsel %vm217, %v2703, 0.0
    %2719 = vadd.xlane.f32.xlu0 %v2718
    %v2720 = vpop.xlane.xlu0 %2719
    %v2721 = vsel %vm217, %v2705, 0.0
    %2722 = vadd.xlane.f32.xlu0 %v2721
    %v2723 = vpop.xlane.xlu0 %2722
    %v2724 = vsel %vm217, %v2707, 0.0
    %2725 = vadd.xlane.f32.xlu0 %v2724
    %v2726 = vpop.xlane.xlu0 %2725
    %v2727 = vsel %vm217, %v2709, 0.0
    %2728 = vadd.xlane.f32.xlu0 %v2727
    %v2729 = vpop.xlane.xlu0 %2728
    %v2730 = vsel %vm217, %v2711, 0.0
    %2731 = vadd.xlane.f32.xlu0 %v2730
    %v2732 = vpop.xlane.xlu0 %2731
    %v2733 = vsel %vm217, %v2713, 0.0
    %2734 = vadd.xlane.f32.xlu0 %v2733
    %v2735 = vpop.xlane.xlu0 %2734
    %v2736 = vsel %vm217, %v2715, 0.0
    %2737 = vadd.xlane.f32.xlu0 %v2736
    %v2738 = vpop.xlane.xlu0 %2737
    %v2739 = vsel %vm217, %v2717, 0.0
    %2740 = vadd.xlane.f32.xlu0 %v2739
    %v2741 = vpop.xlane.xlu0 %2740
    %v2742 = vrcp.pop %v2720
    %v2743 = vrcp.pop %v2723
    %v2744 = vrcp.pop %v2726
    %v2745 = vrcp.pop %v2729
    %v2746 = vrcp.pop %v2732
    %v2747 = vrcp.pop %v2735
    %v2748 = vrcp.pop %v2738
    %v2749 = vrcp.pop %v2741
    %v2750 = vmul.f32 %v2703, %v2742
    %v2751 = vmul.f32 %v2705, %v2743
    %v2752 = vmul.f32 %v2707, %v2744
    %v2753 = vmul.f32 %v2709, %v2745
    %v2754 = vmul.f32 %v2711, %v2746
    %v2755 = vmul.f32 %v2713, %v2747
    %v2756 = vmul.f32 %v2715, %v2748
    %v2757 = vmul.f32 %v2717, %v2749
    %2758 = vrot.lane.b32.xlu0 %v2024, 64
    %v2759 = vpop.permute.xlu0 %2758
    %v2762 = vsel %vm217, %v2750, 0
    %2764 = vmatprep.subr.mxu0 0.0
    %2765 = vmatpush1.msra.mxu0 0.0
    %2766 = vmatprep.subr.mxu0 0.0
    %2767 = vmatpush1.msra.mxu0 0.0
    %2768 = vmatprep.subr.mxu0 0.0
    %2769 = vmatpush1.msra.mxu0 0.0
    %2770 = vmatprep.subr.mxu0 0.0
    %2771 = vmatpush1.msra.mxu0 0.0
    %2772 = vmatprep.subr.mxu0 0.0
    %2773 = vmatpush1.msra.mxu0 0.0
    %2774 = vmatprep.subr.mxu0 0.0
    %2775 = vmatpush1.msra.mxu0 0.0
    %2776 = vmatprep.subr.mxu0 0.0
    %2777 = vmatpush1.msra.mxu0 0.0
    %2778 = vmatprep.subr.mxu0 0.0
    %2779 = vmatpush1.msra.mxu0 0.0
    %2780 = vmatprep.subr.mxu0 0.0
    %2781 = vmatpush1.msra.mxu0 0.0
    %2782 = vmatprep.subr.mxu0 0.0
    %2783 = vmatpush1.msra.mxu0 0.0
    %2784 = vmatprep.subr.mxu0 0.0
    %2785 = vmatpush1.msra.mxu0 0.0
    %2786 = vmatprep.subr.mxu0 0.0
    %2787 = vmatpush1.msra.mxu0 0.0
    %2788 = vmatprep.subr.mxu0 0.0
    %2789 = vmatpush1.msra.mxu0 0.0
    %2790 = vmatprep.subr.mxu0 0.0
    %2791 = vmatpush1.msra.mxu0 0.0
    %2792 = vmatprep.subr.mxu0 0.0
    %2793 = vmatpush1.msra.mxu0 0.0
    %2794 = vmatprep.subr.mxu0 0.0
    %2795 = vmatpush1.msra.mxu0 %v2759
    %2796 = vmatprep.subr.mxu0 0.0
    %2797 = vmatpush2.msra.mxu0 0.0
    %2798 = vmatprep.subr.mxu0 0.0
    %2799 = vmatpush2.msra.mxu0 0.0
    %2800 = vmatprep.subr.mxu0 0.0
    %2801 = vmatpush2.msra.mxu0 0.0
    %2802 = vmatprep.subr.mxu0 0.0
    %2803 = vmatpush2.msra.mxu0 0.0
    %2804 = vmatprep.subr.mxu0 0.0
    %2805 = vmatpush2.msra.mxu0 0.0
    %2806 = vmatprep.subr.mxu0 0.0
    %2807 = vmatpush2.msra.mxu0 0.0
    %2808 = vmatprep.subr.mxu0 0.0
    %2809 = vmatpush2.msra.mxu0 0.0
    %2810 = vmatprep.subr.mxu0 0.0
    %2811 = vmatpush2.msra.mxu0 0.0
    %2812 = vmatprep.subr.mxu0 0.0
    %2813 = vmatpush2.msra.mxu0 0.0
    %2814 = vmatprep.subr.mxu0 0.0
    %2815 = vmatpush2.msra.mxu0 0.0
    %2816 = vmatprep.subr.mxu0 0.0
    %2817 = vmatpush2.msra.mxu0 0.0
    %2818 = vmatprep.subr.mxu0 0.0
    %2819 = vmatpush2.msra.mxu0 0.0
    %2820 = vmatprep.subr.mxu0 0.0
    %2821 = vmatpush2.msra.mxu0 0.0
    %2822 = vmatprep.subr.mxu0 0.0
    %2823 = vmatpush2.msra.mxu0 0.0
    %2824 = vmatprep.subr.mxu0 0.0
    %2825 = vmatpush2.msra.mxu0 0.0
    %2826 = vmatprep.subr.mxu0 0.0
    %2827 = vmatpush2.msra.mxu0 0.0
    %2828 = vmatprep.mubr.f32.mxu0 0.0
    %2829 = vmatmul.mubr.f32.gmra.mxu0 %v2762
    %v2830 = vpop.f32.mrf.mxu0
    %v2831 = vadd.f32 0.0, %v2830
    %v2832 = vpop.f32.mrf.mxu0
    %2833 = vdwg.mxu0
    %2834 = vrot.lane.b32.xlu0 %v2051, 64
    %v2835 = vpop.permute.xlu0 %2834
    %v2838 = vsel %vm217, %v2751, 0
    %2840 = vmatprep.subr.mxu0 0.0
    %2841 = vmatpush1.msra.mxu0 0.0
    %2842 = vmatprep.subr.mxu0 0.0
    %2843 = vmatpush1.msra.mxu0 0.0
    %2844 = vmatprep.subr.mxu0 0.0
    %2845 = vmatpush1.msra.mxu0 0.0
    %2846 = vmatprep.subr.mxu0 0.0
    %2847 = vmatpush1.msra.mxu0 0.0
    %2848 = vmatprep.subr.mxu0 0.0
    %2849 = vmatpush1.msra.mxu0 0.0
    %2850 = vmatprep.subr.mxu0 0.0
    %2851 = vmatpush1.msra.mxu0 0.0
    %2852 = vmatprep.subr.mxu0 0.0
    %2853 = vmatpush1.msra.mxu0 0.0
    %2854 = vmatprep.subr.mxu0 0.0
    %2855 = vmatpush1.msra.mxu0 0.0
    %2856 = vmatprep.subr.mxu0 0.0
    %2857 = vmatpush1.msra.mxu0 0.0
    %2858 = vmatprep.subr.mxu0 0.0
    %2859 = vmatpush1.msra.mxu0 0.0
    %2860 = vmatprep.subr.mxu0 0.0
    %2861 = vmatpush1.msra.mxu0 0.0
    %2862 = vmatprep.subr.mxu0 0.0
    %2863 = vmatpush1.msra.mxu0 0.0
    %2864 = vmatprep.subr.mxu0 0.0
    %2865 = vmatpush1.msra.mxu0 0.0
    %2866 = vmatprep.subr.mxu0 0.0
    %2867 = vmatpush1.msra.mxu0 0.0
    %2868 = vmatprep.subr.mxu0 0.0
    %2869 = vmatpush1.msra.mxu0 0.0
    %2870 = vmatprep.subr.mxu0 0.0
    %2871 = vmatpush1.msra.mxu0 %v2835
    %2872 = vmatprep.subr.mxu0 0.0
    %2873 = vmatpush2.msra.mxu0 0.0
    %2874 = vmatprep.subr.mxu0 0.0
    %2875 = vmatpush2.msra.mxu0 0.0
    %2876 = vmatprep.subr.mxu0 0.0
    %2877 = vmatpush2.msra.mxu0 0.0
    %2878 = vmatprep.subr.mxu0 0.0
    %2879 = vmatpush2.msra.mxu0 0.0
    %2880 = vmatprep.subr.mxu0 0.0
    %2881 = vmatpush2.msra.mxu0 0.0
    %2882 = vmatprep.subr.mxu0 0.0
    %2883 = vmatpush2.msra.mxu0 0.0
    %2884 = vmatprep.subr.mxu0 0.0
    %2885 = vmatpush2.msra.mxu0 0.0
    %2886 = vmatprep.subr.mxu0 0.0
    %2887 = vmatpush2.msra.mxu0 0.0
    %2888 = vmatprep.subr.mxu0 0.0
    %2889 = vmatpush2.msra.mxu0 0.0
    %2890 = vmatprep.subr.mxu0 0.0
    %2891 = vmatpush2.msra.mxu0 0.0
    %2892 = vmatprep.subr.mxu0 0.0
    %2893 = vmatpush2.msra.mxu0 0.0
    %2894 = vmatprep.subr.mxu0 0.0
    %2895 = vmatpush2.msra.mxu0 0.0
    %2896 = vmatprep.subr.mxu0 0.0
    %2897 = vmatpush2.msra.mxu0 0.0
    %2898 = vmatprep.subr.mxu0 0.0
    %2899 = vmatpush2.msra.mxu0 0.0
    %2900 = vmatprep.subr.mxu0 0.0
    %2901 = vmatpush2.msra.mxu0 0.0
    %2902 = vmatprep.subr.mxu0 0.0
    %2903 = vmatpush2.msra.mxu0 0.0
    %2904 = vmatprep.mubr.f32.mxu0 0.0
    %2905 = vmatmul.mubr.f32.gmra.mxu0 %v2838
    %v2906 = vpop.f32.mrf.mxu0
    %v2907 = vadd.f32 0.0, %v2906
    %v2908 = vpop.f32.mrf.mxu0
    %2909 = vdwg.mxu0
    %2910 = vrot.lane.b32.xlu0 %v2055, 64
    %v2911 = vpop.permute.xlu0 %2910
    %v2914 = vsel %vm217, %v2752, 0
    %2916 = vmatprep.subr.mxu0 0.0
    %2917 = vmatpush1.msra.mxu0 0.0
    %2918 = vmatprep.subr.mxu0 0.0
    %2919 = vmatpush1.msra.mxu0 0.0
    %2920 = vmatprep.subr.mxu0 0.0
    %2921 = vmatpush1.msra.mxu0 0.0
    %2922 = vmatprep.subr.mxu0 0.0
    %2923 = vmatpush1.msra.mxu0 0.0
    %2924 = vmatprep.subr.mxu0 0.0
    %2925 = vmatpush1.msra.mxu0 0.0
    %2926 = vmatprep.subr.mxu0 0.0
    %2927 = vmatpush1.msra.mxu0 0.0
    %2928 = vmatprep.subr.mxu0 0.0
    %2929 = vmatpush1.msra.mxu0 0.0
    %2930 = vmatprep.subr.mxu0 0.0
    %2931 = vmatpush1.msra.mxu0 0.0
    %2932 = vmatprep.subr.mxu0 0.0
    %2933 = vmatpush1.msra.mxu0 0.0
    %2934 = vmatprep.subr.mxu0 0.0
    %2935 = vmatpush1.msra.mxu0 0.0
    %2936 = vmatprep.subr.mxu0 0.0
    %2937 = vmatpush1.msra.mxu0 0.0
    %2938 = vmatprep.subr.mxu0 0.0
    %2939 = vmatpush1.msra.mxu0 0.0
    %2940 = vmatprep.subr.mxu0 0.0
    %2941 = vmatpush1.msra.mxu0 0.0
    %2942 = vmatprep.subr.mxu0 0.0
    %2943 = vmatpush1.msra.mxu0 0.0
    %2944 = vmatprep.subr.mxu0 0.0
    %2945 = vmatpush1.msra.mxu0 0.0
    %2946 = vmatprep.subr.mxu0 0.0
    %2947 = vmatpush1.msra.mxu0 %v2911
    %2948 = vmatprep.subr.mxu0 0.0
    %2949 = vmatpush2.msra.mxu0 0.0
    %2950 = vmatprep.subr.mxu0 0.0
    %2951 = vmatpush2.msra.mxu0 0.0
    %2952 = vmatprep.subr.mxu0 0.0
    %2953 = vmatpush2.msra.mxu0 0.0
    %2954 = vmatprep.subr.mxu0 0.0
    %2955 = vmatpush2.msra.mxu0 0.0
    %2956 = vmatprep.subr.mxu0 0.0
    %2957 = vmatpush2.msra.mxu0 0.0
    %2958 = vmatprep.subr.mxu0 0.0
    %2959 = vmatpush2.msra.mxu0 0.0
    %2960 = vmatprep.subr.mxu0 0.0
    %2961 = vmatpush2.msra.mxu0 0.0
    %2962 = vmatprep.subr.mxu0 0.0
    %2963 = vmatpush2.msra.mxu0 0.0
    %2964 = vmatprep.subr.mxu0 0.0
    %2965 = vmatpush2.msra.mxu0 0.0
    %2966 = vmatprep.subr.mxu0 0.0
    %2967 = vmatpush2.msra.mxu0 0.0
    %2968 = vmatprep.subr.mxu0 0.0
    %2969 = vmatpush2.msra.mxu0 0.0
    %2970 = vmatprep.subr.mxu0 0.0
    %2971 = vmatpush2.msra.mxu0 0.0
    %2972 = vmatprep.subr.mxu0 0.0
    %2973 = vmatpush2.msra.mxu0 0.0
    %2974 = vmatprep.subr.mxu0 0.0
    %2975 = vmatpush2.msra.mxu0 0.0
    %2976 = vmatprep.subr.mxu0 0.0
    %2977 = vmatpush2.msra.mxu0 0.0
    %2978 = vmatprep.subr.mxu0 0.0
    %2979 = vmatpush2.msra.mxu0 0.0
    %2980 = vmatprep.mubr.f32.mxu0 0.0
    %2981 = vmatmul.mubr.f32.gmra.mxu0 %v2914
    %v2982 = vpop.f32.mrf.mxu0
    %v2983 = vadd.f32 0.0, %v2982
    %v2984 = vpop.f32.mrf.mxu0
    %2985 = vdwg.mxu0
    %2986 = vrot.lane.b32.xlu0 %v2059, 64
    %v2987 = vpop.permute.xlu0 %2986
    %v2990 = vsel %vm217, %v2753, 0
    %2992 = vmatprep.subr.mxu0 0.0
    %2993 = vmatpush1.msra.mxu0 0.0
    %2994 = vmatprep.subr.mxu0 0.0
    %2995 = vmatpush1.msra.mxu0 0.0
    %2996 = vmatprep.subr.mxu0 0.0
    %2997 = vmatpush1.msra.mxu0 0.0
    %2998 = vmatprep.subr.mxu0 0.0
    %2999 = vmatpush1.msra.mxu0 0.0
    %3000 = vmatprep.subr.mxu0 0.0
    %3001 = vmatpush1.msra.mxu0 0.0
    %3002 = vmatprep.subr.mxu0 0.0
    %3003 = vmatpush1.msra.mxu0 0.0
    %3004 = vmatprep.subr.mxu0 0.0
    %3005 = vmatpush1.msra.mxu0 0.0
    %3006 = vmatprep.subr.mxu0 0.0
    %3007 = vmatpush1.msra.mxu0 0.0
    %3008 = vmatprep.subr.mxu0 0.0
    %3009 = vmatpush1.msra.mxu0 0.0
    %3010 = vmatprep.subr.mxu0 0.0
    %3011 = vmatpush1.msra.mxu0 0.0
    %3012 = vmatprep.subr.mxu0 0.0
    %3013 = vmatpush1.msra.mxu0 0.0
    %3014 = vmatprep.subr.mxu0 0.0
    %3015 = vmatpush1.msra.mxu0 0.0
    %3016 = vmatprep.subr.mxu0 0.0
    %3017 = vmatpush1.msra.mxu0 0.0
    %3018 = vmatprep.subr.mxu0 0.0
    %3019 = vmatpush1.msra.mxu0 0.0
    %3020 = vmatprep.subr.mxu0 0.0
    %3021 = vmatpush1.msra.mxu0 0.0
    %3022 = vmatprep.subr.mxu0 0.0
    %3023 = vmatpush1.msra.mxu0 %v2987
    %3024 = vmatprep.subr.mxu0 0.0
    %3025 = vmatpush2.msra.mxu0 0.0
    %3026 = vmatprep.subr.mxu0 0.0
    %3027 = vmatpush2.msra.mxu0 0.0
    %3028 = vmatprep.subr.mxu0 0.0
    %3029 = vmatpush2.msra.mxu0 0.0
    %3030 = vmatprep.subr.mxu0 0.0
    %3031 = vmatpush2.msra.mxu0 0.0
    %3032 = vmatprep.subr.mxu0 0.0
    %3033 = vmatpush2.msra.mxu0 0.0
    %3034 = vmatprep.subr.mxu0 0.0
    %3035 = vmatpush2.msra.mxu0 0.0
    %3036 = vmatprep.subr.mxu0 0.0
    %3037 = vmatpush2.msra.mxu0 0.0
    %3038 = vmatprep.subr.mxu0 0.0
    %3039 = vmatpush2.msra.mxu0 0.0
    %3040 = vmatprep.subr.mxu0 0.0
    %3041 = vmatpush2.msra.mxu0 0.0
    %3042 = vmatprep.subr.mxu0 0.0
    %3043 = vmatpush2.msra.mxu0 0.0
    %3044 = vmatprep.subr.mxu0 0.0
    %3045 = vmatpush2.msra.mxu0 0.0
    %3046 = vmatprep.subr.mxu0 0.0
    %3047 = vmatpush2.msra.mxu0 0.0
    %3048 = vmatprep.subr.mxu0 0.0
    %3049 = vmatpush2.msra.mxu0 0.0
    %3050 = vmatprep.subr.mxu0 0.0
    %3051 = vmatpush2.msra.mxu0 0.0
    %3052 = vmatprep.subr.mxu0 0.0
    %3053 = vmatpush2.msra.mxu0 0.0
    %3054 = vmatprep.subr.mxu0 0.0
    %3055 = vmatpush2.msra.mxu0 0.0
    %3056 = vmatprep.mubr.f32.mxu0 0.0
    %3057 = vmatmul.mubr.f32.gmra.mxu0 %v2990
    %v3058 = vpop.f32.mrf.mxu0
    %v3059 = vadd.f32 0.0, %v3058
    %v3060 = vpop.f32.mrf.mxu0
    %3061 = vdwg.mxu0
    %3062 = vrot.lane.b32.xlu0 %v2029, 64
    %v3063 = vpop.permute.xlu0 %3062
    %v3066 = vsel %vm217, %v2754, 0
    %3068 = vmatprep.subr.mxu0 0.0
    %3069 = vmatpush1.msra.mxu0 0.0
    %3070 = vmatprep.subr.mxu0 0.0
    %3071 = vmatpush1.msra.mxu0 0.0
    %3072 = vmatprep.subr.mxu0 0.0
    %3073 = vmatpush1.msra.mxu0 0.0
    %3074 = vmatprep.subr.mxu0 0.0
    %3075 = vmatpush1.msra.mxu0 0.0
    %3076 = vmatprep.subr.mxu0 0.0
    %3077 = vmatpush1.msra.mxu0 0.0
    %3078 = vmatprep.subr.mxu0 0.0
    %3079 = vmatpush1.msra.mxu0 0.0
    %3080 = vmatprep.subr.mxu0 0.0
    %3081 = vmatpush1.msra.mxu0 0.0
    %3082 = vmatprep.subr.mxu0 0.0
    %3083 = vmatpush1.msra.mxu0 0.0
    %3084 = vmatprep.subr.mxu0 0.0
    %3085 = vmatpush1.msra.mxu0 0.0
    %3086 = vmatprep.subr.mxu0 0.0
    %3087 = vmatpush1.msra.mxu0 0.0
    %3088 = vmatprep.subr.mxu0 0.0
    %3089 = vmatpush1.msra.mxu0 0.0
    %3090 = vmatprep.subr.mxu0 0.0
    %3091 = vmatpush1.msra.mxu0 0.0
    %3092 = vmatprep.subr.mxu0 0.0
    %3093 = vmatpush1.msra.mxu0 0.0
    %3094 = vmatprep.subr.mxu0 0.0
    %3095 = vmatpush1.msra.mxu0 0.0
    %3096 = vmatprep.subr.mxu0 0.0
    %3097 = vmatpush1.msra.mxu0 0.0
    %3098 = vmatprep.subr.mxu0 0.0
    %3099 = vmatpush1.msra.mxu0 %v3063
    %3100 = vmatprep.subr.mxu0 0.0
    %3101 = vmatpush2.msra.mxu0 0.0
    %3102 = vmatprep.subr.mxu0 0.0
    %3103 = vmatpush2.msra.mxu0 0.0
    %3104 = vmatprep.subr.mxu0 0.0
    %3105 = vmatpush2.msra.mxu0 0.0
    %3106 = vmatprep.subr.mxu0 0.0
    %3107 = vmatpush2.msra.mxu0 0.0
    %3108 = vmatprep.subr.mxu0 0.0
    %3109 = vmatpush2.msra.mxu0 0.0
    %3110 = vmatprep.subr.mxu0 0.0
    %3111 = vmatpush2.msra.mxu0 0.0
    %3112 = vmatprep.subr.mxu0 0.0
    %3113 = vmatpush2.msra.mxu0 0.0
    %3114 = vmatprep.subr.mxu0 0.0
    %3115 = vmatpush2.msra.mxu0 0.0
    %3116 = vmatprep.subr.mxu0 0.0
    %3117 = vmatpush2.msra.mxu0 0.0
    %3118 = vmatprep.subr.mxu0 0.0
    %3119 = vmatpush2.msra.mxu0 0.0
    %3120 = vmatprep.subr.mxu0 0.0
    %3121 = vmatpush2.msra.mxu0 0.0
    %3122 = vmatprep.subr.mxu0 0.0
    %3123 = vmatpush2.msra.mxu0 0.0
    %3124 = vmatprep.subr.mxu0 0.0
    %3125 = vmatpush2.msra.mxu0 0.0
    %3126 = vmatprep.subr.mxu0 0.0
    %3127 = vmatpush2.msra.mxu0 0.0
    %3128 = vmatprep.subr.mxu0 0.0
    %3129 = vmatpush2.msra.mxu0 0.0
    %3130 = vmatprep.subr.mxu0 0.0
    %3131 = vmatpush2.msra.mxu0 0.0
    %3132 = vmatprep.mubr.f32.mxu0 0.0
    %3133 = vmatmul.mubr.f32.gmra.mxu0 %v3066
    %v3134 = vpop.f32.mrf.mxu0
    %v3135 = vadd.f32 0.0, %v3134
    %v3136 = vpop.f32.mrf.mxu0
    %3137 = vdwg.mxu0
    %3138 = vrot.lane.b32.xlu0 %v2053, 64
    %v3139 = vpop.permute.xlu0 %3138
    %v3142 = vsel %vm217, %v2755, 0
    %3144 = vmatprep.subr.mxu0 0.0
    %3145 = vmatpush1.msra.mxu0 0.0
    %3146 = vmatprep.subr.mxu0 0.0
    %3147 = vmatpush1.msra.mxu0 0.0
    %3148 = vmatprep.subr.mxu0 0.0
    %3149 = vmatpush1.msra.mxu0 0.0
    %3150 = vmatprep.subr.mxu0 0.0
    %3151 = vmatpush1.msra.mxu0 0.0
    %3152 = vmatprep.subr.mxu0 0.0
    %3153 = vmatpush1.msra.mxu0 0.0
    %3154 = vmatprep.subr.mxu0 0.0
    %3155 = vmatpush1.msra.mxu0 0.0
    %3156 = vmatprep.subr.mxu0 0.0
    %3157 = vmatpush1.msra.mxu0 0.0
    %3158 = vmatprep.subr.mxu0 0.0
    %3159 = vmatpush1.msra.mxu0 0.0
    %3160 = vmatprep.subr.mxu0 0.0
    %3161 = vmatpush1.msra.mxu0 0.0
    %3162 = vmatprep.subr.mxu0 0.0
    %3163 = vmatpush1.msra.mxu0 0.0
    %3164 = vmatprep.subr.mxu0 0.0
    %3165 = vmatpush1.msra.mxu0 0.0
    %3166 = vmatprep.subr.mxu0 0.0
    %3167 = vmatpush1.msra.mxu0 0.0
    %3168 = vmatprep.subr.mxu0 0.0
    %3169 = vmatpush1.msra.mxu0 0.0
    %3170 = vmatprep.subr.mxu0 0.0
    %3171 = vmatpush1.msra.mxu0 0.0
    %3172 = vmatprep.subr.mxu0 0.0
    %3173 = vmatpush1.msra.mxu0 0.0
    %3174 = vmatprep.subr.mxu0 0.0
    %3175 = vmatpush1.msra.mxu0 %v3139
    %3176 = vmatprep.subr.mxu0 0.0
    %3177 = vmatpush2.msra.mxu0 0.0
    %3178 = vmatprep.subr.mxu0 0.0
    %3179 = vmatpush2.msra.mxu0 0.0
    %3180 = vmatprep.subr.mxu0 0.0
    %3181 = vmatpush2.msra.mxu0 0.0
    %3182 = vmatprep.subr.mxu0 0.0
    %3183 = vmatpush2.msra.mxu0 0.0
    %3184 = vmatprep.subr.mxu0 0.0
    %3185 = vmatpush2.msra.mxu0 0.0
    %3186 = vmatprep.subr.mxu0 0.0
    %3187 = vmatpush2.msra.mxu0 0.0
    %3188 = vmatprep.subr.mxu0 0.0
    %3189 = vmatpush2.msra.mxu0 0.0
    %3190 = vmatprep.subr.mxu0 0.0
    %3191 = vmatpush2.msra.mxu0 0.0
    %3192 = vmatprep.subr.mxu0 0.0
    %3193 = vmatpush2.msra.mxu0 0.0
    %3194 = vmatprep.subr.mxu0 0.0
    %3195 = vmatpush2.msra.mxu0 0.0
    %3196 = vmatprep.subr.mxu0 0.0
    %3197 = vmatpush2.msra.mxu0 0.0
    %3198 = vmatprep.subr.mxu0 0.0
    %3199 = vmatpush2.msra.mxu0 0.0
    %3200 = vmatprep.subr.mxu0 0.0
    %3201 = vmatpush2.msra.mxu0 0.0
    %3202 = vmatprep.subr.mxu0 0.0
    %3203 = vmatpush2.msra.mxu0 0.0
    %3204 = vmatprep.subr.mxu0 0.0
    %3205 = vmatpush2.msra.mxu0 0.0
    %3206 = vmatprep.subr.mxu0 0.0
    %3207 = vmatpush2.msra.mxu0 0.0
    %3208 = vmatprep.mubr.f32.mxu0 0.0
    %3209 = vmatmul.mubr.f32.gmra.mxu0 %v3142
    %v3210 = vpop.f32.mrf.mxu0
    %v3211 = vadd.f32 0.0, %v3210
    %v3212 = vpop.f32.mrf.mxu0
    %3213 = vdwg.mxu0
    %3214 = vrot.lane.b32.xlu0 %v2057, 64
    %v3215 = vpop.permute.xlu0 %3214
    %v3218 = vsel %vm217, %v2756, 0
    %3220 = vmatprep.subr.mxu0 0.0
    %3221 = vmatpush1.msra.mxu0 0.0
    %3222 = vmatprep.subr.mxu0 0.0
    %3223 = vmatpush1.msra.mxu0 0.0
    %3224 = vmatprep.subr.mxu0 0.0
    %3225 = vmatpush1.msra.mxu0 0.0
    %3226 = vmatprep.subr.mxu0 0.0
    %3227 = vmatpush1.msra.mxu0 0.0
    %3228 = vmatprep.subr.mxu0 0.0
    %3229 = vmatpush1.msra.mxu0 0.0
    %3230 = vmatprep.subr.mxu0 0.0
    %3231 = vmatpush1.msra.mxu0 0.0
    %3232 = vmatprep.subr.mxu0 0.0
    %3233 = vmatpush1.msra.mxu0 0.0
    %3234 = vmatprep.subr.mxu0 0.0
    %3235 = vmatpush1.msra.mxu0 0.0
    %3236 = vmatprep.subr.mxu0 0.0
    %3237 = vmatpush1.msra.mxu0 0.0
    %3238 = vmatprep.subr.mxu0 0.0
    %3239 = vmatpush1.msra.mxu0 0.0
    %3240 = vmatprep.subr.mxu0 0.0
    %3241 = vmatpush1.msra.mxu0 0.0
    %3242 = vmatprep.subr.mxu0 0.0
    %3243 = vmatpush1.msra.mxu0 0.0
    %3244 = vmatprep.subr.mxu0 0.0
    %3245 = vmatpush1.msra.mxu0 0.0
    %3246 = vmatprep.subr.mxu0 0.0
    %3247 = vmatpush1.msra.mxu0 0.0
    %3248 = vmatprep.subr.mxu0 0.0
    %3249 = vmatpush1.msra.mxu0 0.0
    %3250 = vmatprep.subr.mxu0 0.0
    %3251 = vmatpush1.msra.mxu0 %v3215
    %3252 = vmatprep.subr.mxu0 0.0
    %3253 = vmatpush2.msra.mxu0 0.0
    %3254 = vmatprep.subr.mxu0 0.0
    %3255 = vmatpush2.msra.mxu0 0.0
    %3256 = vmatprep.subr.mxu0 0.0
    %3257 = vmatpush2.msra.mxu0 0.0
    %3258 = vmatprep.subr.mxu0 0.0
    %3259 = vmatpush2.msra.mxu0 0.0
    %3260 = vmatprep.subr.mxu0 0.0
    %3261 = vmatpush2.msra.mxu0 0.0
    %3262 = vmatprep.subr.mxu0 0.0
    %3263 = vmatpush2.msra.mxu0 0.0
    %3264 = vmatprep.subr.mxu0 0.0
    %3265 = vmatpush2.msra.mxu0 0.0
    %3266 = vmatprep.subr.mxu0 0.0
    %3267 = vmatpush2.msra.mxu0 0.0
    %3268 = vmatprep.subr.mxu0 0.0
    %3269 = vmatpush2.msra.mxu0 0.0
    %3270 = vmatprep.subr.mxu0 0.0
    %3271 = vmatpush2.msra.mxu0 0.0
    %3272 = vmatprep.subr.mxu0 0.0
    %3273 = vmatpush2.msra.mxu0 0.0
    %3274 = vmatprep.subr.mxu0 0.0
    %3275 = vmatpush2.msra.mxu0 0.0
    %3276 = vmatprep.subr.mxu0 0.0
    %3277 = vmatpush2.msra.mxu0 0.0
    %3278 = vmatprep.subr.mxu0 0.0
    %3279 = vmatpush2.msra.mxu0 0.0
    %3280 = vmatprep.subr.mxu0 0.0
    %3281 = vmatpush2.msra.mxu0 0.0
    %3282 = vmatprep.subr.mxu0 0.0
    %3283 = vmatpush2.msra.mxu0 0.0
    %3284 = vmatprep.mubr.f32.mxu0 0.0
    %3285 = vmatmul.mubr.f32.gmra.mxu0 %v3218
    %v3286 = vpop.f32.mrf.mxu0
    %v3287 = vadd.f32 0.0, %v3286
    %v3288 = vpop.f32.mrf.mxu0
    %3289 = vdwg.mxu0
    %3290 = vrot.lane.b32.xlu0 %v2061, 64
    %v3291 = vpop.permute.xlu0 %3290
    %v3294 = vsel %vm217, %v2757, 0
    %3296 = vmatprep.subr.mxu0 0.0
    %3297 = vmatpush1.msra.mxu0 0.0
    %3298 = vmatprep.subr.mxu0 0.0
    %3299 = vmatpush1.msra.mxu0 0.0
    %3300 = vmatprep.subr.mxu0 0.0
    %3301 = vmatpush1.msra.mxu0 0.0
    %3302 = vmatprep.subr.mxu0 0.0
    %3303 = vmatpush1.msra.mxu0 0.0
    %3304 = vmatprep.subr.mxu0 0.0
    %3305 = vmatpush1.msra.mxu0 0.0
    %3306 = vmatprep.subr.mxu0 0.0
    %3307 = vmatpush1.msra.mxu0 0.0
    %3308 = vmatprep.subr.mxu0 0.0
    %3309 = vmatpush1.msra.mxu0 0.0
    %3310 = vmatprep.subr.mxu0 0.0
    %3311 = vmatpush1.msra.mxu0 0.0
    %3312 = vmatprep.subr.mxu0 0.0
    %3313 = vmatpush1.msra.mxu0 0.0
    %3314 = vmatprep.subr.mxu0 0.0
    %3315 = vmatpush1.msra.mxu0 0.0
    %3316 = vmatprep.subr.mxu0 0.0
    %3317 = vmatpush1.msra.mxu0 0.0
    %3318 = vmatprep.subr.mxu0 0.0
    %3319 = vmatpush1.msra.mxu0 0.0
    %3320 = vmatprep.subr.mxu0 0.0
    %3321 = vmatpush1.msra.mxu0 0.0
    %3322 = vmatprep.subr.mxu0 0.0
    %3323 = vmatpush1.msra.mxu0 0.0
    %3324 = vmatprep.subr.mxu0 0.0
    %3325 = vmatpush1.msra.mxu0 0.0
    %3326 = vmatprep.subr.mxu0 0.0
    %3327 = vmatpush1.msra.mxu0 %v3291
    %3328 = vmatprep.subr.mxu0 0.0
    %3329 = vmatpush2.msra.mxu0 0.0
    %3330 = vmatprep.subr.mxu0 0.0
    %3331 = vmatpush2.msra.mxu0 0.0
    %3332 = vmatprep.subr.mxu0 0.0
    %3333 = vmatpush2.msra.mxu0 0.0
    %3334 = vmatprep.subr.mxu0 0.0
    %3335 = vmatpush2.msra.mxu0 0.0
    %3336 = vmatprep.subr.mxu0 0.0
    %3337 = vmatpush2.msra.mxu0 0.0
    %3338 = vmatprep.subr.mxu0 0.0
    %3339 = vmatpush2.msra.mxu0 0.0
    %3340 = vmatprep.subr.mxu0 0.0
    %3341 = vmatpush2.msra.mxu0 0.0
    %3342 = vmatprep.subr.mxu0 0.0
    %3343 = vmatpush2.msra.mxu0 0.0
    %3344 = vmatprep.subr.mxu0 0.0
    %3345 = vmatpush2.msra.mxu0 0.0
    %3346 = vmatprep.subr.mxu0 0.0
    %3347 = vmatpush2.msra.mxu0 0.0
    %3348 = vmatprep.subr.mxu0 0.0
    %3349 = vmatpush2.msra.mxu0 0.0
    %3350 = vmatprep.subr.mxu0 0.0
    %3351 = vmatpush2.msra.mxu0 0.0
    %3352 = vmatprep.subr.mxu0 0.0
    %3353 = vmatpush2.msra.mxu0 0.0
    %3354 = vmatprep.subr.mxu0 0.0
    %3355 = vmatpush2.msra.mxu0 0.0
    %3356 = vmatprep.subr.mxu0 0.0
    %3357 = vmatpush2.msra.mxu0 0.0
    %3358 = vmatprep.subr.mxu0 0.0
    %3359 = vmatpush2.msra.mxu0 0.0
    %3360 = vmatprep.mubr.f32.mxu0 0.0
    %3361 = vmatmul.mubr.f32.gmra.mxu0 %v3294
    %v3362 = vpop.f32.mrf.mxu0
    %v3363 = vadd.f32 0.0, %v3362
    %v3364 = vpop.f32.mrf.mxu0
    %3365 = vdwg.mxu0
    %3368 = vrot.lane.b32.xlu0 %v2907, 8
    %v3369 = vpop.permute.xlu0 %3368
    %3370 = vrot.lane.b32.xlu0 %v3211, 8
    %v3371 = vpop.permute.xlu0 %3370
    %3376 = vrot.lane.b32.xlu0 %v2983, 16
    %v3377 = vpop.permute.xlu0 %3376
    %3378 = vrot.lane.b32.xlu0 %v3287, 16
    %v3379 = vpop.permute.xlu0 %3378
    %3384 = vrot.lane.b32.xlu0 %v3059, 24
    %v3385 = vpop.permute.xlu0 %3384
    %3386 = vrot.lane.b32.xlu0 %v3363, 24
    %v3387 = vpop.permute.xlu0 %3386
    %v3390 = vsel %vm217, %v2831, %v3369
    %v3391 = vsel %vm217, %v3135, %v3371
    %v3392 = vsel %vm1546, %v3390, %v3377
    %v3393 = vsel %vm1546, %v3391, %v3379
    %v3394 = vsel %vm1549, %v3392, %v3385
    %v3395 = vsel %vm1549, %v3393, %v3387
    %s3396 = scalar_lea.vmem %s5, 32
    %v3397 = vld [vmem:[%s3396] sm:$0xff]
    %v3398 = vld [vmem:[%s3396 + $0x8] sm:$0xff]
    %v3399 = vld [vmem:[%s3396 + $0x10] sm:$0xff]
    %v3400 = vld [vmem:[%s3396 + $0x18] sm:$0xff]
    %s3401 = scalar_lea.vmem %s6, 1
    %v3402 = vld [vmem:[%s3401] sm:$0x1]
    %v3404 = vlaneseq
    %v3405 = vshrl.u32 %v3404, 7
    %v3406 = vsub.s32 0, %v3405
    %v3407 = vrot.slane %v3402, %v3406
    %v3410 = vsel %vm49, %v3394, 0
    %v3413 = vsel %vm49, %v3395, 0
    %3415 = vmatprep.subr.mxu0 0.0
    %3416 = vmatpush1.msra.mxu0 0.0
    %3417 = vmatprep.subr.mxu0 0.0
    %3418 = vmatpush1.msra.mxu0 0.0
    %3419 = vmatprep.subr.mxu0 0.0
    %3420 = vmatpush1.msra.mxu0 0.0
    %3421 = vmatprep.subr.mxu0 0.0
    %3422 = vmatpush1.msra.mxu0 0.0
    %3423 = vmatprep.subr.mxu0 0.0
    %3424 = vmatpush1.msra.mxu0 0.0
    %3425 = vmatprep.subr.mxu0 0.0
    %3426 = vmatpush1.msra.mxu0 0.0
    %3427 = vmatprep.subr.mxu0 0.0
    %3428 = vmatpush1.msra.mxu0 0.0
    %3429 = vmatprep.subr.mxu0 0.0
    %3430 = vmatpush1.msra.mxu0 0.0
    %3431 = vmatprep.subr.mxu0 0.0
    %3432 = vmatpush1.msra.mxu0 0.0
    %3433 = vmatprep.subr.mxu0 0.0
    %3434 = vmatpush1.msra.mxu0 0.0
    %3435 = vmatprep.subr.mxu0 0.0
    %3436 = vmatpush1.msra.mxu0 0.0
    %3437 = vmatprep.subr.mxu0 0.0
    %3438 = vmatpush1.msra.mxu0 0.0
    %3439 = vmatprep.subr.mxu0 0.0
    %3440 = vmatpush1.msra.mxu0 %v3400
    %3441 = vmatprep.subr.mxu0 0.0
    %3442 = vmatpush1.msra.mxu0 %v3399
    %3443 = vmatprep.subr.mxu0 0.0
    %3444 = vmatpush1.msra.mxu0 %v3398
    %3445 = vmatprep.subr.mxu0 0.0
    %3446 = vmatpush1.msra.mxu0 %v3397
    %3447 = vmatprep.subr.mxu0 0.0
    %3448 = vmatpush2.msra.mxu0 0.0
    %3449 = vmatprep.subr.mxu0 0.0
    %3450 = vmatpush2.msra.mxu0 0.0
    %3451 = vmatprep.subr.mxu0 0.0
    %3452 = vmatpush2.msra.mxu0 0.0
    %3453 = vmatprep.subr.mxu0 0.0
    %3454 = vmatpush2.msra.mxu0 0.0
    %3455 = vmatprep.subr.mxu0 0.0
    %3456 = vmatpush2.msra.mxu0 0.0
    %3457 = vmatprep.subr.mxu0 0.0
    %3458 = vmatpush2.msra.mxu0 0.0
    %3459 = vmatprep.subr.mxu0 0.0
    %3460 = vmatpush2.msra.mxu0 0.0
    %3461 = vmatprep.subr.mxu0 0.0
    %3462 = vmatpush2.msra.mxu0 0.0
    %3463 = vmatprep.subr.mxu0 0.0
    %3464 = vmatpush2.msra.mxu0 0.0
    %3465 = vmatprep.subr.mxu0 0.0
    %3466 = vmatpush2.msra.mxu0 0.0
    %3467 = vmatprep.subr.mxu0 0.0
    %3468 = vmatpush2.msra.mxu0 0.0
    %3469 = vmatprep.subr.mxu0 0.0
    %3470 = vmatpush2.msra.mxu0 0.0
    %3471 = vmatprep.subr.mxu0 0.0
    %3472 = vmatpush2.msra.mxu0 0.0
    %3473 = vmatprep.subr.mxu0 0.0
    %3474 = vmatpush2.msra.mxu0 0.0
    %3475 = vmatprep.subr.mxu0 0.0
    %3476 = vmatpush2.msra.mxu0 0.0
    %3477 = vmatprep.subr.mxu0 0.0
    %3478 = vmatpush2.msra.mxu0 0.0
    %3479 = vmatprep.mubr.f32.mxu0 0.0
    %3480 = vmatmul.mubr.f32.gmra.mxu0 %v3410
    %v3481 = vpop.f32.mrf.mxu0
    %v3482 = vadd.f32 %v3407, %v3481
    %v3483 = vpop.f32.mrf.mxu0
    %3484 = vmatprep.mubr.f32.mxu0 0.0
    %3485 = vmatmul.mubr.f32.gmra.mxu0 %v3413
    %v3486 = vpop.f32.mrf.mxu0
    %v3487 = vadd.f32 %v3407, %v3486
    %v3488 = vpop.f32.mrf.mxu0
    %3489 = vdwg.mxu0
    %v3490 = vadd.f32 %v1890, %v3482
    %v3491 = vadd.f32 %v1891, %v3487
    %s3492 = scalar_lea.vmem %s7, 1
    %v3493 = vld [vmem:[%s3492] sm:$0x1]
    %s3494 = scalar_lea.vmem %s8, 1
    %v3495 = vld [vmem:[%s3494] sm:$0x1]
    %v3496 = vsel %vm49, %v3490, 0.0
    %3497 = vadd.xlane.f32.xlu0 %v3496
    %v3498 = vpop.xlane.xlu0 %3497
    %v3499 = vsel %vm49, %v3491, 0.0
    %3500 = vadd.xlane.f32.xlu0 %v3499
    %v3501 = vpop.xlane.xlu0 %3500
    %v3502 = vmul.f32 %v3498, %v56
    %v3503 = vmul.f32 %v3501, %v56
    %v3504 = vsub.f32 %v3490, %v3502
    %v3505 = vsub.f32 %v3491, %v3503
    %v3506 = vmul.f32 %v3504, %v3504
    %v3507 = vmul.f32 %v3505, %v3505
    %v3508 = vsel %vm49, %v3506, 0.0
    %3509 = vadd.xlane.f32.xlu0 %v3508
    %v3510 = vpop.xlane.xlu0 %3509
    %v3511 = vsel %vm49, %v3507, 0.0
    %3512 = vadd.xlane.f32.xlu0 %v3511
    %v3513 = vpop.xlane.xlu0 %3512
    %v3514 = vmul.f32 %v3510, %v56
    %v3515 = vmul.f32 %v3513, %v56
    %v3516 = vadd.f32 %v3514, 1e-05
    %v3517 = vadd.f32 %v3515, 1e-05
    %v3518 = vrsqrt.pop %v3516
    %v3519 = vrsqrt.pop %v3517
    %v3520 = vmul.f32 %v3504, %v3518
    %v3521 = vmul.f32 %v3505, %v3519
    %v3523 = vlaneseq
    %v3524 = vshrl.u32 %v3523, 7
    %v3525 = vsub.s32 0, %v3524
    %v3526 = vrot.slane %v3493, %v3525
    %v3528 = vmul.f32 %v3520, %v3526
    %v3529 = vmul.f32 %v3521, %v3526
    %v3531 = vlaneseq
    %v3532 = vshrl.u32 %v3531, 7
    %v3533 = vsub.s32 0, %v3532
    %v3534 = vrot.slane %v3495, %v3533
    %v3536 = vadd.f32 %v3528, %v3534
    %v3537 = vadd.f32 %v3529, %v3534
    %s3538 = scalar_lea.vmem %s9, 32
    %v3539 = vld [vmem:[%s3538] sm:$0xff]
    %v3540 = vld [vmem:[%s3538 + $0x8] sm:$0xff]
    %v3541 = vld [vmem:[%s3538 + $0x10] sm:$0xff]
    %v3542 = vld [vmem:[%s3538 + $0x18] sm:$0xff]
    %s3543 = scalar_lea.vmem %s10, 1
    %v3544 = vld [vmem:[%s3543] sm:$0x1]
    %v3546 = vlaneseq
    %v3547 = vshrl.u32 %v3546, 7
    %v3548 = vsub.s32 0, %v3547
    %v3549 = vrot.slane %v3544, %v3548
    %v3552 = vsel %vm49, %v3536, 0
    %v3555 = vsel %vm49, %v3537, 0
    %3557 = vmatprep.subr.mxu0 0.0
    %3558 = vmatpush1.msra.mxu0 0.0
    %3559 = vmatprep.subr.mxu0 0.0
    %3560 = vmatpush1.msra.mxu0 0.0
    %3561 = vmatprep.subr.mxu0 0.0
    %3562 = vmatpush1.msra.mxu0 0.0
    %3563 = vmatprep.subr.mxu0 0.0
    %3564 = vmatpush1.msra.mxu0 0.0
    %3565 = vmatprep.subr.mxu0 0.0
    %3566 = vmatpush1.msra.mxu0 0.0
    %3567 = vmatprep.subr.mxu0 0.0
    %3568 = vmatpush1.msra.mxu0 0.0
    %3569 = vmatprep.subr.mxu0 0.0
    %3570 = vmatpush1.msra.mxu0 0.0
    %3571 = vmatprep.subr.mxu0 0.0
    %3572 = vmatpush1.msra.mxu0 0.0
    %3573 = vmatprep.subr.mxu0 0.0
    %3574 = vmatpush1.msra.mxu0 0.0
    %3575 = vmatprep.subr.mxu0 0.0
    %3576 = vmatpush1.msra.mxu0 0.0
    %3577 = vmatprep.subr.mxu0 0.0
    %3578 = vmatpush1.msra.mxu0 0.0
    %3579 = vmatprep.subr.mxu0 0.0
    %3580 = vmatpush1.msra.mxu0 0.0
    %3581 = vmatprep.subr.mxu0 0.0
    %3582 = vmatpush1.msra.mxu0 %v3542
    %3583 = vmatprep.subr.mxu0 0.0
    %3584 = vmatpush1.msra.mxu0 %v3541
    %3585 = vmatprep.subr.mxu0 0.0
    %3586 = vmatpush1.msra.mxu0 %v3540
    %3587 = vmatprep.subr.mxu0 0.0
    %3588 = vmatpush1.msra.mxu0 %v3539
    %3589 = vmatprep.subr.mxu0 0.0
    %3590 = vmatpush2.msra.mxu0 0.0
    %3591 = vmatprep.subr.mxu0 0.0
    %3592 = vmatpush2.msra.mxu0 0.0
    %3593 = vmatprep.subr.mxu0 0.0
    %3594 = vmatpush2.msra.mxu0 0.0
    %3595 = vmatprep.subr.mxu0 0.0
    %3596 = vmatpush2.msra.mxu0 0.0
    %3597 = vmatprep.subr.mxu0 0.0
    %3598 = vmatpush2.msra.mxu0 0.0
    %3599 = vmatprep.subr.mxu0 0.0
    %3600 = vmatpush2.msra.mxu0 0.0
    %3601 = vmatprep.subr.mxu0 0.0
    %3602 = vmatpush2.msra.mxu0 0.0
    %3603 = vmatprep.subr.mxu0 0.0
    %3604 = vmatpush2.msra.mxu0 0.0
    %3605 = vmatprep.subr.mxu0 0.0
    %3606 = vmatpush2.msra.mxu0 0.0
    %3607 = vmatprep.subr.mxu0 0.0
    %3608 = vmatpush2.msra.mxu0 0.0
    %3609 = vmatprep.subr.mxu0 0.0
    %3610 = vmatpush2.msra.mxu0 0.0
    %3611 = vmatprep.subr.mxu0 0.0
    %3612 = vmatpush2.msra.mxu0 0.0
    %3613 = vmatprep.subr.mxu0 0.0
    %3614 = vmatpush2.msra.mxu0 0.0
    %3615 = vmatprep.subr.mxu0 0.0
    %3616 = vmatpush2.msra.mxu0 0.0
    %3617 = vmatprep.subr.mxu0 0.0
    %3618 = vmatpush2.msra.mxu0 0.0
    %3619 = vmatprep.subr.mxu0 0.0
    %3620 = vmatpush2.msra.mxu0 0.0
    %3621 = vmatprep.mubr.f32.mxu0 0.0
    %3622 = vmatmul.mubr.f32.gmra.mxu0 %v3552
    %v3623 = vpop.f32.mrf.mxu0
    %v3624 = vadd.f32 %v3549, %v3623
    %v3625 = vpop.f32.mrf.mxu0
    %3626 = vmatprep.mubr.f32.mxu0 0.0
    %3627 = vmatmul.mubr.f32.gmra.mxu0 %v3555
    %v3628 = vpop.f32.mrf.mxu0
    %v3629 = vadd.f32 %v3549, %v3628
    %v3630 = vpop.f32.mrf.mxu0
    %3631 = vdwg.mxu0
    %v3632 = vmul.f32 %v3624, 0.5
    %v3633 = vmul.f32 %v3629, 0.5
    %v3634 = vmul.f32 %v3624, 0.70710677
    %v3635 = vmul.f32 %v3629, 0.70710677
    %v3636 = verf.f32.pop %v3634
    %v3637 = verf.f32.pop %v3635
    %v3638 = vadd.f32 %v3636, 1.0
    %v3639 = vadd.f32 %v3637, 1.0
    %v3640 = vmul.f32 %v3632, %v3638
    %v3641 = vmul.f32 %v3633, %v3639
    %s3642 = scalar_lea.vmem %s11, 128
    %v3643 = vld [vmem:[%s3642] sm:$0xff]
    %v3644 = vld [vmem:[%s3642 + $0x8] sm:$0xff]
    %v3645 = vld [vmem:[%s3642 + $0x10] sm:$0xff]
    %v3646 = vld [vmem:[%s3642 + $0x18] sm:$0xff]
    %v3647 = vld [vmem:[%s3642 + $0x20] sm:$0xff]
    %v3648 = vld [vmem:[%s3642 + $0x28] sm:$0xff]
    %v3649 = vld [vmem:[%s3642 + $0x30] sm:$0xff]
    %v3650 = vld [vmem:[%s3642 + $0x38] sm:$0xff]
    %v3651 = vld [vmem:[%s3642 + $0x40] sm:$0xff]
    %v3652 = vld [vmem:[%s3642 + $0x48] sm:$0xff]
    %v3653 = vld [vmem:[%s3642 + $0x50] sm:$0xff]
    %v3654 = vld [vmem:[%s3642 + $0x58] sm:$0xff]
    %v3655 = vld [vmem:[%s3642 + $0x60] sm:$0xff]
    %v3656 = vld [vmem:[%s3642 + $0x68] sm:$0xff]
    %v3657 = vld [vmem:[%s3642 + $0x70] sm:$0xff]
    %v3658 = vld [vmem:[%s3642 + $0x78] sm:$0xff]
    %s3659 = scalar_lea.vmem %s12, 1
    %v3660 = vld [vmem:[%s3659] sm:$0x1]
    %v3662 = vlaneseq
    %v3663 = vshrl.u32 %v3662, 7
    %v3664 = vsub.s32 0, %v3663
    %v3665 = vrot.slane %v3660, %v3664
    %3667 = vmatprep.subr.mxu0 0.0
    %3668 = vmatpush1.msra.mxu0 %v3658
    %3669 = vmatprep.subr.mxu0 0.0
    %3670 = vmatpush1.msra.mxu0 %v3657
    %3671 = vmatprep.subr.mxu0 0.0
    %3672 = vmatpush1.msra.mxu0 %v3656
    %3673 = vmatprep.subr.mxu0 0.0
    %3674 = vmatpush1.msra.mxu0 %v3655
    %3675 = vmatprep.subr.mxu0 0.0
    %3676 = vmatpush1.msra.mxu0 %v3654
    %3677 = vmatprep.subr.mxu0 0.0
    %3678 = vmatpush1.msra.mxu0 %v3653
    %3679 = vmatprep.subr.mxu0 0.0
    %3680 = vmatpush1.msra.mxu0 %v3652
    %3681 = vmatprep.subr.mxu0 0.0
    %3682 = vmatpush1.msra.mxu0 %v3651
    %3683 = vmatprep.subr.mxu0 0.0
    %3684 = vmatpush1.msra.mxu0 %v3650
    %3685 = vmatprep.subr.mxu0 0.0
    %3686 = vmatpush1.msra.mxu0 %v3649
    %3687 = vmatprep.subr.mxu0 0.0
    %3688 = vmatpush1.msra.mxu0 %v3648
    %3689 = vmatprep.subr.mxu0 0.0
    %3690 = vmatpush1.msra.mxu0 %v3647
    %3691 = vmatprep.subr.mxu0 0.0
    %3692 = vmatpush1.msra.mxu0 %v3646
    %3693 = vmatprep.subr.mxu0 0.0
    %3694 = vmatpush1.msra.mxu0 %v3645
    %3695 = vmatprep.subr.mxu0 0.0
    %3696 = vmatpush1.msra.mxu0 %v3644
    %3697 = vmatprep.subr.mxu0 0.0
    %3698 = vmatpush1.msra.mxu0 %v3643
    %3699 = vmatprep.subr.mxu0 0.0
    %3700 = vmatpush2.msra.mxu0 0.0
    %3701 = vmatprep.subr.mxu0 0.0
    %3702 = vmatpush2.msra.mxu0 0.0
    %3703 = vmatprep.subr.mxu0 0.0
    %3704 = vmatpush2.msra.mxu0 0.0
    %3705 = vmatprep.subr.mxu0 0.0
    %3706 = vmatpush2.msra.mxu0 0.0
    %3707 = vmatprep.subr.mxu0 0.0
    %3708 = vmatpush2.msra.mxu0 0.0
    %3709 = vmatprep.subr.mxu0 0.0
    %3710 = vmatpush2.msra.mxu0 0.0
    %3711 = vmatprep.subr.mxu0 0.0
    %3712 = vmatpush2.msra.mxu0 0.0
    %3713 = vmatprep.subr.mxu0 0.0
    %3714 = vmatpush2.msra.mxu0 0.0
    %3715 = vmatprep.subr.mxu0 0.0
    %3716 = vmatpush2.msra.mxu0 0.0
    %3717 = vmatprep.subr.mxu0 0.0
    %3718 = vmatpush2.msra.mxu0 0.0
    %3719 = vmatprep.subr.mxu0 0.0
    %3720 = vmatpush2.msra.mxu0 0.0
    %3721 = vmatprep.subr.mxu0 0.0
    %3722 = vmatpush2.msra.mxu0 0.0
    %3723 = vmatprep.subr.mxu0 0.0
    %3724 = vmatpush2.msra.mxu0 0.0
    %3725 = vmatprep.subr.mxu0 0.0
    %3726 = vmatpush2.msra.mxu0 0.0
    %3727 = vmatprep.subr.mxu0 0.0
    %3728 = vmatpush2.msra.mxu0 0.0
    %3729 = vmatprep.subr.mxu0 0.0
    %3730 = vmatpush2.msra.mxu0 0.0
    %3731 = vmatprep.mubr.f32.mxu0 0.0
    %3732 = vmatmul.mubr.f32.gmra.mxu0 %v3640
    %v3733 = vpop.f32.mrf.mxu0
    %v3734 = vadd.f32 %v3665, %v3733
    %v3735 = vpop.f32.mrf.mxu0
    %3736 = vmatprep.mubr.f32.mxu0 0.0
    %3737 = vmatmul.mubr.f32.gmra.mxu0 %v3641
    %v3738 = vpop.f32.mrf.mxu0
    %v3739 = vadd.f32 %v3665, %v3738
    %v3740 = vpop.f32.mrf.mxu0
    %3741 = vdwg.mxu0
    %v3742 = vadd.f32 %v3490, %v3734
    %v3743 = vadd.f32 %v3491, %v3739
    %3744 = vst.msk [vmem:[#allocation2] sm:$0xff] %vm49, %v3742
    %3745 = vst.msk [vmem:[#allocation2 + $0x8] sm:$0xff] %vm49, %v3743
    // Predicated region
    $region54: #{tpu_custom_call.1} parent=1 // pred_check
      _
    $region55: #{tpu_custom_call.1} parent=1 // pred_check_branch
      %3747 = sbr.rel (0) target = $region57
    $region56: #{tpu_custom_call.1} parent=1 // pred_region
      %s3749 = ssub.s32 256, 256
      %3750 = vsyncadd [#allocation3], %s3749
      %s3751 = sshll.u32 [#allocation2], 4
      %s3752 = int_to_ptr.vmem [resolvable:$true] %s3751
      %3757 = dma.vmem_to_hbm [thread:$0]  %s3752, 256, %s13, [#allocation3], 128, 128, 8
    $region57: #{tpu_custom_call.1} parent=1 // pred_fallthru
      _
    // Predicated region
    $region58: #{tpu_custom_call.1} parent=1 // pred_check
      _
    $region59: #{tpu_custom_call.1} parent=1 // pred_check_branch
      %3759 = sbr.rel (0) target = $region61
    $region60: #{tpu_custom_call.1} parent=1 // pred_region
      %3760 = dma.done [#allocation3], 256
    $region61: #{tpu_custom_call.1} parent=1 // pred_fallthru
      _
    %3761 = vsyncpa [#allocation3], 1

</llo_original>
